<compile_context>
chip_gen: v6e
topology: v6e:2x2x1
jax: 0.10.0
libtpu: 0.0.40
codegen_flags: <defaults>
</compile_context>

<pallas_src>
import functools
import numpy as np
import jax
import jax.numpy as jnp
from jax.experimental import pallas as pl
from jax.experimental.pallas import tpu as pltpu

# ---- configuration (SwinTransformerBlock(dim=32, input_resolution=(8,8),
#                     num_heads=4, window_size=4, shift_size=2, mlp_ratio=4.0)) ----
B = 2
H = W = 8
C = 32                       # dim
NUM_HEADS = 4
HD = C // NUM_HEADS          # 8
WS = 4                       # window_size
SHIFT = 2                    # shift_size (SW-MSA)
MLP_RATIO = 4.0
HIDDEN = int(C * MLP_RATIO)  # 128
N = WS * WS                  # tokens per window = 16
NW = (H // WS) * (W // WS)   # windows per image = 4
TOK = H * W                  # tokens per image = 64
M = B * TOK                  # total rows processed in the single kernel step = 128
SCALE = HD ** (-0.5)
EPS = 1e-5                   # nn.LayerNorm default
NEG = -1e9                   # bias for pairs in different shifted windows / images
APPROX_RECIP = False         # True -> route softmax reciprocal to EUP (approx)


# ------------------------------------------------------------------ kernel -----
def _layernorm(x, gamma, beta):
    mu = jnp.mean(x, axis=-1, keepdims=True)
    var = jnp.mean((x - mu) ** 2, axis=-1, keepdims=True)
    return (x - mu) * jax.lax.rsqrt(var + EPS) * gamma + beta


def fused_block_kernel(x_ref, g1_ref, b1_ref, wqkv_ref, bqkv_ref, wproj_ref, bproj_ref,
                       bias_ref, g2_ref, b2_ref, w1_ref, bb1_ref, w2_ref, bb2_ref,
                       o_ref):
    """Whole batch in one step. x_ref: (M, C) raw tokens in ORIGINAL order."""
    x = x_ref[...]                                                    # (M, C)

    # ---------------- attention branch (norm1 fused) ----------------
    xn = _layernorm(x, g1_ref[...], b1_ref[...])
    qkv = jnp.dot(xn, wqkv_ref[...],
                  preferred_element_type=jnp.float32) + bqkv_ref[...]  # (M, 3C)

    wproj = wproj_ref[...]                                            # (C, C)
    acc = jnp.zeros((M, C), jnp.float32)
    for h in range(NUM_HEADS):                                        # 4x unrolled
        q = qkv[:, 0 * C + h * HD: 0 * C + (h + 1) * HD]              # (M, HD)
        k = qkv[:, 1 * C + h * HD: 1 * C + (h + 1) * HD]
        v = qkv[:, 2 * C + h * HD: 2 * C + (h + 1) * HD]
        # full-token scores; block-sparse bias masks everything outside the
        # token's own shifted window (and outside its own image).
        s = jnp.einsum('nd,md->nm', q * SCALE, k,
                       preferred_element_type=jnp.float32)            # (M, M)
        s = s + bias_ref[h]                                           # per-head ref load
        s = s - jnp.max(s, axis=-1, keepdims=True)
        e = jnp.exp(s)
        l = jnp.sum(e, axis=-1, keepdims=True)
        p_attn = e * pl.reciprocal(l, approx=APPROX_RECIP)
        o_h = jnp.dot(p_attn, v, preferred_element_type=jnp.float32)  # (M, HD)
        # fold this head's output straight into the output projection (no concat)
        acc = acc + jnp.dot(o_h, wproj[h * HD:(h + 1) * HD, :],
                            preferred_element_type=jnp.float32)

    x1 = x + acc + bproj_ref[...]                                     # residual 1

    # ---------------- MLP branch (norm2 fused) ----------------
    xn2 = _layernorm(x1, g2_ref[...], b2_ref[...])
    hid = jnp.dot(xn2, w1_ref[...], preferred_element_type=jnp.float32) + bb1_ref[...]
    hid = 0.5 * hid * (1.0 + jax.lax.erf(hid * (1.0 / np.sqrt(2.0))))  # exact GELU
    y = jnp.dot(hid, w2_ref[...], preferred_element_type=jnp.float32) + bb2_ref[...]

    o_ref[...] = x1 + y                                               # residual 2


# ------------------------------------------------------------------ wrapper ----
def fused_block_pallas(x2d, p, bias_full):
    vmem_spec = pl.BlockSpec(memory_space=pltpu.MemorySpace.VMEM)
    flops = (2 * M * C * 3 * C                      # qkv
             + NUM_HEADS * 2 * 2 * M * M * HD       # scores + pv
             + 2 * M * C * C                        # proj
             + 2 * 2 * M * C * HIDDEN)              # fc1 + fc2
    transcendentals = NUM_HEADS * M * M + M * HIDDEN
    bytes_accessed = 4 * (2 * M * C + int(bias_full.size)
                          + sum(int(np.prod(v.shape)) for v in p.values()))
    return pl.pallas_call(
        fused_block_kernel,
        out_shape=jax.ShapeDtypeStruct((M, C), jnp.float32),
        in_specs=[vmem_spec] * 14,
        out_specs=vmem_spec,
        cost_estimate=pl.CostEstimate(flops=flops,
                                      transcendentals=transcendentals,
                                      bytes_accessed=bytes_accessed),
    )(x2d, p['g1'], p['b1'], p['wqkv'], p['bqkv'], p['wproj'], p['bproj'],
      bias_full, p['g2'], p['b2'], p['w1'], p['bb1'], p['w2'], p['bb2'])


@jax.jit
def swin_block_forward(x, p, bias_full):
    b, l, c = x.shape
    out = fused_block_pallas(x.reshape(b * l, c), p, bias_full)
    return out.reshape(b, l, c)


# ------------------------------------------------------- pure-JAX reference ----
def window_partition_jnp(x, ws):
    b, h, w, c = x.shape
    x = x.reshape(b, h // ws, ws, w // ws, ws, c)
    return x.transpose(0, 1, 3, 2, 4, 5).reshape(-1, ws, ws, c)


def window_reverse_jnp(windows, ws, h, w):
    b = windows.shape[0] // ((h // ws) * (w // ws))
    x = windows.reshape(b, h // ws, w // ws, ws, ws, -1)
    return x.transpose(0, 1, 3, 2, 4, 5).reshape(b, h, w, -1)


def reference_forward(x, p, rel_bias, attn_mask):
    """Faithful translation of the PyTorch forward (roll/partition/window attn)."""
    hp = functools.partial(jnp.einsum, precision=jax.lax.Precision.HIGHEST)

    def ln(t, g, b):
        mu = t.mean(-1, keepdims=True)
        var = ((t - mu) ** 2).mean(-1, keepdims=True)
        return (t - mu) / jnp.sqrt(var + EPS) * g + b

    b, l, c = x.shape
    shortcut = x
    xi = ln(x, p['g1'][0], p['b1'][0]).reshape(b, H, W, c)
    shifted = jnp.roll(xi, (-SHIFT, -SHIFT), axis=(1, 2))
    xw = window_partition_jnp(shifted, WS).reshape(-1, N, c)
    qkv = hp('bnc,cd->bnd', xw, p['wqkv']) + p['bqkv'][0]
    qkv = qkv.reshape(-1, N, 3, NUM_HEADS, HD).transpose(2, 0, 3, 1, 4)
    q, k, v = qkv[0] * SCALE, qkv[1], qkv[2]
    attn = hp('bhnd,bhmd->bhnm', q, k) + rel_bias[None]
    attn = attn.reshape(b, NW, NUM_HEADS, N, N) + attn_mask[None, :, None, :, :]
    attn = jax.nn.softmax(attn.reshape(-1, NUM_HEADS, N, N), axis=-1)
    out = hp('bhnm,bhmd->bhnd', attn, v).transpose(0, 2, 1, 3).reshape(-1, N, c)
    out = hp('bnc,cd->bnd', out, p['wproj']) + p['bproj'][0]
    out = window_reverse_jnp(out.reshape(-1, WS, WS, c), WS, H, W)
    xi = jnp.roll(out, (SHIFT, SHIFT), axis=(1, 2)).reshape(b, l, c)
    x1 = shortcut + xi
    xn = ln(x1, p['g2'][0], p['b2'][0])
    hmid = hp('blc,ch->blh', xn, p['w1']) + p['bb1'][0]
    hmid = 0.5 * hmid * (1.0 + jax.lax.erf(hmid / jnp.sqrt(2.0)))
    y = hp('blh,hc->blc', hmid, p['w2']) + p['bb2'][0]
    return x1 + y


# ------------------------------------------------------------------ buffers ----
def make_relative_position_index():
    coords = np.stack(np.meshgrid(np.arange(WS), np.arange(WS), indexing='ij'))
    coords_flatten = coords.reshape(2, -1)
    rel = coords_flatten[:, :, None] - coords_flatten[:, None, :]
    rel = rel.transpose(1, 2, 0).astype(np.int64)
    rel[:, :, 0] += WS - 1
    rel[:, :, 1] += WS - 1
    rel[:, :, 0] *= 2 * WS - 1
    return rel.sum(-1)                                                # (N, N)


def make_attn_mask():
    img_mask = np.zeros((1, H, W, 1), np.float32)
    slices = (slice(0, -WS), slice(-WS, -SHIFT), slice(-SHIFT, None))
    cnt = 0
    for hs in slices:
        for ws_ in slices:
            img_mask[:, hs, ws_, :] = cnt
            cnt += 1
    mw = img_mask.reshape(1, H // WS, WS, W // WS, WS, 1)
    mw = mw.transpose(0, 1, 3, 2, 4, 5).reshape(-1, WS * WS)          # (nW, N)
    am = mw[:, None, :] - mw[:, :, None]                              # (nW, N, N)
    return np.where(am != 0, -100.0, 0.0).astype(np.float32)


def make_full_bias(rel_bias, attn_mask):
    """(heads, B*TOK, B*TOK) attention bias in ORIGINAL token order.

    For original tokens i, j of the same image that land in the same window
    after the cyclic -SHIFT roll: rel_bias[h, p_i, p_j] + shift_mask[w, p_i, p_j].
    Everything else (different shifted window, or different image): NEG.
    """
    r = np.arange(H)[:, None]
    c = np.arange(W)[None, :]
    rs = (r - SHIFT) % H                                  # shifted row of token (r,c)
    cs = (c - SHIFT) % W                                  # shifted col
    win = ((rs // WS) * (W // WS) + cs // WS).reshape(-1)  # (TOK,) shifted window id
    pos = ((rs % WS) * WS + cs % WS).reshape(-1)            # (TOK,) pos within window
    same = win[:, None] == win[None, :]                     # (TOK, TOK)
    vals = rel_bias[:, pos[:, None], pos[None, :]]          # (nH, TOK, TOK)
    maskv = attn_mask[win[:, None], pos[:, None], pos[None, :]]   # (TOK, TOK)
    per_img = np.where(same[None], vals + maskv[None], NEG).astype(np.float32)
    full = np.full((NUM_HEADS, M, M), NEG, np.float32)
    for b in range(B):
        full[:, b * TOK:(b + 1) * TOK, b * TOK:(b + 1) * TOK] = per_img
    return full


# --------------------------------------------------------------------- main ----
if __name__ == "__main__":
    key = jax.random.PRNGKey(0)
    keys = jax.random.split(key, 8)

    params = {
        'g1':    jnp.ones((1, C), jnp.float32),
        'b1':    jnp.zeros((1, C), jnp.float32),
        'wqkv':  (jax.random.normal(keys[0], (C, 3 * C)) * 0.02).astype(jnp.float32),
        'bqkv':  jnp.zeros((1, 3 * C), jnp.float32),
        'wproj': (jax.random.normal(keys[1], (C, C)) * 0.02).astype(jnp.float32),
        'bproj': jnp.zeros((1, C), jnp.float32),
        'g2':    jnp.ones((1, C), jnp.float32),
        'b2':    jnp.zeros((1, C), jnp.float32),
        'w1':    (jax.random.normal(keys[2], (C, HIDDEN)) * 0.02).astype(jnp.float32),
        'bb1':   jnp.zeros((1, HIDDEN), jnp.float32),
        'w2':    (jax.random.normal(keys[3], (HIDDEN, C)) * 0.02).astype(jnp.float32),
        'bb2':   jnp.zeros((1, C), jnp.float32),
    }
    # relative_position_bias_table: ((2*ws-1)^2, num_heads)
    rel_table = np.asarray(jax.random.normal(keys[4], ((2 * WS - 1) ** 2, NUM_HEADS)) * 0.02,
                           dtype=np.float32)
    rel_index = make_relative_position_index()
    rel_bias = rel_table[rel_index.reshape(-1)].reshape(N, N, NUM_HEADS).transpose(2, 0, 1)
    attn_mask = make_attn_mask()                                      # (nW, N, N)
    # precombined block-sparse bias in original token order (no permutations needed)
    bias_full = jnp.asarray(make_full_bias(rel_bias, attn_mask))      # (nH, M, M)

    x = jax.random.normal(keys[5], (B, H * W, C), jnp.float32)

    out = swin_block_forward(x, params, bias_full)
    out = jax.block_until_ready(out)

    ref = reference_forward(x, params, jnp.asarray(rel_bias), jnp.asarray(attn_mask))
    np.testing.assert_allclose(np.asarray(out), np.asarray(ref), rtol=1e-3, atol=1e-4)

    print("KERNEL_OK")
</pallas_src>

<mosaic_0001>
module attributes {stable_mosaic.version = 11 : i64} {
  func.func @fused_block_kernel(%arg0: memref<128x32xf32, #tpu.memory_space<vmem>>, %arg1: memref<1x32xf32, #tpu.memory_space<vmem>>, %arg2: memref<1x32xf32, #tpu.memory_space<vmem>>, %arg3: memref<32x96xf32, #tpu.memory_space<vmem>>, %arg4: memref<1x96xf32, #tpu.memory_space<vmem>>, %arg5: memref<32x32xf32, #tpu.memory_space<vmem>>, %arg6: memref<1x32xf32, #tpu.memory_space<vmem>>, %arg7: memref<4x128x128xf32, #tpu.memory_space<vmem>>, %arg8: memref<1x32xf32, #tpu.memory_space<vmem>>, %arg9: memref<1x32xf32, #tpu.memory_space<vmem>>, %arg10: memref<32x128xf32, #tpu.memory_space<vmem>>, %arg11: memref<1x128xf32, #tpu.memory_space<vmem>>, %arg12: memref<128x32xf32, #tpu.memory_space<vmem>>, %arg13: memref<1x32xf32, #tpu.memory_space<vmem>>, %arg14: memref<128x32xf32, #tpu.memory_space<vmem>>) attributes {dimension_semantics = [], scalar_prefetch = 0 : i64, scratch_operands = 0 : i64, tpu.core_type = #tpu.core_type<tc>} {
    %c0 = arith.constant 0 : index
    %c0_0 = arith.constant 0 : index
    %0 = vector.load %arg0[%c0, %c0_0] : memref<128x32xf32, #tpu.memory_space<vmem>>, vector<128x32xf32>
    %c0_1 = arith.constant 0 : index
    %c0_2 = arith.constant 0 : index
    %1 = vector.load %arg1[%c0_1, %c0_2] : memref<1x32xf32, #tpu.memory_space<vmem>>, vector<1x32xf32>
    %c0_3 = arith.constant 0 : index
    %c0_4 = arith.constant 0 : index
    %2 = vector.load %arg2[%c0_3, %c0_4] : memref<1x32xf32, #tpu.memory_space<vmem>>, vector<1x32xf32>
    %cst = arith.constant dense<0.000000e+00> : vector<128xf32>
    %3 = vector.multi_reduction <add>, %0, %cst [1] : vector<128x32xf32> to vector<128xf32>
    %4 = vector.shape_cast %3 : vector<128xf32> to vector<128x1xf32>
    %cst_5 = arith.constant 3.200000e+01 : f32
    %5 = vector.broadcast %cst_5 : f32 to vector<128x1xf32>
    %6 = arith.divf %4, %5 : vector<128x1xf32>
    %7 = vector.broadcast %6 : vector<128x1xf32> to vector<128x32xf32>
    %8 = arith.subf %0, %7 : vector<128x32xf32>
    %9 = arith.mulf %8, %8 : vector<128x32xf32>
    %cst_6 = arith.constant dense<0.000000e+00> : vector<128xf32>
    %10 = vector.multi_reduction <add>, %9, %cst_6 [1] : vector<128x32xf32> to vector<128xf32>
    %11 = vector.shape_cast %10 : vector<128xf32> to vector<128x1xf32>
    %cst_7 = arith.constant 3.200000e+01 : f32
    %12 = vector.broadcast %cst_7 : f32 to vector<128x1xf32>
    %13 = arith.divf %11, %12 : vector<128x1xf32>
    %14 = vector.broadcast %6 : vector<128x1xf32> to vector<128x32xf32>
    %15 = arith.subf %0, %14 : vector<128x32xf32>
    %cst_8 = arith.constant 9.99999974E-6 : f32
    %16 = vector.broadcast %cst_8 : f32 to vector<128x1xf32>
    %17 = arith.addf %13, %16 : vector<128x1xf32>
    %18 = math.rsqrt %17 : vector<128x1xf32>
    %19 = vector.broadcast %18 : vector<128x1xf32> to vector<128x32xf32>
    %20 = arith.mulf %15, %19 : vector<128x32xf32>
    %21 = vector.broadcast %1 : vector<1x32xf32> to vector<128x32xf32>
    %22 = arith.mulf %20, %21 : vector<128x32xf32>
    %23 = vector.broadcast %2 : vector<1x32xf32> to vector<128x32xf32>
    %24 = arith.addf %22, %23 : vector<128x32xf32>
    %c0_9 = arith.constant 0 : index
    %c0_10 = arith.constant 0 : index
    %25 = vector.load %arg3[%c0_9, %c0_10] : memref<32x96xf32, #tpu.memory_space<vmem>>, vector<32x96xf32>
    %cst_11 = arith.constant dense<0.000000e+00> : vector<128x96xf32>
    %26 = tpu.matmul %24, %25, %cst_11 {dimension_numbers = #tpu.dot_dimension_numbers<[1], [0], [0], [1], [0, 0, 1, 1], [], []>} : vector<128x32xf32>, vector<32x96xf32>, vector<128x96xf32> -> vector<128x96xf32>
    %c0_12 = arith.constant 0 : index
    %c0_13 = arith.constant 0 : index
    %27 = vector.load %arg4[%c0_12, %c0_13] : memref<1x96xf32, #tpu.memory_space<vmem>>, vector<1x96xf32>
    %28 = vector.broadcast %27 : vector<1x96xf32> to vector<128x96xf32>
    %29 = arith.addf %26, %28 : vector<128x96xf32>
    %c0_14 = arith.constant 0 : index
    %c0_15 = arith.constant 0 : index
    %30 = vector.load %arg5[%c0_14, %c0_15] : memref<32x32xf32, #tpu.memory_space<vmem>>, vector<32x32xf32>
    %cst_16 = arith.constant 0.000000e+00 : f32
    %31 = vector.broadcast %cst_16 : f32 to vector<128x32xf32>
    %32 = vector.extract_strided_slice %29 {offsets = [0, 0], sizes = [128, 8], strides = [1, 1]} : vector<128x96xf32> to vector<128x8xf32>
    %33 = vector.extract_strided_slice %29 {offsets = [0, 32], sizes = [128, 8], strides = [1, 1]} : vector<128x96xf32> to vector<128x8xf32>
    %34 = vector.extract_strided_slice %29 {offsets = [0, 64], sizes = [128, 8], strides = [1, 1]} : vector<128x96xf32> to vector<128x8xf32>
    %cst_17 = arith.constant 0.353553385 : f32
    %35 = vector.broadcast %cst_17 : f32 to vector<128x8xf32>
    %36 = arith.mulf %32, %35 : vector<128x8xf32>
    "tpu.trace_start"() <{level = 10 : i32, message = "nd,md->nm"}> : () -> ()
    %cst_18 = arith.constant dense<0.000000e+00> : vector<128x128xf32>
    %37 = tpu.matmul %36, %33, %cst_18 {dimension_numbers = #tpu.dot_dimension_numbers<[1], [1], [0], [0], [0, 0, 1, 0], [], []>} : vector<128x8xf32>, vector<128x8xf32>, vector<128x128xf32> -> vector<128x128xf32>
    "tpu.trace_stop"() : () -> ()
    %c0_19 = arith.constant 0 : index
    %c0_20 = arith.constant 0 : index
    %c0_21 = arith.constant 0 : index
    %38 = vector.load %arg7[%c0_19, %c0_20, %c0_21] : memref<4x128x128xf32, #tpu.memory_space<vmem>>, vector<1x128x128xf32>
    %39 = vector.shape_cast %38 : vector<1x128x128xf32> to vector<128x128xf32>
    %40 = arith.addf %37, %39 : vector<128x128xf32>
    %cst_22 = arith.constant dense<0xFF800000> : vector<128xf32>
    %41 = vector.multi_reduction <maximumf>, %40, %cst_22 [1] : vector<128x128xf32> to vector<128xf32>
    %42 = vector.shape_cast %41 : vector<128xf32> to vector<128x1xf32>
    %43 = vector.broadcast %42 : vector<128x1xf32> to vector<128x128xf32>
    %44 = arith.subf %40, %43 : vector<128x128xf32>
    %45 = math.exp %44 : vector<128x128xf32>
    %cst_23 = arith.constant dense<0.000000e+00> : vector<128xf32>
    %46 = vector.multi_reduction <add>, %45, %cst_23 [1] : vector<128x128xf32> to vector<128xf32>
    %47 = vector.shape_cast %46 : vector<128xf32> to vector<128x1xf32>
    %48 = tpu.reciprocal %47 : vector<128x1xf32> -> vector<128x1xf32>
    %49 = vector.broadcast %48 : vector<128x1xf32> to vector<128x128xf32>
    %50 = arith.mulf %45, %49 : vector<128x128xf32>
    %cst_24 = arith.constant dense<0.000000e+00> : vector<128x8xf32>
    %51 = tpu.matmul %50, %34, %cst_24 {dimension_numbers = #tpu.dot_dimension_numbers<[1], [0], [0], [1], [0, 0, 1, 1], [], []>} : vector<128x128xf32>, vector<128x8xf32>, vector<128x8xf32> -> vector<128x8xf32>
    %52 = vector.extract_strided_slice %30 {offsets = [0, 0], sizes = [8, 32], strides = [1, 1]} : vector<32x32xf32> to vector<8x32xf32>
    %cst_25 = arith.constant dense<0.000000e+00> : vector<128x32xf32>
    %53 = tpu.matmul %51, %52, %cst_25 {dimension_numbers = #tpu.dot_dimension_numbers<[1], [0], [0], [1], [0, 0, 1, 1], [], []>} : vector<128x8xf32>, vector<8x32xf32>, vector<128x32xf32> -> vector<128x32xf32>
    %54 = arith.addf %31, %53 : vector<128x32xf32>
    %55 = vector.extract_strided_slice %29 {offsets = [0, 8], sizes = [128, 8], strides = [1, 1]} : vector<128x96xf32> to vector<128x8xf32>
    %56 = vector.extract_strided_slice %29 {offsets = [0, 40], sizes = [128, 8], strides = [1, 1]} : vector<128x96xf32> to vector<128x8xf32>
    %57 = vector.extract_strided_slice %29 {offsets = [0, 72], sizes = [128, 8], strides = [1, 1]} : vector<128x96xf32> to vector<128x8xf32>
    %cst_26 = arith.constant 0.353553385 : f32
    %58 = vector.broadcast %cst_26 : f32 to vector<128x8xf32>
    %59 = arith.mulf %55, %58 : vector<128x8xf32>
    "tpu.trace_start"() <{level = 10 : i32, message = "nd,md->nm"}> : () -> ()
    %cst_27 = arith.constant dense<0.000000e+00> : vector<128x128xf32>
    %60 = tpu.matmul %59, %56, %cst_27 {dimension_numbers = #tpu.dot_dimension_numbers<[1], [1], [0], [0], [0, 0, 1, 0], [], []>} : vector<128x8xf32>, vector<128x8xf32>, vector<128x128xf32> -> vector<128x128xf32>
    "tpu.trace_stop"() : () -> ()
    %c1 = arith.constant 1 : index
    %c0_28 = arith.constant 0 : index
    %c0_29 = arith.constant 0 : index
    %61 = vector.load %arg7[%c1, %c0_28, %c0_29] : memref<4x128x128xf32, #tpu.memory_space<vmem>>, vector<1x128x128xf32>
    %62 = vector.shape_cast %61 : vector<1x128x128xf32> to vector<128x128xf32>
    %63 = arith.addf %60, %62 : vector<128x128xf32>
    %cst_30 = arith.constant dense<0xFF800000> : vector<128xf32>
    %64 = vector.multi_reduction <maximumf>, %63, %cst_30 [1] : vector<128x128xf32> to vector<128xf32>
    %65 = vector.shape_cast %64 : vector<128xf32> to vector<128x1xf32>
    %66 = vector.broadcast %65 : vector<128x1xf32> to vector<128x128xf32>
    %67 = arith.subf %63, %66 : vector<128x128xf32>
    %68 = math.exp %67 : vector<128x128xf32>
    %cst_31 = arith.constant dense<0.000000e+00> : vector<128xf32>
    %69 = vector.multi_reduction <add>, %68, %cst_31 [1] : vector<128x128xf32> to vector<128xf32>
    %70 = vector.shape_cast %69 : vector<128xf32> to vector<128x1xf32>
    %71 = tpu.reciprocal %70 : vector<128x1xf32> -> vector<128x1xf32>
    %72 = vector.broadcast %71 : vector<128x1xf32> to vector<128x128xf32>
    %73 = arith.mulf %68, %72 : vector<128x128xf32>
    %cst_32 = arith.constant dense<0.000000e+00> : vector<128x8xf32>
    %74 = tpu.matmul %73, %57, %cst_32 {dimension_numbers = #tpu.dot_dimension_numbers<[1], [0], [0], [1], [0, 0, 1, 1], [], []>} : vector<128x128xf32>, vector<128x8xf32>, vector<128x8xf32> -> vector<128x8xf32>
    %75 = vector.extract_strided_slice %30 {offsets = [8, 0], sizes = [8, 32], strides = [1, 1]} : vector<32x32xf32> to vector<8x32xf32>
    %cst_33 = arith.constant dense<0.000000e+00> : vector<128x32xf32>
    %76 = tpu.matmul %74, %75, %cst_33 {dimension_numbers = #tpu.dot_dimension_numbers<[1], [0], [0], [1], [0, 0, 1, 1], [], []>} : vector<128x8xf32>, vector<8x32xf32>, vector<128x32xf32> -> vector<128x32xf32>
    %77 = arith.addf %54, %76 : vector<128x32xf32>
    %78 = vector.extract_strided_slice %29 {offsets = [0, 16], sizes = [128, 8], strides = [1, 1]} : vector<128x96xf32> to vector<128x8xf32>
    %79 = vector.extract_strided_slice %29 {offsets = [0, 48], sizes = [128, 8], strides = [1, 1]} : vector<128x96xf32> to vector<128x8xf32>
    %80 = vector.extract_strided_slice %29 {offsets = [0, 80], sizes = [128, 8], strides = [1, 1]} : vector<128x96xf32> to vector<128x8xf32>
    %cst_34 = arith.constant 0.353553385 : f32
    %81 = vector.broadcast %cst_34 : f32 to vector<128x8xf32>
    %82 = arith.mulf %78, %81 : vector<128x8xf32>
    "tpu.trace_start"() <{level = 10 : i32, message = "nd,md->nm"}> : () -> ()
    %cst_35 = arith.constant dense<0.000000e+00> : vector<128x128xf32>
    %83 = tpu.matmul %82, %79, %cst_35 {dimension_numbers = #tpu.dot_dimension_numbers<[1], [1], [0], [0], [0, 0, 1, 0], [], []>} : vector<128x8xf32>, vector<128x8xf32>, vector<128x128xf32> -> vector<128x128xf32>
    "tpu.trace_stop"() : () -> ()
    %c2 = arith.constant 2 : index
    %c0_36 = arith.constant 0 : index
    %c0_37 = arith.constant 0 : index
    %84 = vector.load %arg7[%c2, %c0_36, %c0_37] : memref<4x128x128xf32, #tpu.memory_space<vmem>>, vector<1x128x128xf32>
    %85 = vector.shape_cast %84 : vector<1x128x128xf32> to vector<128x128xf32>
    %86 = arith.addf %83, %85 : vector<128x128xf32>
    %cst_38 = arith.constant dense<0xFF800000> : vector<128xf32>
    %87 = vector.multi_reduction <maximumf>, %86, %cst_38 [1] : vector<128x128xf32> to vector<128xf32>
    %88 = vector.shape_cast %87 : vector<128xf32> to vector<128x1xf32>
    %89 = vector.broadcast %88 : vector<128x1xf32> to vector<128x128xf32>
    %90 = arith.subf %86, %89 : vector<128x128xf32>
    %91 = math.exp %90 : vector<128x128xf32>
    %cst_39 = arith.constant dense<0.000000e+00> : vector<128xf32>
    %92 = vector.multi_reduction <add>, %91, %cst_39 [1] : vector<128x128xf32> to vector<128xf32>
    %93 = vector.shape_cast %92 : vector<128xf32> to vector<128x1xf32>
    %94 = tpu.reciprocal %93 : vector<128x1xf32> -> vector<128x1xf32>
    %95 = vector.broadcast %94 : vector<128x1xf32> to vector<128x128xf32>
    %96 = arith.mulf %91, %95 : vector<128x128xf32>
    %cst_40 = arith.constant dense<0.000000e+00> : vector<128x8xf32>
    %97 = tpu.matmul %96, %80, %cst_40 {dimension_numbers = #tpu.dot_dimension_numbers<[1], [0], [0], [1], [0, 0, 1, 1], [], []>} : vector<128x128xf32>, vector<128x8xf32>, vector<128x8xf32> -> vector<128x8xf32>
    %98 = vector.extract_strided_slice %30 {offsets = [16, 0], sizes = [8, 32], strides = [1, 1]} : vector<32x32xf32> to vector<8x32xf32>
    %cst_41 = arith.constant dense<0.000000e+00> : vector<128x32xf32>
    %99 = tpu.matmul %97, %98, %cst_41 {dimension_numbers = #tpu.dot_dimension_numbers<[1], [0], [0], [1], [0, 0, 1, 1], [], []>} : vector<128x8xf32>, vector<8x32xf32>, vector<128x32xf32> -> vector<128x32xf32>
    %100 = arith.addf %77, %99 : vector<128x32xf32>
    %101 = vector.extract_strided_slice %29 {offsets = [0, 24], sizes = [128, 8], strides = [1, 1]} : vector<128x96xf32> to vector<128x8xf32>
    %102 = vector.extract_strided_slice %29 {offsets = [0, 56], sizes = [128, 8], strides = [1, 1]} : vector<128x96xf32> to vector<128x8xf32>
    %103 = vector.extract_strided_slice %29 {offsets = [0, 88], sizes = [128, 8], strides = [1, 1]} : vector<128x96xf32> to vector<128x8xf32>
    %cst_42 = arith.constant 0.353553385 : f32
    %104 = vector.broadcast %cst_42 : f32 to vector<128x8xf32>
    %105 = arith.mulf %101, %104 : vector<128x8xf32>
    "tpu.trace_start"() <{level = 10 : i32, message = "nd,md->nm"}> : () -> ()
    %cst_43 = arith.constant dense<0.000000e+00> : vector<128x128xf32>
    %106 = tpu.matmul %105, %102, %cst_43 {dimension_numbers = #tpu.dot_dimension_numbers<[1], [1], [0], [0], [0, 0, 1, 0], [], []>} : vector<128x8xf32>, vector<128x8xf32>, vector<128x128xf32> -> vector<128x128xf32>
    "tpu.trace_stop"() : () -> ()
    %c3 = arith.constant 3 : index
    %c0_44 = arith.constant 0 : index
    %c0_45 = arith.constant 0 : index
    %107 = vector.load %arg7[%c3, %c0_44, %c0_45] : memref<4x128x128xf32, #tpu.memory_space<vmem>>, vector<1x128x128xf32>
    %108 = vector.shape_cast %107 : vector<1x128x128xf32> to vector<128x128xf32>
    %109 = arith.addf %106, %108 : vector<128x128xf32>
    %cst_46 = arith.constant dense<0xFF800000> : vector<128xf32>
    %110 = vector.multi_reduction <maximumf>, %109, %cst_46 [1] : vector<128x128xf32> to vector<128xf32>
    %111 = vector.shape_cast %110 : vector<128xf32> to vector<128x1xf32>
    %112 = vector.broadcast %111 : vector<128x1xf32> to vector<128x128xf32>
    %113 = arith.subf %109, %112 : vector<128x128xf32>
    %114 = math.exp %113 : vector<128x128xf32>
    %cst_47 = arith.constant dense<0.000000e+00> : vector<128xf32>
    %115 = vector.multi_reduction <add>, %114, %cst_47 [1] : vector<128x128xf32> to vector<128xf32>
    %116 = vector.shape_cast %115 : vector<128xf32> to vector<128x1xf32>
    %117 = tpu.reciprocal %116 : vector<128x1xf32> -> vector<128x1xf32>
    %118 = vector.broadcast %117 : vector<128x1xf32> to vector<128x128xf32>
    %119 = arith.mulf %114, %118 : vector<128x128xf32>
    %cst_48 = arith.constant dense<0.000000e+00> : vector<128x8xf32>
    %120 = tpu.matmul %119, %103, %cst_48 {dimension_numbers = #tpu.dot_dimension_numbers<[1], [0], [0], [1], [0, 0, 1, 1], [], []>} : vector<128x128xf32>, vector<128x8xf32>, vector<128x8xf32> -> vector<128x8xf32>
    %121 = vector.extract_strided_slice %30 {offsets = [24, 0], sizes = [8, 32], strides = [1, 1]} : vector<32x32xf32> to vector<8x32xf32>
    %cst_49 = arith.constant dense<0.000000e+00> : vector<128x32xf32>
    %122 = tpu.matmul %120, %121, %cst_49 {dimension_numbers = #tpu.dot_dimension_numbers<[1], [0], [0], [1], [0, 0, 1, 1], [], []>} : vector<128x8xf32>, vector<8x32xf32>, vector<128x32xf32> -> vector<128x32xf32>
    %123 = arith.addf %100, %122 : vector<128x32xf32>
    %124 = arith.addf %0, %123 : vector<128x32xf32>
    %c0_50 = arith.constant 0 : index
    %c0_51 = arith.constant 0 : index
    %125 = vector.load %arg6[%c0_50, %c0_51] : memref<1x32xf32, #tpu.memory_space<vmem>>, vector<1x32xf32>
    %126 = vector.broadcast %125 : vector<1x32xf32> to vector<128x32xf32>
    %127 = arith.addf %124, %126 : vector<128x32xf32>
    %c0_52 = arith.constant 0 : index
    %c0_53 = arith.constant 0 : index
    %128 = vector.load %arg8[%c0_52, %c0_53] : memref<1x32xf32, #tpu.memory_space<vmem>>, vector<1x32xf32>
    %c0_54 = arith.constant 0 : index
    %c0_55 = arith.constant 0 : index
    %129 = vector.load %arg9[%c0_54, %c0_55] : memref<1x32xf32, #tpu.memory_space<vmem>>, vector<1x32xf32>
    %cst_56 = arith.constant dense<0.000000e+00> : vector<128xf32>
    %130 = vector.multi_reduction <add>, %127, %cst_56 [1] : vector<128x32xf32> to vector<128xf32>
    %131 = vector.shape_cast %130 : vector<128xf32> to vector<128x1xf32>
    %cst_57 = arith.constant 3.200000e+01 : f32
    %132 = vector.broadcast %cst_57 : f32 to vector<128x1xf32>
    %133 = arith.divf %131, %132 : vector<128x1xf32>
    %134 = vector.broadcast %133 : vector<128x1xf32> to vector<128x32xf32>
    %135 = arith.subf %127, %134 : vector<128x32xf32>
    %136 = arith.mulf %135, %135 : vector<128x32xf32>
    %cst_58 = arith.constant dense<0.000000e+00> : vector<128xf32>
    %137 = vector.multi_reduction <add>, %136, %cst_58 [1] : vector<128x32xf32> to vector<128xf32>
    %138 = vector.shape_cast %137 : vector<128xf32> to vector<128x1xf32>
    %cst_59 = arith.constant 3.200000e+01 : f32
    %139 = vector.broadcast %cst_59 : f32 to vector<128x1xf32>
    %140 = arith.divf %138, %139 : vector<128x1xf32>
    %141 = vector.broadcast %133 : vector<128x1xf32> to vector<128x32xf32>
    %142 = arith.subf %127, %141 : vector<128x32xf32>
    %cst_60 = arith.constant 9.99999974E-6 : f32
    %143 = vector.broadcast %cst_60 : f32 to vector<128x1xf32>
    %144 = arith.addf %140, %143 : vector<128x1xf32>
    %145 = math.rsqrt %144 : vector<128x1xf32>
    %146 = vector.broadcast %145 : vector<128x1xf32> to vector<128x32xf32>
    %147 = arith.mulf %142, %146 : vector<128x32xf32>
    %148 = vector.broadcast %128 : vector<1x32xf32> to vector<128x32xf32>
    %149 = arith.mulf %147, %148 : vector<128x32xf32>
    %150 = vector.broadcast %129 : vector<1x32xf32> to vector<128x32xf32>
    %151 = arith.addf %149, %150 : vector<128x32xf32>
    %c0_61 = arith.constant 0 : index
    %c0_62 = arith.constant 0 : index
    %152 = vector.load %arg10[%c0_61, %c0_62] : memref<32x128xf32, #tpu.memory_space<vmem>>, vector<32x128xf32>
    %cst_63 = arith.constant dense<0.000000e+00> : vector<128x128xf32>
    %153 = tpu.matmul %151, %152, %cst_63 {dimension_numbers = #tpu.dot_dimension_numbers<[1], [0], [0], [1], [0, 0, 1, 1], [], []>} : vector<128x32xf32>, vector<32x128xf32>, vector<128x128xf32> -> vector<128x128xf32>
    %c0_64 = arith.constant 0 : index
    %c0_65 = arith.constant 0 : index
    %154 = vector.load %arg11[%c0_64, %c0_65] : memref<1x128xf32, #tpu.memory_space<vmem>>, vector<1x128xf32>
    %155 = vector.broadcast %154 : vector<1x128xf32> to vector<128x128xf32>
    %156 = arith.addf %153, %155 : vector<128x128xf32>
    %cst_66 = arith.constant 5.000000e-01 : f32
    %157 = vector.broadcast %cst_66 : f32 to vector<128x128xf32>
    %158 = arith.mulf %157, %156 : vector<128x128xf32>
    %cst_67 = arith.constant 0.707106769 : f32
    %159 = vector.broadcast %cst_67 : f32 to vector<128x128xf32>
    %160 = arith.mulf %156, %159 : vector<128x128xf32>
    %161 = math.erf %160 : vector<128x128xf32>
    %cst_68 = arith.constant 1.000000e+00 : f32
    %162 = vector.broadcast %cst_68 : f32 to vector<128x128xf32>
    %163 = arith.addf %162, %161 : vector<128x128xf32>
    %164 = arith.mulf %158, %163 : vector<128x128xf32>
    %c0_69 = arith.constant 0 : index
    %c0_70 = arith.constant 0 : index
    %165 = vector.load %arg12[%c0_69, %c0_70] : memref<128x32xf32, #tpu.memory_space<vmem>>, vector<128x32xf32>
    %cst_71 = arith.constant dense<0.000000e+00> : vector<128x32xf32>
    %166 = tpu.matmul %164, %165, %cst_71 {dimension_numbers = #tpu.dot_dimension_numbers<[1], [0], [0], [1], [0, 0, 1, 1], [], []>} : vector<128x128xf32>, vector<128x32xf32>, vector<128x32xf32> -> vector<128x32xf32>
    %c0_72 = arith.constant 0 : index
    %c0_73 = arith.constant 0 : index
    %167 = vector.load %arg13[%c0_72, %c0_73] : memref<1x32xf32, #tpu.memory_space<vmem>>, vector<1x32xf32>
    %168 = vector.broadcast %167 : vector<1x32xf32> to vector<128x32xf32>
    %169 = arith.addf %166, %168 : vector<128x32xf32>
    %170 = arith.addf %127, %169 : vector<128x32xf32>
    %c0_74 = arith.constant 0 : index
    %c0_75 = arith.constant 0 : index
    %171 = vector.load %arg14[%c0_74, %c0_75] : memref<128x32xf32, #tpu.memory_space<vmem>>, vector<128x32xf32>
    tpu.vector_store %arg14[%c0_74, %c0_75], %170 {strides = array<i32>} : memref<128x32xf32, #tpu.memory_space<vmem>>, vector<128x32xf32>,
    return
  }
}

</mosaic_0001>

<llo_original>
// kernel: swin_block_forward.1
$region0: #{swin_block_forward.1}
  #allocation0 [shape = 'u32[]', space=smem, size = 0x4, offset = 0x4, fixed_abs, tag = 'smem constant byte address 0x4 - core index']
  #allocation1 [shape = 'u32[144,128]{1,0:T(1,128)}', space=vmem, size = 0x12000, scoped, tag = 'internal scratch']
  %s0 = inlined_call_operand.vmem [shape: f32[128,32], index: 0, kind: input, shape index: {}]
  %s1 = inlined_call_operand.vmem [shape: f32[1,32], index: 1, kind: input, shape index: {}]
  %s2 = inlined_call_operand.vmem [shape: f32[1,32], index: 2, kind: input, shape index: {}]
  %s3 = inlined_call_operand.vmem [shape: f32[32,96], index: 3, kind: input, shape index: {}]
  %s4 = inlined_call_operand.vmem [shape: f32[1,96], index: 4, kind: input, shape index: {}]
  %s5 = inlined_call_operand.vmem [shape: f32[32,32], index: 5, kind: input, shape index: {}]
  %s6 = inlined_call_operand.vmem [shape: f32[1,32], index: 6, kind: input, shape index: {}]
  %s7 = inlined_call_operand.hbm [shape: f32[4,128,128], index: 7, kind: input, shape index: {}]
  %s8 = inlined_call_operand.vmem [shape: f32[1,32], index: 8, kind: input, shape index: {}]
  %s9 = inlined_call_operand.vmem [shape: f32[1,32], index: 9, kind: input, shape index: {}]
  %s10 = inlined_call_operand.vmem [shape: f32[32,128], index: 10, kind: input, shape index: {}]
  %s11 = inlined_call_operand.vmem [shape: f32[1,128], index: 11, kind: input, shape index: {}]
  %s12 = inlined_call_operand.vmem [shape: f32[128,32], index: 12, kind: input, shape index: {}]
  %s13 = inlined_call_operand.vmem [shape: f32[1,32], index: 13, kind: input, shape index: {}]
  %s14 = inlined_call_operand.vmem [shape: f32[128,32], index: 14, kind: output, shape index: {}]
  %s15 = sld [smem:[#allocation0]]
  $region70: #{swin_block_forward.1} parent=0
    _
  %s17 = ssub.s32 1, %s15
  %s18 = scalar_select 0, %s17, %s15
  $region1: #{swin_block_forward.1} parent=0
    #allocation2 [shape = 'u8[262144]{0}', space=vmem, size = 0x40000, scoped, tag = 'input window, operand 7, single buffered']
    #allocation3 [shape = 's32[1]{0}', space=sflag, size = 0x4, scoped, tag = 'scoped memory for swin_block_forward.1']
    %19 = vsyncpa [#allocation3], 0
    // Predicated region
    $region2: #{swin_block_forward.1} parent=1 // pred_check
      _
    $region3: #{swin_block_forward.1} parent=1 // pred_check_branch
      %21 = sbr.rel (0) target = $region5
    $region4: #{swin_block_forward.1} parent=1 // pred_region
      _
    $region5: #{swin_block_forward.1} parent=1 // pred_fallthru
      _
    // Predicated region
    $region6: #{swin_block_forward.1} parent=1 // pred_check
      _
    $region7: #{swin_block_forward.1} parent=1 // pred_check_branch
      %23 = sbr.rel (0) target = $region9
    $region8: #{swin_block_forward.1} parent=1 // pred_region
      _
    $region9: #{swin_block_forward.1} parent=1 // pred_fallthru
      _
    // Predicated region
    $region10: #{swin_block_forward.1} parent=1 // pred_check
      _
    $region11: #{swin_block_forward.1} parent=1 // pred_check_branch
      %25 = sbr.rel (0) target = $region13
    $region12: #{swin_block_forward.1} parent=1 // pred_region
      _
    $region13: #{swin_block_forward.1} parent=1 // pred_fallthru
      _
    // Predicated region
    $region14: #{swin_block_forward.1} parent=1 // pred_check
      _
    $region15: #{swin_block_forward.1} parent=1 // pred_check_branch
      %27 = sbr.rel (0) target = $region17
    $region16: #{swin_block_forward.1} parent=1 // pred_region
      _
    $region17: #{swin_block_forward.1} parent=1 // pred_fallthru
      _
    // Predicated region
    $region18: #{swin_block_forward.1} parent=1 // pred_check
      _
    $region19: #{swin_block_forward.1} parent=1 // pred_check_branch
      %29 = sbr.rel (0) target = $region21
    $region20: #{swin_block_forward.1} parent=1 // pred_region
      _
    $region21: #{swin_block_forward.1} parent=1 // pred_fallthru
      _
    // Predicated region
    $region22: #{swin_block_forward.1} parent=1 // pred_check
      _
    $region23: #{swin_block_forward.1} parent=1 // pred_check_branch
      %31 = sbr.rel (0) target = $region25
    $region24: #{swin_block_forward.1} parent=1 // pred_region
      _
    $region25: #{swin_block_forward.1} parent=1 // pred_fallthru
      _
    // Predicated region
    $region26: #{swin_block_forward.1} parent=1 // pred_check
      _
    $region27: #{swin_block_forward.1} parent=1 // pred_check_branch
      %33 = sbr.rel (0) target = $region29
    $region28: #{swin_block_forward.1} parent=1 // pred_region
      _
    $region29: #{swin_block_forward.1} parent=1 // pred_fallthru
      _
    // Predicated region
    $region30: #{swin_block_forward.1} parent=1 // pred_check
      _
    $region31: #{swin_block_forward.1} parent=1 // pred_check_branch
      %35 = sbr.rel (0) target = $region33
    $region32: #{swin_block_forward.1} parent=1 // pred_region
      %s37 = ssub.s32 8192, 8192
      %38 = vsyncadd [#allocation3], %s37
      %s39 = sshll.u32 [#allocation2], 4
      %s40 = int_to_ptr.vmem [resolvable:$true] %s39
      %45 = dma.hbm_to_vmem [thread:$0]  %s7, 8192, %s40, [#allocation3], 128, 128, 8
    $region33: #{swin_block_forward.1} parent=1 // pred_fallthru
      _
    // Predicated region
    $region34: #{swin_block_forward.1} parent=1 // pred_check
      _
    $region35: #{swin_block_forward.1} parent=1 // pred_check_branch
      %47 = sbr.rel (0) target = $region37
    $region36: #{swin_block_forward.1} parent=1 // pred_region
      _
    $region37: #{swin_block_forward.1} parent=1 // pred_fallthru
      _
    // Predicated region
    $region38: #{swin_block_forward.1} parent=1 // pred_check
      _
    $region39: #{swin_block_forward.1} parent=1 // pred_check_branch
      %49 = sbr.rel (0) target = $region41
    $region40: #{swin_block_forward.1} parent=1 // pred_region
      _
    $region41: #{swin_block_forward.1} parent=1 // pred_fallthru
      _
    // Predicated region
    $region42: #{swin_block_forward.1} parent=1 // pred_check
      _
    $region43: #{swin_block_forward.1} parent=1 // pred_check_branch
      %51 = sbr.rel (0) target = $region45
    $region44: #{swin_block_forward.1} parent=1 // pred_region
      _
    $region45: #{swin_block_forward.1} parent=1 // pred_fallthru
      _
    // Predicated region
    $region46: #{swin_block_forward.1} parent=1 // pred_check
      _
    $region47: #{swin_block_forward.1} parent=1 // pred_check_branch
      %53 = sbr.rel (0) target = $region49
    $region48: #{swin_block_forward.1} parent=1 // pred_region
      _
    $region49: #{swin_block_forward.1} parent=1 // pred_fallthru
      _
    // Predicated region
    $region50: #{swin_block_forward.1} parent=1 // pred_check
      _
    $region51: #{swin_block_forward.1} parent=1 // pred_check_branch
      %55 = sbr.rel (0) target = $region53
    $region52: #{swin_block_forward.1} parent=1 // pred_region
      _
    $region53: #{swin_block_forward.1} parent=1 // pred_fallthru
      _
    // Predicated region
    $region54: #{swin_block_forward.1} parent=1 // pred_check
      _
    $region55: #{swin_block_forward.1} parent=1 // pred_check_branch
      %57 = sbr.rel (0) target = $region57
    $region56: #{swin_block_forward.1} parent=1 // pred_region
      _
    $region57: #{swin_block_forward.1} parent=1 // pred_fallthru
      _
    // Predicated region
    $region58: #{swin_block_forward.1} parent=1 // pred_check
      _
    $region59: #{swin_block_forward.1} parent=1 // pred_check_branch
      %59 = sbr.rel (0) target = $region61
    $region60: #{swin_block_forward.1} parent=1 // pred_region
      %60 = dma.done [#allocation3], 8192
    $region61: #{swin_block_forward.1} parent=1 // pred_fallthru
      _
    %v61 = vld [vmem:[%s0] sm:$0xff]
    %v62 = vld [vmem:[%s0 + $0x8] sm:$0xff]
    %v63 = vld [vmem:[%s0 + $0x10] sm:$0xff]
    %v64 = vld [vmem:[%s0 + $0x18] sm:$0xff]
    %v65 = vld [vmem:[%s0 + $0x20] sm:$0xff]
    %v66 = vld [vmem:[%s0 + $0x28] sm:$0xff]
    %v67 = vld [vmem:[%s0 + $0x30] sm:$0xff]
    %v68 = vld [vmem:[%s0 + $0x38] sm:$0xff]
    %v69 = vld [vmem:[%s0 + $0x40] sm:$0xff]
    %v70 = vld [vmem:[%s0 + $0x48] sm:$0xff]
    %v71 = vld [vmem:[%s0 + $0x50] sm:$0xff]
    %v72 = vld [vmem:[%s0 + $0x58] sm:$0xff]
    %v73 = vld [vmem:[%s0 + $0x60] sm:$0xff]
    %v74 = vld [vmem:[%s0 + $0x68] sm:$0xff]
    %v75 = vld [vmem:[%s0 + $0x70] sm:$0xff]
    %v76 = vld [vmem:[%s0 + $0x78] sm:$0xff]
    %v77 = vld [vmem:[%s1] sm:$0x1]
    %v78 = vld [vmem:[%s2] sm:$0x1]
    %vm79 = vcmask 261120
    %v80 = vsel %vm79, %v61, 0.0
    %81 = vadd.xlane.f32.xlu0 %v80
    %v82 = vpop.xlane.xlu0 %81
    %v83 = vsel %vm79, %v62, 0.0
    %84 = vadd.xlane.f32.xlu0 %v83
    %v85 = vpop.xlane.xlu0 %84
    %v86 = vsel %vm79, %v63, 0.0
    %87 = vadd.xlane.f32.xlu0 %v86
    %v88 = vpop.xlane.xlu0 %87
    %v89 = vsel %vm79, %v64, 0.0
    %90 = vadd.xlane.f32.xlu0 %v89
    %v91 = vpop.xlane.xlu0 %90
    %v92 = vsel %vm79, %v65, 0.0
    %93 = vadd.xlane.f32.xlu0 %v92
    %v94 = vpop.xlane.xlu0 %93
    %v95 = vsel %vm79, %v66, 0.0
    %96 = vadd.xlane.f32.xlu0 %v95
    %v97 = vpop.xlane.xlu0 %96
    %v98 = vsel %vm79, %v67, 0.0
    %99 = vadd.xlane.f32.xlu0 %v98
    %v100 = vpop.xlane.xlu0 %99
    %v101 = vsel %vm79, %v68, 0.0
    %102 = vadd.xlane.f32.xlu0 %v101
    %v103 = vpop.xlane.xlu0 %102
    %v104 = vsel %vm79, %v69, 0.0
    %105 = vadd.xlane.f32.xlu0 %v104
    %v106 = vpop.xlane.xlu0 %105
    %v107 = vsel %vm79, %v70, 0.0
    %108 = vadd.xlane.f32.xlu0 %v107
    %v109 = vpop.xlane.xlu0 %108
    %v110 = vsel %vm79, %v71, 0.0
    %111 = vadd.xlane.f32.xlu0 %v110
    %v112 = vpop.xlane.xlu0 %111
    %v113 = vsel %vm79, %v72, 0.0
    %114 = vadd.xlane.f32.xlu0 %v113
    %v115 = vpop.xlane.xlu0 %114
    %v116 = vsel %vm79, %v73, 0.0
    %117 = vadd.xlane.f32.xlu0 %v116
    %v118 = vpop.xlane.xlu0 %117
    %v119 = vsel %vm79, %v74, 0.0
    %120 = vadd.xlane.f32.xlu0 %v119
    %v121 = vpop.xlane.xlu0 %120
    %v122 = vsel %vm79, %v75, 0.0
    %123 = vadd.xlane.f32.xlu0 %v122
    %v124 = vpop.xlane.xlu0 %123
    %v125 = vsel %vm79, %v76, 0.0
    %126 = vadd.xlane.f32.xlu0 %v125
    %v127 = vpop.xlane.xlu0 %126
    %v128 = vrcp.pop 32.0
    %v129 = vmul.f32 %v82, %v128
    %v130 = vmul.f32 %v85, %v128
    %v131 = vmul.f32 %v88, %v128
    %v132 = vmul.f32 %v91, %v128
    %v133 = vmul.f32 %v94, %v128
    %v134 = vmul.f32 %v97, %v128
    %v135 = vmul.f32 %v100, %v128
    %v136 = vmul.f32 %v103, %v128
    %v137 = vmul.f32 %v106, %v128
    %v138 = vmul.f32 %v109, %v128
    %v139 = vmul.f32 %v112, %v128
    %v140 = vmul.f32 %v115, %v128
    %v141 = vmul.f32 %v118, %v128
    %v142 = vmul.f32 %v121, %v128
    %v143 = vmul.f32 %v124, %v128
    %v144 = vmul.f32 %v127, %v128
    %v145 = vsub.f32 %v61, %v129
    %v146 = vsub.f32 %v62, %v130
    %v147 = vsub.f32 %v63, %v131
    %v148 = vsub.f32 %v64, %v132
    %v149 = vsub.f32 %v65, %v133
    %v150 = vsub.f32 %v66, %v134
    %v151 = vsub.f32 %v67, %v135
    %v152 = vsub.f32 %v68, %v136
    %v153 = vsub.f32 %v69, %v137
    %v154 = vsub.f32 %v70, %v138
    %v155 = vsub.f32 %v71, %v139
    %v156 = vsub.f32 %v72, %v140
    %v157 = vsub.f32 %v73, %v141
    %v158 = vsub.f32 %v74, %v142
    %v159 = vsub.f32 %v75, %v143
    %v160 = vsub.f32 %v76, %v144
    %v161 = vmul.f32 %v145, %v145
    %v162 = vmul.f32 %v146, %v146
    %v163 = vmul.f32 %v147, %v147
    %v164 = vmul.f32 %v148, %v148
    %v165 = vmul.f32 %v149, %v149
    %v166 = vmul.f32 %v150, %v150
    %v167 = vmul.f32 %v151, %v151
    %v168 = vmul.f32 %v152, %v152
    %v169 = vmul.f32 %v153, %v153
    %v170 = vmul.f32 %v154, %v154
    %v171 = vmul.f32 %v155, %v155
    %v172 = vmul.f32 %v156, %v156
    %v173 = vmul.f32 %v157, %v157
    %v174 = vmul.f32 %v158, %v158
    %v175 = vmul.f32 %v159, %v159
    %v176 = vmul.f32 %v160, %v160
    %v177 = vsel %vm79, %v161, 0.0
    %178 = vadd.xlane.f32.xlu0 %v177
    %v179 = vpop.xlane.xlu0 %178
    %v180 = vsel %vm79, %v162, 0.0
    %181 = vadd.xlane.f32.xlu0 %v180
    %v182 = vpop.xlane.xlu0 %181
    %v183 = vsel %vm79, %v163, 0.0
    %184 = vadd.xlane.f32.xlu0 %v183
    %v185 = vpop.xlane.xlu0 %184
    %v186 = vsel %vm79, %v164, 0.0
    %187 = vadd.xlane.f32.xlu0 %v186
    %v188 = vpop.xlane.xlu0 %187
    %v189 = vsel %vm79, %v165, 0.0
    %190 = vadd.xlane.f32.xlu0 %v189
    %v191 = vpop.xlane.xlu0 %190
    %v192 = vsel %vm79, %v166, 0.0
    %193 = vadd.xlane.f32.xlu0 %v192
    %v194 = vpop.xlane.xlu0 %193
    %v195 = vsel %vm79, %v167, 0.0
    %196 = vadd.xlane.f32.xlu0 %v195
    %v197 = vpop.xlane.xlu0 %196
    %v198 = vsel %vm79, %v168, 0.0
    %199 = vadd.xlane.f32.xlu0 %v198
    %v200 = vpop.xlane.xlu0 %199
    %v201 = vsel %vm79, %v169, 0.0
    %202 = vadd.xlane.f32.xlu0 %v201
    %v203 = vpop.xlane.xlu0 %202
    %v204 = vsel %vm79, %v170, 0.0
    %205 = vadd.xlane.f32.xlu0 %v204
    %v206 = vpop.xlane.xlu0 %205
    %v207 = vsel %vm79, %v171, 0.0
    %208 = vadd.xlane.f32.xlu0 %v207
    %v209 = vpop.xlane.xlu0 %208
    %v210 = vsel %vm79, %v172, 0.0
    %211 = vadd.xlane.f32.xlu0 %v210
    %v212 = vpop.xlane.xlu0 %211
    %v213 = vsel %vm79, %v173, 0.0
    %214 = vadd.xlane.f32.xlu0 %v213
    %v215 = vpop.xlane.xlu0 %214
    %v216 = vsel %vm79, %v174, 0.0
    %217 = vadd.xlane.f32.xlu0 %v216
    %v218 = vpop.xlane.xlu0 %217
    %v219 = vsel %vm79, %v175, 0.0
    %220 = vadd.xlane.f32.xlu0 %v219
    %v221 = vpop.xlane.xlu0 %220
    %v222 = vsel %vm79, %v176, 0.0
    %223 = vadd.xlane.f32.xlu0 %v222
    %v224 = vpop.xlane.xlu0 %223
    %v225 = vmul.f32 %v179, %v128
    %v226 = vmul.f32 %v182, %v128
    %v227 = vmul.f32 %v185, %v128
    %v228 = vmul.f32 %v188, %v128
    %v229 = vmul.f32 %v191, %v128
    %v230 = vmul.f32 %v194, %v128
    %v231 = vmul.f32 %v197, %v128
    %v232 = vmul.f32 %v200, %v128
    %v233 = vmul.f32 %v203, %v128
    %v234 = vmul.f32 %v206, %v128
    %v235 = vmul.f32 %v209, %v128
    %v236 = vmul.f32 %v212, %v128
    %v237 = vmul.f32 %v215, %v128
    %v238 = vmul.f32 %v218, %v128
    %v239 = vmul.f32 %v221, %v128
    %v240 = vmul.f32 %v224, %v128
    %v241 = vadd.f32 %v225, 1e-05
    %v242 = vadd.f32 %v226, 1e-05
    %v243 = vadd.f32 %v227, 1e-05
    %v244 = vadd.f32 %v228, 1e-05
    %v245 = vadd.f32 %v229, 1e-05
    %v246 = vadd.f32 %v230, 1e-05
    %v247 = vadd.f32 %v231, 1e-05
    %v248 = vadd.f32 %v232, 1e-05
    %v249 = vadd.f32 %v233, 1e-05
    %v250 = vadd.f32 %v234, 1e-05
    %v251 = vadd.f32 %v235, 1e-05
    %v252 = vadd.f32 %v236, 1e-05
    %v253 = vadd.f32 %v237, 1e-05
    %v254 = vadd.f32 %v238, 1e-05
    %v255 = vadd.f32 %v239, 1e-05
    %v256 = vadd.f32 %v240, 1e-05
    %v257 = vrsqrt.pop %v241
    %v258 = vrsqrt.pop %v242
    %v259 = vrsqrt.pop %v243
    %v260 = vrsqrt.pop %v244
    %v261 = vrsqrt.pop %v245
    %v262 = vrsqrt.pop %v246
    %v263 = vrsqrt.pop %v247
    %v264 = vrsqrt.pop %v248
    %v265 = vrsqrt.pop %v249
    %v266 = vrsqrt.pop %v250
    %v267 = vrsqrt.pop %v251
    %v268 = vrsqrt.pop %v252
    %v269 = vrsqrt.pop %v253
    %v270 = vrsqrt.pop %v254
    %v271 = vrsqrt.pop %v255
    %v272 = vrsqrt.pop %v256
    %v273 = vmul.f32 %v145, %v257
    %v274 = vmul.f32 %v146, %v258
    %v275 = vmul.f32 %v147, %v259
    %v276 = vmul.f32 %v148, %v260
    %v277 = vmul.f32 %v149, %v261
    %v278 = vmul.f32 %v150, %v262
    %v279 = vmul.f32 %v151, %v263
    %v280 = vmul.f32 %v152, %v264
    %v281 = vmul.f32 %v153, %v265
    %v282 = vmul.f32 %v154, %v266
    %v283 = vmul.f32 %v155, %v267
    %v284 = vmul.f32 %v156, %v268
    %v285 = vmul.f32 %v157, %v269
    %v286 = vmul.f32 %v158, %v270
    %v287 = vmul.f32 %v159, %v271
    %v288 = vmul.f32 %v160, %v272
    %v290 = vlaneseq
    %v291 = vshrl.u32 %v290, 7
    %v292 = vsub.s32 0, %v291
    %v293 = vrot.slane %v77, %v292
    %v295 = vmul.f32 %v273, %v293
    %v296 = vmul.f32 %v274, %v293
    %v297 = vmul.f32 %v275, %v293
    %v298 = vmul.f32 %v276, %v293
    %v299 = vmul.f32 %v277, %v293
    %v300 = vmul.f32 %v278, %v293
    %v301 = vmul.f32 %v279, %v293
    %v302 = vmul.f32 %v280, %v293
    %v303 = vmul.f32 %v281, %v293
    %v304 = vmul.f32 %v282, %v293
    %v305 = vmul.f32 %v283, %v293
    %v306 = vmul.f32 %v284, %v293
    %v307 = vmul.f32 %v285, %v293
    %v308 = vmul.f32 %v286, %v293
    %v309 = vmul.f32 %v287, %v293
    %v310 = vmul.f32 %v288, %v293
    %v312 = vlaneseq
    %v313 = vshrl.u32 %v312, 7
    %v314 = vsub.s32 0, %v313
    %v315 = vrot.slane %v78, %v314
    %v317 = vadd.f32 %v295, %v315
    %v318 = vadd.f32 %v296, %v315
    %v319 = vadd.f32 %v297, %v315
    %v320 = vadd.f32 %v298, %v315
    %v321 = vadd.f32 %v299, %v315
    %v322 = vadd.f32 %v300, %v315
    %v323 = vadd.f32 %v301, %v315
    %v324 = vadd.f32 %v302, %v315
    %v325 = vadd.f32 %v303, %v315
    %v326 = vadd.f32 %v304, %v315
    %v327 = vadd.f32 %v305, %v315
    %v328 = vadd.f32 %v306, %v315
    %v329 = vadd.f32 %v307, %v315
    %v330 = vadd.f32 %v308, %v315
    %v331 = vadd.f32 %v309, %v315
    %v332 = vadd.f32 %v310, %v315
    %v333 = vld [vmem:[%s3] sm:$0xff]
    %v334 = vld [vmem:[%s3 + $0x8] sm:$0xff]
    %v335 = vld [vmem:[%s3 + $0x10] sm:$0xff]
    %v336 = vld [vmem:[%s3 + $0x18] sm:$0xff]
    %v337 = vld [vmem:[%s4] sm:$0x1]
    %v339 = vlaneseq
    %v340 = vshrl.u32 %v339, 7
    %v341 = vsub.s32 0, %v340
    %v342 = vrot.slane %v337, %v341
    %v345 = vsel %vm79, %v317, 0
    %v348 = vsel %vm79, %v318, 0
    %v351 = vsel %vm79, %v319, 0
    %v354 = vsel %vm79, %v320, 0
    %v357 = vsel %vm79, %v321, 0
    %v360 = vsel %vm79, %v322, 0
    %v363 = vsel %vm79, %v323, 0
    %v366 = vsel %vm79, %v324, 0
    %v369 = vsel %vm79, %v325, 0
    %v372 = vsel %vm79, %v326, 0
    %v375 = vsel %vm79, %v327, 0
    %v378 = vsel %vm79, %v328, 0
    %v381 = vsel %vm79, %v329, 0
    %v384 = vsel %vm79, %v330, 0
    %v387 = vsel %vm79, %v331, 0
    %v390 = vsel %vm79, %v332, 0
    %392 = vmatprep.subr.mxu0 0.0
    %393 = vmatpush1.msra.mxu0 0.0
    %394 = vmatprep.subr.mxu0 0.0
    %395 = vmatpush1.msra.mxu0 0.0
    %396 = vmatprep.subr.mxu0 0.0
    %397 = vmatpush1.msra.mxu0 0.0
    %398 = vmatprep.subr.mxu0 0.0
    %399 = vmatpush1.msra.mxu0 0.0
    %400 = vmatprep.subr.mxu0 0.0
    %401 = vmatpush1.msra.mxu0 0.0
    %402 = vmatprep.subr.mxu0 0.0
    %403 = vmatpush1.msra.mxu0 0.0
    %404 = vmatprep.subr.mxu0 0.0
    %405 = vmatpush1.msra.mxu0 0.0
    %406 = vmatprep.subr.mxu0 0.0
    %407 = vmatpush1.msra.mxu0 0.0
    %408 = vmatprep.subr.mxu0 0.0
    %409 = vmatpush1.msra.mxu0 0.0
    %410 = vmatprep.subr.mxu0 0.0
    %411 = vmatpush1.msra.mxu0 0.0
    %412 = vmatprep.subr.mxu0 0.0
    %413 = vmatpush1.msra.mxu0 0.0
    %414 = vmatprep.subr.mxu0 0.0
    %415 = vmatpush1.msra.mxu0 0.0
    %416 = vmatprep.subr.mxu0 0.0
    %417 = vmatpush1.msra.mxu0 %v336
    %418 = vmatprep.subr.mxu0 0.0
    %419 = vmatpush1.msra.mxu0 %v335
    %420 = vmatprep.subr.mxu0 0.0
    %421 = vmatpush1.msra.mxu0 %v334
    %422 = vmatprep.subr.mxu0 0.0
    %423 = vmatpush1.msra.mxu0 %v333
    %424 = vmatprep.subr.mxu0 0.0
    %425 = vmatpush2.msra.mxu0 0.0
    %426 = vmatprep.subr.mxu0 0.0
    %427 = vmatpush2.msra.mxu0 0.0
    %428 = vmatprep.subr.mxu0 0.0
    %429 = vmatpush2.msra.mxu0 0.0
    %430 = vmatprep.subr.mxu0 0.0
    %431 = vmatpush2.msra.mxu0 0.0
    %432 = vmatprep.subr.mxu0 0.0
    %433 = vmatpush2.msra.mxu0 0.0
    %434 = vmatprep.subr.mxu0 0.0
    %435 = vmatpush2.msra.mxu0 0.0
    %436 = vmatprep.subr.mxu0 0.0
    %437 = vmatpush2.msra.mxu0 0.0
    %438 = vmatprep.subr.mxu0 0.0
    %439 = vmatpush2.msra.mxu0 0.0
    %440 = vmatprep.subr.mxu0 0.0
    %441 = vmatpush2.msra.mxu0 0.0
    %442 = vmatprep.subr.mxu0 0.0
    %443 = vmatpush2.msra.mxu0 0.0
    %444 = vmatprep.subr.mxu0 0.0
    %445 = vmatpush2.msra.mxu0 0.0
    %446 = vmatprep.subr.mxu0 0.0
    %447 = vmatpush2.msra.mxu0 0.0
    %448 = vmatprep.subr.mxu0 0.0
    %449 = vmatpush2.msra.mxu0 0.0
    %450 = vmatprep.subr.mxu0 0.0
    %451 = vmatpush2.msra.mxu0 0.0
    %452 = vmatprep.subr.mxu0 0.0
    %453 = vmatpush2.msra.mxu0 0.0
    %454 = vmatprep.subr.mxu0 0.0
    %455 = vmatpush2.msra.mxu0 0.0
    %456 = vmatprep.mubr.f32.mxu0 0.0
    %457 = vmatmul.mubr.f32.gmra.mxu0 %v345
    %v458 = vpop.f32.mrf.mxu0
    %v459 = vadd.f32 %v342, %v458
    %v460 = vpop.f32.mrf.mxu0
    %461 = vmatprep.mubr.f32.mxu0 0.0
    %462 = vmatmul.mubr.f32.gmra.mxu0 %v348
    %v463 = vpop.f32.mrf.mxu0
    %v464 = vadd.f32 %v342, %v463
    %v465 = vpop.f32.mrf.mxu0
    %466 = vmatprep.mubr.f32.mxu0 0.0
    %467 = vmatmul.mubr.f32.gmra.mxu0 %v351
    %v468 = vpop.f32.mrf.mxu0
    %v469 = vadd.f32 %v342, %v468
    %v470 = vpop.f32.mrf.mxu0
    %471 = vmatprep.mubr.f32.mxu0 0.0
    %472 = vmatmul.mubr.f32.gmra.mxu0 %v354
    %v473 = vpop.f32.mrf.mxu0
    %v474 = vadd.f32 %v342, %v473
    %v475 = vpop.f32.mrf.mxu0
    %476 = vmatprep.mubr.f32.mxu0 0.0
    %477 = vmatmul.mubr.f32.gmra.mxu0 %v357
    %v478 = vpop.f32.mrf.mxu0
    %v479 = vadd.f32 %v342, %v478
    %v480 = vpop.f32.mrf.mxu0
    %481 = vmatprep.mubr.f32.mxu0 0.0
    %482 = vmatmul.mubr.f32.gmra.mxu0 %v360
    %v483 = vpop.f32.mrf.mxu0
    %v484 = vadd.f32 %v342, %v483
    %v485 = vpop.f32.mrf.mxu0
    %486 = vmatprep.mubr.f32.mxu0 0.0
    %487 = vmatmul.mubr.f32.gmra.mxu0 %v363
    %v488 = vpop.f32.mrf.mxu0
    %v489 = vadd.f32 %v342, %v488
    %v490 = vpop.f32.mrf.mxu0
    %491 = vmatprep.mubr.f32.mxu0 0.0
    %492 = vmatmul.mubr.f32.gmra.mxu0 %v366
    %v493 = vpop.f32.mrf.mxu0
    %v494 = vadd.f32 %v342, %v493
    %v495 = vpop.f32.mrf.mxu0
    %496 = vmatprep.mubr.f32.mxu0 0.0
    %497 = vmatmul.mubr.f32.gmra.mxu0 %v369
    %v498 = vpop.f32.mrf.mxu0
    %v499 = vadd.f32 %v342, %v498
    %v500 = vpop.f32.mrf.mxu0
    %501 = vmatprep.mubr.f32.mxu0 0.0
    %502 = vmatmul.mubr.f32.gmra.mxu0 %v372
    %v503 = vpop.f32.mrf.mxu0
    %v504 = vadd.f32 %v342, %v503
    %v505 = vpop.f32.mrf.mxu0
    %506 = vmatprep.mubr.f32.mxu0 0.0
    %507 = vmatmul.mubr.f32.gmra.mxu0 %v375
    %v508 = vpop.f32.mrf.mxu0
    %v509 = vadd.f32 %v342, %v508
    %v510 = vpop.f32.mrf.mxu0
    %511 = vmatprep.mubr.f32.mxu0 0.0
    %512 = vmatmul.mubr.f32.gmra.mxu0 %v378
    %v513 = vpop.f32.mrf.mxu0
    %v514 = vadd.f32 %v342, %v513
    %v515 = vpop.f32.mrf.mxu0
    %516 = vmatprep.mubr.f32.mxu0 0.0
    %517 = vmatmul.mubr.f32.gmra.mxu0 %v381
    %v518 = vpop.f32.mrf.mxu0
    %v519 = vadd.f32 %v342, %v518
    %v520 = vpop.f32.mrf.mxu0
    %521 = vmatprep.mubr.f32.mxu0 0.0
    %522 = vmatmul.mubr.f32.gmra.mxu0 %v384
    %v523 = vpop.f32.mrf.mxu0
    %v524 = vadd.f32 %v342, %v523
    %v525 = vpop.f32.mrf.mxu0
    %526 = vmatprep.mubr.f32.mxu0 0.0
    %527 = vmatmul.mubr.f32.gmra.mxu0 %v387
    %v528 = vpop.f32.mrf.mxu0
    %v529 = vadd.f32 %v342, %v528
    %v530 = vpop.f32.mrf.mxu0
    %531 = vmatprep.mubr.f32.mxu0 0.0
    %532 = vmatmul.mubr.f32.gmra.mxu0 %v390
    %v533 = vpop.f32.mrf.mxu0
    %v534 = vadd.f32 %v342, %v533
    %v535 = vpop.f32.mrf.mxu0
    %536 = vdwg.mxu0
    %v537 = vld [vmem:[%s5] sm:$0xff]
    %v538 = vld [vmem:[%s5 + $0x8] sm:$0xff]
    %v539 = vld [vmem:[%s5 + $0x10] sm:$0xff]
    %v540 = vld [vmem:[%s5 + $0x18] sm:$0xff]
    %v541 = vmul.f32 %v459, 0.35355338
    %v542 = vmul.f32 %v464, 0.35355338
    %v543 = vmul.f32 %v469, 0.35355338
    %v544 = vmul.f32 %v474, 0.35355338
    %v545 = vmul.f32 %v479, 0.35355338
    %v546 = vmul.f32 %v484, 0.35355338
    %v547 = vmul.f32 %v489, 0.35355338
    %v548 = vmul.f32 %v494, 0.35355338
    %v549 = vmul.f32 %v499, 0.35355338
    %v550 = vmul.f32 %v504, 0.35355338
    %v551 = vmul.f32 %v509, 0.35355338
    %v552 = vmul.f32 %v514, 0.35355338
    %v553 = vmul.f32 %v519, 0.35355338
    %v554 = vmul.f32 %v524, 0.35355338
    %v555 = vmul.f32 %v529, 0.35355338
    %v556 = vmul.f32 %v534, 0.35355338
    %v557 = vld [vmem:[#allocation2] sm:$0xff]
    %v558 = vld [vmem:[#allocation2 + $0x8] sm:$0xff]
    %v559 = vld [vmem:[#allocation2 + $0x10] sm:$0xff]
    %v560 = vld [vmem:[#allocation2 + $0x18] sm:$0xff]
    %v561 = vld [vmem:[#allocation2 + $0x20] sm:$0xff]
    %v562 = vld [vmem:[#allocation2 + $0x28] sm:$0xff]
    %v563 = vld [vmem:[#allocation2 + $0x30] sm:$0xff]
    %v564 = vld [vmem:[#allocation2 + $0x38] sm:$0xff]
    %v565 = vld [vmem:[#allocation2 + $0x40] sm:$0xff]
    %v566 = vld [vmem:[#allocation2 + $0x48] sm:$0xff]
    %v567 = vld [vmem:[#allocation2 + $0x50] sm:$0xff]
    %v568 = vld [vmem:[#allocation2 + $0x58] sm:$0xff]
    %v569 = vld [vmem:[#allocation2 + $0x60] sm:$0xff]
    %v570 = vld [vmem:[#allocation2 + $0x68] sm:$0xff]
    %v571 = vld [vmem:[#allocation2 + $0x70] sm:$0xff]
    %v572 = vld [vmem:[#allocation2 + $0x78] sm:$0xff]
    %589 = vrot.lane.b32.xlu0 %v459, 96
    %v590 = vpop.permute.xlu0 %589
    %591 = vrot.lane.b32.xlu0 %v464, 96
    %v592 = vpop.permute.xlu0 %591
    %593 = vrot.lane.b32.xlu0 %v469, 96
    %v594 = vpop.permute.xlu0 %593
    %595 = vrot.lane.b32.xlu0 %v474, 96
    %v596 = vpop.permute.xlu0 %595
    %597 = vrot.lane.b32.xlu0 %v479, 96
    %v598 = vpop.permute.xlu0 %597
    %599 = vrot.lane.b32.xlu0 %v484, 96
    %v600 = vpop.permute.xlu0 %599
    %601 = vrot.lane.b32.xlu0 %v489, 96
    %v602 = vpop.permute.xlu0 %601
    %603 = vrot.lane.b32.xlu0 %v494, 96
    %v604 = vpop.permute.xlu0 %603
    %605 = vrot.lane.b32.xlu0 %v499, 96
    %v606 = vpop.permute.xlu0 %605
    %607 = vrot.lane.b32.xlu0 %v504, 96
    %v608 = vpop.permute.xlu0 %607
    %609 = vrot.lane.b32.xlu0 %v509, 96
    %v610 = vpop.permute.xlu0 %609
    %611 = vrot.lane.b32.xlu0 %v514, 96
    %v612 = vpop.permute.xlu0 %611
    %613 = vrot.lane.b32.xlu0 %v519, 96
    %v614 = vpop.permute.xlu0 %613
    %615 = vrot.lane.b32.xlu0 %v524, 96
    %v616 = vpop.permute.xlu0 %615
    %617 = vrot.lane.b32.xlu0 %v529, 96
    %v618 = vpop.permute.xlu0 %617
    %619 = vrot.lane.b32.xlu0 %v534, 96
    %v620 = vpop.permute.xlu0 %619
    %vm621 = vcmask 64512
    %v623 = vsel %vm621, %v541, 0
    %v626 = vsel %vm621, %v542, 0
    %v629 = vsel %vm621, %v543, 0
    %v632 = vsel %vm621, %v544, 0
    %v635 = vsel %vm621, %v545, 0
    %v638 = vsel %vm621, %v546, 0
    %v641 = vsel %vm621, %v547, 0
    %v644 = vsel %vm621, %v548, 0
    %v647 = vsel %vm621, %v549, 0
    %v650 = vsel %vm621, %v550, 0
    %v653 = vsel %vm621, %v551, 0
    %v656 = vsel %vm621, %v552, 0
    %v659 = vsel %vm621, %v553, 0
    %v662 = vsel %vm621, %v554, 0
    %v665 = vsel %vm621, %v555, 0
    %v668 = vsel %vm621, %v556, 0
    %v670 = vsel %vm621, %v590, 0
    %v672 = vsel %vm621, %v592, 0
    %v674 = vsel %vm621, %v594, 0
    %v676 = vsel %vm621, %v596, 0
    %v678 = vsel %vm621, %v598, 0
    %v680 = vsel %vm621, %v600, 0
    %v682 = vsel %vm621, %v602, 0
    %v684 = vsel %vm621, %v604, 0
    %v686 = vsel %vm621, %v606, 0
    %v688 = vsel %vm621, %v608, 0
    %v690 = vsel %vm621, %v610, 0
    %v692 = vsel %vm621, %v612, 0
    %v694 = vsel %vm621, %v614, 0
    %v696 = vsel %vm621, %v616, 0
    %v698 = vsel %vm621, %v618, 0
    %v700 = vsel %vm621, %v620, 0
    %702 = vmatprep.subr.mxu0 0.0
    %703 = vmatpush1.xpose.msra.mxu0 %v700
    %704 = vmatprep.subr.mxu0 0.0
    %705 = vmatpush1.xpose.msra.mxu0 %v698
    %706 = vmatprep.subr.mxu0 0.0
    %707 = vmatpush1.xpose.msra.mxu0 %v696
    %708 = vmatprep.subr.mxu0 0.0
    %709 = vmatpush1.xpose.msra.mxu0 %v694
    %710 = vmatprep.subr.mxu0 0.0
    %711 = vmatpush1.xpose.msra.mxu0 %v692
    %712 = vmatprep.subr.mxu0 0.0
    %713 = vmatpush1.xpose.msra.mxu0 %v690
    %714 = vmatprep.subr.mxu0 0.0
    %715 = vmatpush1.xpose.msra.mxu0 %v688
    %716 = vmatprep.subr.mxu0 0.0
    %717 = vmatpush1.xpose.msra.mxu0 %v686
    %718 = vmatprep.subr.mxu0 0.0
    %719 = vmatpush1.xpose.msra.mxu0 %v684
    %720 = vmatprep.subr.mxu0 0.0
    %721 = vmatpush1.xpose.msra.mxu0 %v682
    %722 = vmatprep.subr.mxu0 0.0
    %723 = vmatpush1.xpose.msra.mxu0 %v680
    %724 = vmatprep.subr.mxu0 0.0
    %725 = vmatpush1.xpose.msra.mxu0 %v678
    %726 = vmatprep.subr.mxu0 0.0
    %727 = vmatpush1.xpose.msra.mxu0 %v676
    %728 = vmatprep.subr.mxu0 0.0
    %729 = vmatpush1.xpose.msra.mxu0 %v674
    %730 = vmatprep.subr.mxu0 0.0
    %731 = vmatpush1.xpose.msra.mxu0 %v672
    %732 = vmatprep.subr.mxu0 0.0
    %733 = vmatpush1.xpose.msra.mxu0 %v670
    %734 = vmatprep.subr.mxu0 0.0
    %735 = vmatpush2.xpose.msra.mxu0 0.0
    %736 = vmatprep.subr.mxu0 0.0
    %737 = vmatpush2.xpose.msra.mxu0 0.0
    %738 = vmatprep.subr.mxu0 0.0
    %739 = vmatpush2.xpose.msra.mxu0 0.0
    %740 = vmatprep.subr.mxu0 0.0
    %741 = vmatpush2.xpose.msra.mxu0 0.0
    %742 = vmatprep.subr.mxu0 0.0
    %743 = vmatpush2.xpose.msra.mxu0 0.0
    %744 = vmatprep.subr.mxu0 0.0
    %745 = vmatpush2.xpose.msra.mxu0 0.0
    %746 = vmatprep.subr.mxu0 0.0
    %747 = vmatpush2.xpose.msra.mxu0 0.0
    %748 = vmatprep.subr.mxu0 0.0
    %749 = vmatpush2.xpose.msra.mxu0 0.0
    %750 = vmatprep.subr.mxu0 0.0
    %751 = vmatpush2.xpose.msra.mxu0 0.0
    %752 = vmatprep.subr.mxu0 0.0
    %753 = vmatpush2.xpose.msra.mxu0 0.0
    %754 = vmatprep.subr.mxu0 0.0
    %755 = vmatpush2.xpose.msra.mxu0 0.0
    %756 = vmatprep.subr.mxu0 0.0
    %757 = vmatpush2.xpose.msra.mxu0 0.0
    %758 = vmatprep.subr.mxu0 0.0
    %759 = vmatpush2.xpose.msra.mxu0 0.0
    %760 = vmatprep.subr.mxu0 0.0
    %761 = vmatpush2.xpose.msra.mxu0 0.0
    %762 = vmatprep.subr.mxu0 0.0
    %763 = vmatpush2.xpose.msra.mxu0 0.0
    %764 = vmatprep.subr.mxu0 0.0
    %765 = vmatpush2.xpose.msra.mxu0 0.0
    %766 = vmatprep.mubr.f32.mxu0 0.0
    %767 = vmatmul.mubr.f32.gmra.mxu0 %v623
    %v768 = vpop.f32.mrf.mxu0
    %v769 = vadd.f32 %v557, %v768
    %v770 = vpop.f32.mrf.mxu0
    %771 = vmatprep.mubr.f32.mxu0 0.0
    %772 = vmatmul.mubr.f32.gmra.mxu0 %v626
    %v773 = vpop.f32.mrf.mxu0
    %v774 = vadd.f32 %v558, %v773
    %v775 = vpop.f32.mrf.mxu0
    %776 = vmatprep.mubr.f32.mxu0 0.0
    %777 = vmatmul.mubr.f32.gmra.mxu0 %v629
    %v778 = vpop.f32.mrf.mxu0
    %v779 = vadd.f32 %v559, %v778
    %v780 = vpop.f32.mrf.mxu0
    %781 = vmatprep.mubr.f32.mxu0 0.0
    %782 = vmatmul.mubr.f32.gmra.mxu0 %v632
    %v783 = vpop.f32.mrf.mxu0
    %v784 = vadd.f32 %v560, %v783
    %v785 = vpop.f32.mrf.mxu0
    %786 = vmatprep.mubr.f32.mxu0 0.0
    %787 = vmatmul.mubr.f32.gmra.mxu0 %v635
    %v788 = vpop.f32.mrf.mxu0
    %v789 = vadd.f32 %v561, %v788
    %v790 = vpop.f32.mrf.mxu0
    %791 = vmatprep.mubr.f32.mxu0 0.0
    %792 = vmatmul.mubr.f32.gmra.mxu0 %v638
    %v793 = vpop.f32.mrf.mxu0
    %v794 = vadd.f32 %v562, %v793
    %v795 = vpop.f32.mrf.mxu0
    %796 = vmatprep.mubr.f32.mxu0 0.0
    %797 = vmatmul.mubr.f32.gmra.mxu0 %v641
    %v798 = vpop.f32.mrf.mxu0
    %v799 = vadd.f32 %v563, %v798
    %v800 = vpop.f32.mrf.mxu0
    %801 = vmatprep.mubr.f32.mxu0 0.0
    %802 = vmatmul.mubr.f32.gmra.mxu0 %v644
    %v803 = vpop.f32.mrf.mxu0
    %v804 = vadd.f32 %v564, %v803
    %v805 = vpop.f32.mrf.mxu0
    %806 = vmatprep.mubr.f32.mxu0 0.0
    %807 = vmatmul.mubr.f32.gmra.mxu0 %v647
    %v808 = vpop.f32.mrf.mxu0
    %v809 = vadd.f32 %v565, %v808
    %v810 = vpop.f32.mrf.mxu0
    %811 = vmatprep.mubr.f32.mxu0 0.0
    %812 = vmatmul.mubr.f32.gmra.mxu0 %v650
    %v813 = vpop.f32.mrf.mxu0
    %v814 = vadd.f32 %v566, %v813
    %v815 = vpop.f32.mrf.mxu0
    %816 = vmatprep.mubr.f32.mxu0 0.0
    %817 = vmatmul.mubr.f32.gmra.mxu0 %v653
    %v818 = vpop.f32.mrf.mxu0
    %v819 = vadd.f32 %v567, %v818
    %v820 = vpop.f32.mrf.mxu0
    %821 = vmatprep.mubr.f32.mxu0 0.0
    %822 = vmatmul.mubr.f32.gmra.mxu0 %v656
    %v823 = vpop.f32.mrf.mxu0
    %v824 = vadd.f32 %v568, %v823
    %v825 = vpop.f32.mrf.mxu0
    %826 = vmatprep.mubr.f32.mxu0 0.0
    %827 = vmatmul.mubr.f32.gmra.mxu0 %v659
    %v828 = vpop.f32.mrf.mxu0
    %v829 = vadd.f32 %v569, %v828
    %v830 = vpop.f32.mrf.mxu0
    %831 = vmatprep.mubr.f32.mxu0 0.0
    %832 = vmatmul.mubr.f32.gmra.mxu0 %v662
    %v833 = vpop.f32.mrf.mxu0
    %v834 = vadd.f32 %v570, %v833
    %v835 = vpop.f32.mrf.mxu0
    %836 = vmatprep.mubr.f32.mxu0 0.0
    %837 = vmatmul.mubr.f32.gmra.mxu0 %v665
    %v838 = vpop.f32.mrf.mxu0
    %v839 = vadd.f32 %v571, %v838
    %v840 = vpop.f32.mrf.mxu0
    %841 = vmatprep.mubr.f32.mxu0 0.0
    %842 = vmatmul.mubr.f32.gmra.mxu0 %v668
    %v843 = vpop.f32.mrf.mxu0
    %v844 = vadd.f32 %v572, %v843
    %v845 = vpop.f32.mrf.mxu0
    %846 = vdwg.mxu0
    %847 = vmax.xlane.f32.xlu0 %v769
    %v848 = vpop.xlane.xlu0 %847
    %849 = vmax.xlane.f32.xlu0 %v774
    %v850 = vpop.xlane.xlu0 %849
    %851 = vmax.xlane.f32.xlu0 %v779
    %v852 = vpop.xlane.xlu0 %851
    %853 = vmax.xlane.f32.xlu0 %v784
    %v854 = vpop.xlane.xlu0 %853
    %855 = vmax.xlane.f32.xlu0 %v789
    %v856 = vpop.xlane.xlu0 %855
    %857 = vmax.xlane.f32.xlu0 %v794
    %v858 = vpop.xlane.xlu0 %857
    %859 = vmax.xlane.f32.xlu0 %v799
    %v860 = vpop.xlane.xlu0 %859
    %861 = vmax.xlane.f32.xlu0 %v804
    %v862 = vpop.xlane.xlu0 %861
    %863 = vmax.xlane.f32.xlu0 %v809
    %v864 = vpop.xlane.xlu0 %863
    %865 = vmax.xlane.f32.xlu0 %v814
    %v866 = vpop.xlane.xlu0 %865
    %867 = vmax.xlane.f32.xlu0 %v819
    %v868 = vpop.xlane.xlu0 %867
    %869 = vmax.xlane.f32.xlu0 %v824
    %v870 = vpop.xlane.xlu0 %869
    %871 = vmax.xlane.f32.xlu0 %v829
    %v872 = vpop.xlane.xlu0 %871
    %873 = vmax.xlane.f32.xlu0 %v834
    %v874 = vpop.xlane.xlu0 %873
    %875 = vmax.xlane.f32.xlu0 %v839
    %v876 = vpop.xlane.xlu0 %875
    %877 = vmax.xlane.f32.xlu0 %v844
    %v878 = vpop.xlane.xlu0 %877
    %v879 = vsub.f32 %v769, %v848
    %v880 = vsub.f32 %v774, %v850
    %v881 = vsub.f32 %v779, %v852
    %v882 = vsub.f32 %v784, %v854
    %v883 = vsub.f32 %v789, %v856
    %v884 = vsub.f32 %v794, %v858
    %v885 = vsub.f32 %v799, %v860
    %v886 = vsub.f32 %v804, %v862
    %v887 = vsub.f32 %v809, %v864
    %v888 = vsub.f32 %v814, %v866
    %v889 = vsub.f32 %v819, %v868
    %v890 = vsub.f32 %v824, %v870
    %v891 = vsub.f32 %v829, %v872
    %v892 = vsub.f32 %v834, %v874
    %v893 = vsub.f32 %v839, %v876
    %v894 = vsub.f32 %v844, %v878
    %v895 = vmul.f32 %v879, 1.442695
    %v896 = vpow.pop %v895
    %v897 = vmul.f32 %v880, 1.442695
    %v898 = vpow.pop %v897
    %v899 = vmul.f32 %v881, 1.442695
    %v900 = vpow.pop %v899
    %v901 = vmul.f32 %v882, 1.442695
    %v902 = vpow.pop %v901
    %v903 = vmul.f32 %v883, 1.442695
    %v904 = vpow.pop %v903
    %v905 = vmul.f32 %v884, 1.442695
    %v906 = vpow.pop %v905
    %v907 = vmul.f32 %v885, 1.442695
    %v908 = vpow.pop %v907
    %v909 = vmul.f32 %v886, 1.442695
    %v910 = vpow.pop %v909
    %v911 = vmul.f32 %v887, 1.442695
    %v912 = vpow.pop %v911
    %v913 = vmul.f32 %v888, 1.442695
    %v914 = vpow.pop %v913
    %v915 = vmul.f32 %v889, 1.442695
    %v916 = vpow.pop %v915
    %v917 = vmul.f32 %v890, 1.442695
    %v918 = vpow.pop %v917
    %v919 = vmul.f32 %v891, 1.442695
    %v920 = vpow.pop %v919
    %v921 = vmul.f32 %v892, 1.442695
    %v922 = vpow.pop %v921
    %v923 = vmul.f32 %v893, 1.442695
    %v924 = vpow.pop %v923
    %v925 = vmul.f32 %v894, 1.442695
    %v926 = vpow.pop %v925
    %927 = vadd.xlane.f32.xlu0 %v896
    %v928 = vpop.xlane.xlu0 %927
    %929 = vadd.xlane.f32.xlu0 %v898
    %v930 = vpop.xlane.xlu0 %929
    %931 = vadd.xlane.f32.xlu0 %v900
    %v932 = vpop.xlane.xlu0 %931
    %933 = vadd.xlane.f32.xlu0 %v902
    %v934 = vpop.xlane.xlu0 %933
    %935 = vadd.xlane.f32.xlu0 %v904
    %v936 = vpop.xlane.xlu0 %935
    %937 = vadd.xlane.f32.xlu0 %v906
    %v938 = vpop.xlane.xlu0 %937
    %939 = vadd.xlane.f32.xlu0 %v908
    %v940 = vpop.xlane.xlu0 %939
    %941 = vadd.xlane.f32.xlu0 %v910
    %v942 = vpop.xlane.xlu0 %941
    %943 = vadd.xlane.f32.xlu0 %v912
    %v944 = vpop.xlane.xlu0 %943
    %945 = vadd.xlane.f32.xlu0 %v914
    %v946 = vpop.xlane.xlu0 %945
    %947 = vadd.xlane.f32.xlu0 %v916
    %v948 = vpop.xlane.xlu0 %947
    %949 = vadd.xlane.f32.xlu0 %v918
    %v950 = vpop.xlane.xlu0 %949
    %951 = vadd.xlane.f32.xlu0 %v920
    %v952 = vpop.xlane.xlu0 %951
    %953 = vadd.xlane.f32.xlu0 %v922
    %v954 = vpop.xlane.xlu0 %953
    %955 = vadd.xlane.f32.xlu0 %v924
    %v956 = vpop.xlane.xlu0 %955
    %957 = vadd.xlane.f32.xlu0 %v926
    %v958 = vpop.xlane.xlu0 %957
    %v959 = vrcp.pop %v928
    %v960 = vrcp.pop %v930
    %v961 = vrcp.pop %v932
    %v962 = vrcp.pop %v934
    %v963 = vrcp.pop %v936
    %v964 = vrcp.pop %v938
    %v965 = vrcp.pop %v940
    %v966 = vrcp.pop %v942
    %v967 = vrcp.pop %v944
    %v968 = vrcp.pop %v946
    %v969 = vrcp.pop %v948
    %v970 = vrcp.pop %v950
    %v971 = vrcp.pop %v952
    %v972 = vrcp.pop %v954
    %v973 = vrcp.pop %v956
    %v974 = vrcp.pop %v958
    %v975 = vmul.f32 %v896, %v959
    %v976 = vmul.f32 %v898, %v960
    %v977 = vmul.f32 %v900, %v961
    %v978 = vmul.f32 %v902, %v962
    %v979 = vmul.f32 %v904, %v963
    %v980 = vmul.f32 %v906, %v964
    %v981 = vmul.f32 %v908, %v965
    %v982 = vmul.f32 %v910, %v966
    %v983 = vmul.f32 %v912, %v967
    %v984 = vmul.f32 %v914, %v968
    %v985 = vmul.f32 %v916, %v969
    %v986 = vmul.f32 %v918, %v970
    %v987 = vmul.f32 %v920, %v971
    %v988 = vmul.f32 %v922, %v972
    %v989 = vmul.f32 %v924, %v973
    %v990 = vmul.f32 %v926, %v974
    %991 = vrot.lane.b32.xlu0 %v459, 64
    %v992 = vpop.permute.xlu0 %991
    %993 = vrot.lane.b32.xlu0 %v464, 64
    %v994 = vpop.permute.xlu0 %993
    %995 = vrot.lane.b32.xlu0 %v469, 64
    %v996 = vpop.permute.xlu0 %995
    %997 = vrot.lane.b32.xlu0 %v474, 64
    %v998 = vpop.permute.xlu0 %997
    %999 = vrot.lane.b32.xlu0 %v479, 64
    %v1000 = vpop.permute.xlu0 %999
    %1001 = vrot.lane.b32.xlu0 %v484, 64
    %v1002 = vpop.permute.xlu0 %1001
    %1003 = vrot.lane.b32.xlu0 %v489, 64
    %v1004 = vpop.permute.xlu0 %1003
    %1005 = vrot.lane.b32.xlu0 %v494, 64
    %v1006 = vpop.permute.xlu0 %1005
    %1007 = vrot.lane.b32.xlu0 %v499, 64
    %v1008 = vpop.permute.xlu0 %1007
    %1009 = vrot.lane.b32.xlu0 %v504, 64
    %v1010 = vpop.permute.xlu0 %1009
    %1011 = vrot.lane.b32.xlu0 %v509, 64
    %v1012 = vpop.permute.xlu0 %1011
    %1013 = vrot.lane.b32.xlu0 %v514, 64
    %v1014 = vpop.permute.xlu0 %1013
    %1015 = vrot.lane.b32.xlu0 %v519, 64
    %v1016 = vpop.permute.xlu0 %1015
    %1017 = vrot.lane.b32.xlu0 %v524, 64
    %v1018 = vpop.permute.xlu0 %1017
    %1019 = vrot.lane.b32.xlu0 %v529, 64
    %v1020 = vpop.permute.xlu0 %1019
    %1021 = vrot.lane.b32.xlu0 %v534, 64
    %v1022 = vpop.permute.xlu0 %1021
    %1039 = vmatprep.subr.mxu0 0.0
    %1040 = vmatpush1.msra.mxu0 %v1022
    %1041 = vmatprep.subr.mxu0 0.0
    %1042 = vmatpush1.msra.mxu0 %v1020
    %1043 = vmatprep.subr.mxu0 0.0
    %1044 = vmatpush1.msra.mxu0 %v1018
    %1045 = vmatprep.subr.mxu0 0.0
    %1046 = vmatpush1.msra.mxu0 %v1016
    %1047 = vmatprep.subr.mxu0 0.0
    %1048 = vmatpush1.msra.mxu0 %v1014
    %1049 = vmatprep.subr.mxu0 0.0
    %1050 = vmatpush1.msra.mxu0 %v1012
    %1051 = vmatprep.subr.mxu0 0.0
    %1052 = vmatpush1.msra.mxu0 %v1010
    %1053 = vmatprep.subr.mxu0 0.0
    %1054 = vmatpush1.msra.mxu0 %v1008
    %1055 = vmatprep.subr.mxu0 0.0
    %1056 = vmatpush1.msra.mxu0 %v1006
    %1057 = vmatprep.subr.mxu0 0.0
    %1058 = vmatpush1.msra.mxu0 %v1004
    %1059 = vmatprep.subr.mxu0 0.0
    %1060 = vmatpush1.msra.mxu0 %v1002
    %1061 = vmatprep.subr.mxu0 0.0
    %1062 = vmatpush1.msra.mxu0 %v1000
    %1063 = vmatprep.subr.mxu0 0.0
    %1064 = vmatpush1.msra.mxu0 %v998
    %1065 = vmatprep.subr.mxu0 0.0
    %1066 = vmatpush1.msra.mxu0 %v996
    %1067 = vmatprep.subr.mxu0 0.0
    %1068 = vmatpush1.msra.mxu0 %v994
    %1069 = vmatprep.subr.mxu0 0.0
    %1070 = vmatpush1.msra.mxu0 %v992
    %1071 = vmatprep.subr.mxu0 0.0
    %1072 = vmatpush2.msra.mxu0 0.0
    %1073 = vmatprep.subr.mxu0 0.0
    %1074 = vmatpush2.msra.mxu0 0.0
    %1075 = vmatprep.subr.mxu0 0.0
    %1076 = vmatpush2.msra.mxu0 0.0
    %1077 = vmatprep.subr.mxu0 0.0
    %1078 = vmatpush2.msra.mxu0 0.0
    %1079 = vmatprep.subr.mxu0 0.0
    %1080 = vmatpush2.msra.mxu0 0.0
    %1081 = vmatprep.subr.mxu0 0.0
    %1082 = vmatpush2.msra.mxu0 0.0
    %1083 = vmatprep.subr.mxu0 0.0
    %1084 = vmatpush2.msra.mxu0 0.0
    %1085 = vmatprep.subr.mxu0 0.0
    %1086 = vmatpush2.msra.mxu0 0.0
    %1087 = vmatprep.subr.mxu0 0.0
    %1088 = vmatpush2.msra.mxu0 0.0
    %1089 = vmatprep.subr.mxu0 0.0
    %1090 = vmatpush2.msra.mxu0 0.0
    %1091 = vmatprep.subr.mxu0 0.0
    %1092 = vmatpush2.msra.mxu0 0.0
    %1093 = vmatprep.subr.mxu0 0.0
    %1094 = vmatpush2.msra.mxu0 0.0
    %1095 = vmatprep.subr.mxu0 0.0
    %1096 = vmatpush2.msra.mxu0 0.0
    %1097 = vmatprep.subr.mxu0 0.0
    %1098 = vmatpush2.msra.mxu0 0.0
    %1099 = vmatprep.subr.mxu0 0.0
    %1100 = vmatpush2.msra.mxu0 0.0
    %1101 = vmatprep.subr.mxu0 0.0
    %1102 = vmatpush2.msra.mxu0 0.0
    %1103 = vmatprep.mubr.f32.mxu0 0.0
    %1104 = vmatmul.mubr.f32.gmra.mxu0 %v975
    %v1105 = vpop.f32.mrf.mxu0
    %v1106 = vadd.f32 0.0, %v1105
    %v1107 = vpop.f32.mrf.mxu0
    %1108 = vmatprep.mubr.f32.mxu0 0.0
    %1109 = vmatmul.mubr.f32.gmra.mxu0 %v976
    %v1110 = vpop.f32.mrf.mxu0
    %v1111 = vadd.f32 0.0, %v1110
    %v1112 = vpop.f32.mrf.mxu0
    %1113 = vmatprep.mubr.f32.mxu0 0.0
    %1114 = vmatmul.mubr.f32.gmra.mxu0 %v977
    %v1115 = vpop.f32.mrf.mxu0
    %v1116 = vadd.f32 0.0, %v1115
    %v1117 = vpop.f32.mrf.mxu0
    %1118 = vmatprep.mubr.f32.mxu0 0.0
    %1119 = vmatmul.mubr.f32.gmra.mxu0 %v978
    %v1120 = vpop.f32.mrf.mxu0
    %v1121 = vadd.f32 0.0, %v1120
    %v1122 = vpop.f32.mrf.mxu0
    %1123 = vmatprep.mubr.f32.mxu0 0.0
    %1124 = vmatmul.mubr.f32.gmra.mxu0 %v979
    %v1125 = vpop.f32.mrf.mxu0
    %v1126 = vadd.f32 0.0, %v1125
    %v1127 = vpop.f32.mrf.mxu0
    %1128 = vmatprep.mubr.f32.mxu0 0.0
    %1129 = vmatmul.mubr.f32.gmra.mxu0 %v980
    %v1130 = vpop.f32.mrf.mxu0
    %v1131 = vadd.f32 0.0, %v1130
    %v1132 = vpop.f32.mrf.mxu0
    %1133 = vmatprep.mubr.f32.mxu0 0.0
    %1134 = vmatmul.mubr.f32.gmra.mxu0 %v981
    %v1135 = vpop.f32.mrf.mxu0
    %v1136 = vadd.f32 0.0, %v1135
    %v1137 = vpop.f32.mrf.mxu0
    %1138 = vmatprep.mubr.f32.mxu0 0.0
    %1139 = vmatmul.mubr.f32.gmra.mxu0 %v982
    %v1140 = vpop.f32.mrf.mxu0
    %v1141 = vadd.f32 0.0, %v1140
    %v1142 = vpop.f32.mrf.mxu0
    %1143 = vmatprep.mubr.f32.mxu0 0.0
    %1144 = vmatmul.mubr.f32.gmra.mxu0 %v983
    %v1145 = vpop.f32.mrf.mxu0
    %v1146 = vadd.f32 0.0, %v1145
    %v1147 = vpop.f32.mrf.mxu0
    %1148 = vmatprep.mubr.f32.mxu0 0.0
    %1149 = vmatmul.mubr.f32.gmra.mxu0 %v984
    %v1150 = vpop.f32.mrf.mxu0
    %v1151 = vadd.f32 0.0, %v1150
    %v1152 = vpop.f32.mrf.mxu0
    %1153 = vmatprep.mubr.f32.mxu0 0.0
    %1154 = vmatmul.mubr.f32.gmra.mxu0 %v985
    %v1155 = vpop.f32.mrf.mxu0
    %v1156 = vadd.f32 0.0, %v1155
    %v1157 = vpop.f32.mrf.mxu0
    %1158 = vmatprep.mubr.f32.mxu0 0.0
    %1159 = vmatmul.mubr.f32.gmra.mxu0 %v986
    %v1160 = vpop.f32.mrf.mxu0
    %v1161 = vadd.f32 0.0, %v1160
    %v1162 = vpop.f32.mrf.mxu0
    %1163 = vmatprep.mubr.f32.mxu0 0.0
    %1164 = vmatmul.mubr.f32.gmra.mxu0 %v987
    %v1165 = vpop.f32.mrf.mxu0
    %v1166 = vadd.f32 0.0, %v1165
    %v1167 = vpop.f32.mrf.mxu0
    %1168 = vmatprep.mubr.f32.mxu0 0.0
    %1169 = vmatmul.mubr.f32.gmra.mxu0 %v988
    %v1170 = vpop.f32.mrf.mxu0
    %v1171 = vadd.f32 0.0, %v1170
    %v1172 = vpop.f32.mrf.mxu0
    %1173 = vmatprep.mubr.f32.mxu0 0.0
    %1174 = vmatmul.mubr.f32.gmra.mxu0 %v989
    %v1175 = vpop.f32.mrf.mxu0
    %v1176 = vadd.f32 0.0, %v1175
    %v1177 = vpop.f32.mrf.mxu0
    %1178 = vmatprep.mubr.f32.mxu0 0.0
    %1179 = vmatmul.mubr.f32.gmra.mxu0 %v990
    %v1180 = vpop.f32.mrf.mxu0
    %v1181 = vadd.f32 0.0, %v1180
    %v1182 = vpop.f32.mrf.mxu0
    %1183 = vdwg.mxu0
    %s1184 = scalar_lea.vmem [#allocation2], 128
    %v1185 = vld [vmem:[%s1184] sm:$0xff]
    %v1186 = vld [vmem:[%s1184 + $0x8] sm:$0xff]
    %v1187 = vld [vmem:[%s1184 + $0x10] sm:$0xff]
    %v1188 = vld [vmem:[%s1184 + $0x18] sm:$0xff]
    %v1189 = vld [vmem:[%s1184 + $0x20] sm:$0xff]
    %v1190 = vld [vmem:[%s1184 + $0x28] sm:$0xff]
    %v1191 = vld [vmem:[%s1184 + $0x30] sm:$0xff]
    %v1192 = vld [vmem:[%s1184 + $0x38] sm:$0xff]
    %v1193 = vld [vmem:[%s1184 + $0x40] sm:$0xff]
    %v1194 = vld [vmem:[%s1184 + $0x48] sm:$0xff]
    %v1195 = vld [vmem:[%s1184 + $0x50] sm:$0xff]
    %v1196 = vld [vmem:[%s1184 + $0x58] sm:$0xff]
    %v1197 = vld [vmem:[%s1184 + $0x60] sm:$0xff]
    %v1198 = vld [vmem:[%s1184 + $0x68] sm:$0xff]
    %v1199 = vld [vmem:[%s1184 + $0x70] sm:$0xff]
    %v1200 = vld [vmem:[%s1184 + $0x78] sm:$0xff]
    %1201 = vrot.lane.b32.xlu0 %v541, 120
    %v1202 = vpop.permute.xlu0 %1201
    %1203 = vrot.lane.b32.xlu0 %v542, 120
    %v1204 = vpop.permute.xlu0 %1203
    %1205 = vrot.lane.b32.xlu0 %v543, 120
    %v1206 = vpop.permute.xlu0 %1205
    %1207 = vrot.lane.b32.xlu0 %v544, 120
    %v1208 = vpop.permute.xlu0 %1207
    %1209 = vrot.lane.b32.xlu0 %v545, 120
    %v1210 = vpop.permute.xlu0 %1209
    %1211 = vrot.lane.b32.xlu0 %v546, 120
    %v1212 = vpop.permute.xlu0 %1211
    %1213 = vrot.lane.b32.xlu0 %v547, 120
    %v1214 = vpop.permute.xlu0 %1213
    %1215 = vrot.lane.b32.xlu0 %v548, 120
    %v1216 = vpop.permute.xlu0 %1215
    %1217 = vrot.lane.b32.xlu0 %v549, 120
    %v1218 = vpop.permute.xlu0 %1217
    %1219 = vrot.lane.b32.xlu0 %v550, 120
    %v1220 = vpop.permute.xlu0 %1219
    %1221 = vrot.lane.b32.xlu0 %v551, 120
    %v1222 = vpop.permute.xlu0 %1221
    %1223 = vrot.lane.b32.xlu0 %v552, 120
    %v1224 = vpop.permute.xlu0 %1223
    %1225 = vrot.lane.b32.xlu0 %v553, 120
    %v1226 = vpop.permute.xlu0 %1225
    %1227 = vrot.lane.b32.xlu0 %v554, 120
    %v1228 = vpop.permute.xlu0 %1227
    %1229 = vrot.lane.b32.xlu0 %v555, 120
    %v1230 = vpop.permute.xlu0 %1229
    %1231 = vrot.lane.b32.xlu0 %v556, 120
    %v1232 = vpop.permute.xlu0 %1231
    %1233 = vrot.lane.b32.xlu0 %v459, 88
    %v1234 = vpop.permute.xlu0 %1233
    %1235 = vrot.lane.b32.xlu0 %v464, 88
    %v1236 = vpop.permute.xlu0 %1235
    %1237 = vrot.lane.b32.xlu0 %v469, 88
    %v1238 = vpop.permute.xlu0 %1237
    %1239 = vrot.lane.b32.xlu0 %v474, 88
    %v1240 = vpop.permute.xlu0 %1239
    %1241 = vrot.lane.b32.xlu0 %v479, 88
    %v1242 = vpop.permute.xlu0 %1241
    %1243 = vrot.lane.b32.xlu0 %v484, 88
    %v1244 = vpop.permute.xlu0 %1243
    %1245 = vrot.lane.b32.xlu0 %v489, 88
    %v1246 = vpop.permute.xlu0 %1245
    %1247 = vrot.lane.b32.xlu0 %v494, 88
    %v1248 = vpop.permute.xlu0 %1247
    %1249 = vrot.lane.b32.xlu0 %v499, 88
    %v1250 = vpop.permute.xlu0 %1249
    %1251 = vrot.lane.b32.xlu0 %v504, 88
    %v1252 = vpop.permute.xlu0 %1251
    %1253 = vrot.lane.b32.xlu0 %v509, 88
    %v1254 = vpop.permute.xlu0 %1253
    %1255 = vrot.lane.b32.xlu0 %v514, 88
    %v1256 = vpop.permute.xlu0 %1255
    %1257 = vrot.lane.b32.xlu0 %v519, 88
    %v1258 = vpop.permute.xlu0 %1257
    %1259 = vrot.lane.b32.xlu0 %v524, 88
    %v1260 = vpop.permute.xlu0 %1259
    %1261 = vrot.lane.b32.xlu0 %v529, 88
    %v1262 = vpop.permute.xlu0 %1261
    %1263 = vrot.lane.b32.xlu0 %v534, 88
    %v1264 = vpop.permute.xlu0 %1263
    %v1265 = vsel %vm621, %v1202, 0
    %v1267 = vsel %vm621, %v1204, 0
    %v1269 = vsel %vm621, %v1206, 0
    %v1271 = vsel %vm621, %v1208, 0
    %v1273 = vsel %vm621, %v1210, 0
    %v1275 = vsel %vm621, %v1212, 0
    %v1277 = vsel %vm621, %v1214, 0
    %v1279 = vsel %vm621, %v1216, 0
    %v1281 = vsel %vm621, %v1218, 0
    %v1283 = vsel %vm621, %v1220, 0
    %v1285 = vsel %vm621, %v1222, 0
    %v1287 = vsel %vm621, %v1224, 0
    %v1289 = vsel %vm621, %v1226, 0
    %v1291 = vsel %vm621, %v1228, 0
    %v1293 = vsel %vm621, %v1230, 0
    %v1295 = vsel %vm621, %v1232, 0
    %v1297 = vsel %vm621, %v1234, 0
    %v1299 = vsel %vm621, %v1236, 0
    %v1301 = vsel %vm621, %v1238, 0
    %v1303 = vsel %vm621, %v1240, 0
    %v1305 = vsel %vm621, %v1242, 0
    %v1307 = vsel %vm621, %v1244, 0
    %v1309 = vsel %vm621, %v1246, 0
    %v1311 = vsel %vm621, %v1248, 0
    %v1313 = vsel %vm621, %v1250, 0
    %v1315 = vsel %vm621, %v1252, 0
    %v1317 = vsel %vm621, %v1254, 0
    %v1319 = vsel %vm621, %v1256, 0
    %v1321 = vsel %vm621, %v1258, 0
    %v1323 = vsel %vm621, %v1260, 0
    %v1325 = vsel %vm621, %v1262, 0
    %v1327 = vsel %vm621, %v1264, 0
    %1329 = vmatprep.subr.mxu0 0.0
    %1330 = vmatpush1.xpose.msra.mxu0 %v1327
    %1331 = vmatprep.subr.mxu0 0.0
    %1332 = vmatpush1.xpose.msra.mxu0 %v1325
    %1333 = vmatprep.subr.mxu0 0.0
    %1334 = vmatpush1.xpose.msra.mxu0 %v1323
    %1335 = vmatprep.subr.mxu0 0.0
    %1336 = vmatpush1.xpose.msra.mxu0 %v1321
    %1337 = vmatprep.subr.mxu0 0.0
    %1338 = vmatpush1.xpose.msra.mxu0 %v1319
    %1339 = vmatprep.subr.mxu0 0.0
    %1340 = vmatpush1.xpose.msra.mxu0 %v1317
    %1341 = vmatprep.subr.mxu0 0.0
    %1342 = vmatpush1.xpose.msra.mxu0 %v1315
    %1343 = vmatprep.subr.mxu0 0.0
    %1344 = vmatpush1.xpose.msra.mxu0 %v1313
    %1345 = vmatprep.subr.mxu0 0.0
    %1346 = vmatpush1.xpose.msra.mxu0 %v1311
    %1347 = vmatprep.subr.mxu0 0.0
    %1348 = vmatpush1.xpose.msra.mxu0 %v1309
    %1349 = vmatprep.subr.mxu0 0.0
    %1350 = vmatpush1.xpose.msra.mxu0 %v1307
    %1351 = vmatprep.subr.mxu0 0.0
    %1352 = vmatpush1.xpose.msra.mxu0 %v1305
    %1353 = vmatprep.subr.mxu0 0.0
    %1354 = vmatpush1.xpose.msra.mxu0 %v1303
    %1355 = vmatprep.subr.mxu0 0.0
    %1356 = vmatpush1.xpose.msra.mxu0 %v1301
    %1357 = vmatprep.subr.mxu0 0.0
    %1358 = vmatpush1.xpose.msra.mxu0 %v1299
    %1359 = vmatprep.subr.mxu0 0.0
    %1360 = vmatpush1.xpose.msra.mxu0 %v1297
    %1361 = vmatprep.subr.mxu0 0.0
    %1362 = vmatpush2.xpose.msra.mxu0 0.0
    %1363 = vmatprep.subr.mxu0 0.0
    %1364 = vmatpush2.xpose.msra.mxu0 0.0
    %1365 = vmatprep.subr.mxu0 0.0
    %1366 = vmatpush2.xpose.msra.mxu0 0.0
    %1367 = vmatprep.subr.mxu0 0.0
    %1368 = vmatpush2.xpose.msra.mxu0 0.0
    %1369 = vmatprep.subr.mxu0 0.0
    %1370 = vmatpush2.xpose.msra.mxu0 0.0
    %1371 = vmatprep.subr.mxu0 0.0
    %1372 = vmatpush2.xpose.msra.mxu0 0.0
    %1373 = vmatprep.subr.mxu0 0.0
    %1374 = vmatpush2.xpose.msra.mxu0 0.0
    %1375 = vmatprep.subr.mxu0 0.0
    %1376 = vmatpush2.xpose.msra.mxu0 0.0
    %1377 = vmatprep.subr.mxu0 0.0
    %1378 = vmatpush2.xpose.msra.mxu0 0.0
    %1379 = vmatprep.subr.mxu0 0.0
    %1380 = vmatpush2.xpose.msra.mxu0 0.0
    %1381 = vmatprep.subr.mxu0 0.0
    %1382 = vmatpush2.xpose.msra.mxu0 0.0
    %1383 = vmatprep.subr.mxu0 0.0
    %1384 = vmatpush2.xpose.msra.mxu0 0.0
    %1385 = vmatprep.subr.mxu0 0.0
    %1386 = vmatpush2.xpose.msra.mxu0 0.0
    %1387 = vmatprep.subr.mxu0 0.0
    %1388 = vmatpush2.xpose.msra.mxu0 0.0
    %1389 = vmatprep.subr.mxu0 0.0
    %1390 = vmatpush2.xpose.msra.mxu0 0.0
    %1391 = vmatprep.subr.mxu0 0.0
    %1392 = vmatpush2.xpose.msra.mxu0 0.0
    %1393 = vmatprep.mubr.f32.mxu0 0.0
    %1394 = vmatmul.mubr.f32.gmra.mxu0 %v1265
    %v1395 = vpop.f32.mrf.mxu0
    %v1396 = vadd.f32 %v1185, %v1395
    %v1397 = vpop.f32.mrf.mxu0
    %1398 = vmatprep.mubr.f32.mxu0 0.0
    %1399 = vmatmul.mubr.f32.gmra.mxu0 %v1267
    %v1400 = vpop.f32.mrf.mxu0
    %v1401 = vadd.f32 %v1186, %v1400
    %v1402 = vpop.f32.mrf.mxu0
    %1403 = vmatprep.mubr.f32.mxu0 0.0
    %1404 = vmatmul.mubr.f32.gmra.mxu0 %v1269
    %v1405 = vpop.f32.mrf.mxu0
    %v1406 = vadd.f32 %v1187, %v1405
    %v1407 = vpop.f32.mrf.mxu0
    %1408 = vmatprep.mubr.f32.mxu0 0.0
    %1409 = vmatmul.mubr.f32.gmra.mxu0 %v1271
    %v1410 = vpop.f32.mrf.mxu0
    %v1411 = vadd.f32 %v1188, %v1410
    %v1412 = vpop.f32.mrf.mxu0
    %1413 = vmatprep.mubr.f32.mxu0 0.0
    %1414 = vmatmul.mubr.f32.gmra.mxu0 %v1273
    %v1415 = vpop.f32.mrf.mxu0
    %v1416 = vadd.f32 %v1189, %v1415
    %v1417 = vpop.f32.mrf.mxu0
    %1418 = vmatprep.mubr.f32.mxu0 0.0
    %1419 = vmatmul.mubr.f32.gmra.mxu0 %v1275
    %v1420 = vpop.f32.mrf.mxu0
    %v1421 = vadd.f32 %v1190, %v1420
    %v1422 = vpop.f32.mrf.mxu0
    %1423 = vmatprep.mubr.f32.mxu0 0.0
    %1424 = vmatmul.mubr.f32.gmra.mxu0 %v1277
    %v1425 = vpop.f32.mrf.mxu0
    %v1426 = vadd.f32 %v1191, %v1425
    %v1427 = vpop.f32.mrf.mxu0
    %1428 = vmatprep.mubr.f32.mxu0 0.0
    %1429 = vmatmul.mubr.f32.gmra.mxu0 %v1279
    %v1430 = vpop.f32.mrf.mxu0
    %v1431 = vadd.f32 %v1192, %v1430
    %v1432 = vpop.f32.mrf.mxu0
    %1433 = vmatprep.mubr.f32.mxu0 0.0
    %1434 = vmatmul.mubr.f32.gmra.mxu0 %v1281
    %v1435 = vpop.f32.mrf.mxu0
    %v1436 = vadd.f32 %v1193, %v1435
    %v1437 = vpop.f32.mrf.mxu0
    %1438 = vmatprep.mubr.f32.mxu0 0.0
    %1439 = vmatmul.mubr.f32.gmra.mxu0 %v1283
    %v1440 = vpop.f32.mrf.mxu0
    %v1441 = vadd.f32 %v1194, %v1440
    %v1442 = vpop.f32.mrf.mxu0
    %1443 = vmatprep.mubr.f32.mxu0 0.0
    %1444 = vmatmul.mubr.f32.gmra.mxu0 %v1285
    %v1445 = vpop.f32.mrf.mxu0
    %v1446 = vadd.f32 %v1195, %v1445
    %v1447 = vpop.f32.mrf.mxu0
    %1448 = vmatprep.mubr.f32.mxu0 0.0
    %1449 = vmatmul.mubr.f32.gmra.mxu0 %v1287
    %v1450 = vpop.f32.mrf.mxu0
    %v1451 = vadd.f32 %v1196, %v1450
    %v1452 = vpop.f32.mrf.mxu0
    %1453 = vmatprep.mubr.f32.mxu0 0.0
    %1454 = vmatmul.mubr.f32.gmra.mxu0 %v1289
    %v1455 = vpop.f32.mrf.mxu0
    %v1456 = vadd.f32 %v1197, %v1455
    %v1457 = vpop.f32.mrf.mxu0
    %1458 = vmatprep.mubr.f32.mxu0 0.0
    %1459 = vmatmul.mubr.f32.gmra.mxu0 %v1291
    %v1460 = vpop.f32.mrf.mxu0
    %v1461 = vadd.f32 %v1198, %v1460
    %v1462 = vpop.f32.mrf.mxu0
    %1463 = vmatprep.mubr.f32.mxu0 0.0
    %1464 = vmatmul.mubr.f32.gmra.mxu0 %v1293
    %v1465 = vpop.f32.mrf.mxu0
    %v1466 = vadd.f32 %v1199, %v1465
    %v1467 = vpop.f32.mrf.mxu0
    %1468 = vmatprep.mubr.f32.mxu0 0.0
    %1469 = vmatmul.mubr.f32.gmra.mxu0 %v1295
    %v1470 = vpop.f32.mrf.mxu0
    %v1471 = vadd.f32 %v1200, %v1470
    %v1472 = vpop.f32.mrf.mxu0
    %1473 = vdwg.mxu0
    %1474 = vmax.xlane.f32.xlu0 %v1396
    %v1475 = vpop.xlane.xlu0 %1474
    %1476 = vmax.xlane.f32.xlu0 %v1401
    %v1477 = vpop.xlane.xlu0 %1476
    %1478 = vmax.xlane.f32.xlu0 %v1406
    %v1479 = vpop.xlane.xlu0 %1478
    %1480 = vmax.xlane.f32.xlu0 %v1411
    %v1481 = vpop.xlane.xlu0 %1480
    %1482 = vmax.xlane.f32.xlu0 %v1416
    %v1483 = vpop.xlane.xlu0 %1482
    %1484 = vmax.xlane.f32.xlu0 %v1421
    %v1485 = vpop.xlane.xlu0 %1484
    %1486 = vmax.xlane.f32.xlu0 %v1426
    %v1487 = vpop.xlane.xlu0 %1486
    %1488 = vmax.xlane.f32.xlu0 %v1431
    %v1489 = vpop.xlane.xlu0 %1488
    %1490 = vmax.xlane.f32.xlu0 %v1436
    %v1491 = vpop.xlane.xlu0 %1490
    %1492 = vmax.xlane.f32.xlu0 %v1441
    %v1493 = vpop.xlane.xlu0 %1492
    %1494 = vmax.xlane.f32.xlu0 %v1446
    %v1495 = vpop.xlane.xlu0 %1494
    %1496 = vmax.xlane.f32.xlu0 %v1451
    %v1497 = vpop.xlane.xlu0 %1496
    %1498 = vmax.xlane.f32.xlu0 %v1456
    %v1499 = vpop.xlane.xlu0 %1498
    %1500 = vmax.xlane.f32.xlu0 %v1461
    %v1501 = vpop.xlane.xlu0 %1500
    %1502 = vmax.xlane.f32.xlu0 %v1466
    %v1503 = vpop.xlane.xlu0 %1502
    %1504 = vmax.xlane.f32.xlu0 %v1471
    %v1505 = vpop.xlane.xlu0 %1504
    %v1506 = vsub.f32 %v1396, %v1475
    %v1507 = vsub.f32 %v1401, %v1477
    %v1508 = vsub.f32 %v1406, %v1479
    %v1509 = vsub.f32 %v1411, %v1481
    %v1510 = vsub.f32 %v1416, %v1483
    %v1511 = vsub.f32 %v1421, %v1485
    %v1512 = vsub.f32 %v1426, %v1487
    %v1513 = vsub.f32 %v1431, %v1489
    %v1514 = vsub.f32 %v1436, %v1491
    %v1515 = vsub.f32 %v1441, %v1493
    %v1516 = vsub.f32 %v1446, %v1495
    %v1517 = vsub.f32 %v1451, %v1497
    %v1518 = vsub.f32 %v1456, %v1499
    %v1519 = vsub.f32 %v1461, %v1501
    %v1520 = vsub.f32 %v1466, %v1503
    %v1521 = vsub.f32 %v1471, %v1505
    %v1522 = vmul.f32 %v1506, 1.442695
    %v1523 = vpow.pop %v1522
    %v1524 = vmul.f32 %v1507, 1.442695
    %v1525 = vpow.pop %v1524
    %v1526 = vmul.f32 %v1508, 1.442695
    %v1527 = vpow.pop %v1526
    %v1528 = vmul.f32 %v1509, 1.442695
    %v1529 = vpow.pop %v1528
    %v1530 = vmul.f32 %v1510, 1.442695
    %v1531 = vpow.pop %v1530
    %v1532 = vmul.f32 %v1511, 1.442695
    %v1533 = vpow.pop %v1532
    %v1534 = vmul.f32 %v1512, 1.442695
    %v1535 = vpow.pop %v1534
    %v1536 = vmul.f32 %v1513, 1.442695
    %v1537 = vpow.pop %v1536
    %v1538 = vmul.f32 %v1514, 1.442695
    %v1539 = vpow.pop %v1538
    %v1540 = vmul.f32 %v1515, 1.442695
    %v1541 = vpow.pop %v1540
    %v1542 = vmul.f32 %v1516, 1.442695
    %v1543 = vpow.pop %v1542
    %v1544 = vmul.f32 %v1517, 1.442695
    %v1545 = vpow.pop %v1544
    %v1546 = vmul.f32 %v1518, 1.442695
    %v1547 = vpow.pop %v1546
    %v1548 = vmul.f32 %v1519, 1.442695
    %v1549 = vpow.pop %v1548
    %v1550 = vmul.f32 %v1520, 1.442695
    %v1551 = vpow.pop %v1550
    %v1552 = vmul.f32 %v1521, 1.442695
    %v1553 = vpow.pop %v1552
    %1554 = vadd.xlane.f32.xlu0 %v1523
    %v1555 = vpop.xlane.xlu0 %1554
    %1556 = vadd.xlane.f32.xlu0 %v1525
    %v1557 = vpop.xlane.xlu0 %1556
    %1558 = vadd.xlane.f32.xlu0 %v1527
    %v1559 = vpop.xlane.xlu0 %1558
    %1560 = vadd.xlane.f32.xlu0 %v1529
    %v1561 = vpop.xlane.xlu0 %1560
    %1562 = vadd.xlane.f32.xlu0 %v1531
    %v1563 = vpop.xlane.xlu0 %1562
    %1564 = vadd.xlane.f32.xlu0 %v1533
    %v1565 = vpop.xlane.xlu0 %1564
    %1566 = vadd.xlane.f32.xlu0 %v1535
    %v1567 = vpop.xlane.xlu0 %1566
    %1568 = vadd.xlane.f32.xlu0 %v1537
    %v1569 = vpop.xlane.xlu0 %1568
    %1570 = vadd.xlane.f32.xlu0 %v1539
    %v1571 = vpop.xlane.xlu0 %1570
    %1572 = vadd.xlane.f32.xlu0 %v1541
    %v1573 = vpop.xlane.xlu0 %1572
    %1574 = vadd.xlane.f32.xlu0 %v1543
    %v1575 = vpop.xlane.xlu0 %1574
    %1576 = vadd.xlane.f32.xlu0 %v1545
    %v1577 = vpop.xlane.xlu0 %1576
    %1578 = vadd.xlane.f32.xlu0 %v1547
    %v1579 = vpop.xlane.xlu0 %1578
    %1580 = vadd.xlane.f32.xlu0 %v1549
    %v1581 = vpop.xlane.xlu0 %1580
    %1582 = vadd.xlane.f32.xlu0 %v1551
    %v1583 = vpop.xlane.xlu0 %1582
    %1584 = vadd.xlane.f32.xlu0 %v1553
    %v1585 = vpop.xlane.xlu0 %1584
    %v1586 = vrcp.pop %v1555
    %v1587 = vrcp.pop %v1557
    %v1588 = vrcp.pop %v1559
    %v1589 = vrcp.pop %v1561
    %v1590 = vrcp.pop %v1563
    %v1591 = vrcp.pop %v1565
    %v1592 = vrcp.pop %v1567
    %v1593 = vrcp.pop %v1569
    %v1594 = vrcp.pop %v1571
    %v1595 = vrcp.pop %v1573
    %v1596 = vrcp.pop %v1575
    %v1597 = vrcp.pop %v1577
    %v1598 = vrcp.pop %v1579
    %v1599 = vrcp.pop %v1581
    %v1600 = vrcp.pop %v1583
    %v1601 = vrcp.pop %v1585
    %v1602 = vmul.f32 %v1523, %v1586
    %v1603 = vmul.f32 %v1525, %v1587
    %v1604 = vmul.f32 %v1527, %v1588
    %v1605 = vmul.f32 %v1529, %v1589
    %v1606 = vmul.f32 %v1531, %v1590
    %v1607 = vmul.f32 %v1533, %v1591
    %v1608 = vmul.f32 %v1535, %v1592
    %v1609 = vmul.f32 %v1537, %v1593
    %v1610 = vmul.f32 %v1539, %v1594
    %v1611 = vmul.f32 %v1541, %v1595
    %v1612 = vmul.f32 %v1543, %v1596
    %v1613 = vmul.f32 %v1545, %v1597
    %v1614 = vmul.f32 %v1547, %v1598
    %v1615 = vmul.f32 %v1549, %v1599
    %v1616 = vmul.f32 %v1551, %v1600
    %v1617 = vmul.f32 %v1553, %v1601
    %1618 = vrot.lane.b32.xlu0 %v459, 56
    %v1619 = vpop.permute.xlu0 %1618
    %1620 = vrot.lane.b32.xlu0 %v464, 56
    %v1621 = vpop.permute.xlu0 %1620
    %1622 = vrot.lane.b32.xlu0 %v469, 56
    %v1623 = vpop.permute.xlu0 %1622
    %1624 = vrot.lane.b32.xlu0 %v474, 56
    %v1625 = vpop.permute.xlu0 %1624
    %1626 = vrot.lane.b32.xlu0 %v479, 56
    %v1627 = vpop.permute.xlu0 %1626
    %1628 = vrot.lane.b32.xlu0 %v484, 56
    %v1629 = vpop.permute.xlu0 %1628
    %1630 = vrot.lane.b32.xlu0 %v489, 56
    %v1631 = vpop.permute.xlu0 %1630
    %1632 = vrot.lane.b32.xlu0 %v494, 56
    %v1633 = vpop.permute.xlu0 %1632
    %1634 = vrot.lane.b32.xlu0 %v499, 56
    %v1635 = vpop.permute.xlu0 %1634
    %1636 = vrot.lane.b32.xlu0 %v504, 56
    %v1637 = vpop.permute.xlu0 %1636
    %1638 = vrot.lane.b32.xlu0 %v509, 56
    %v1639 = vpop.permute.xlu0 %1638
    %1640 = vrot.lane.b32.xlu0 %v514, 56
    %v1641 = vpop.permute.xlu0 %1640
    %1642 = vrot.lane.b32.xlu0 %v519, 56
    %v1643 = vpop.permute.xlu0 %1642
    %1644 = vrot.lane.b32.xlu0 %v524, 56
    %v1645 = vpop.permute.xlu0 %1644
    %1646 = vrot.lane.b32.xlu0 %v529, 56
    %v1647 = vpop.permute.xlu0 %1646
    %1648 = vrot.lane.b32.xlu0 %v534, 56
    %v1649 = vpop.permute.xlu0 %1648
    %1666 = vmatprep.subr.mxu0 0.0
    %1667 = vmatpush1.msra.mxu0 %v1649
    %1668 = vmatprep.subr.mxu0 0.0
    %1669 = vmatpush1.msra.mxu0 %v1647
    %1670 = vmatprep.subr.mxu0 0.0
    %1671 = vmatpush1.msra.mxu0 %v1645
    %1672 = vmatprep.subr.mxu0 0.0
    %1673 = vmatpush1.msra.mxu0 %v1643
    %1674 = vmatprep.subr.mxu0 0.0
    %1675 = vmatpush1.msra.mxu0 %v1641
    %1676 = vmatprep.subr.mxu0 0.0
    %1677 = vmatpush1.msra.mxu0 %v1639
    %1678 = vmatprep.subr.mxu0 0.0
    %1679 = vmatpush1.msra.mxu0 %v1637
    %1680 = vmatprep.subr.mxu0 0.0
    %1681 = vmatpush1.msra.mxu0 %v1635
    %1682 = vmatprep.subr.mxu0 0.0
    %1683 = vmatpush1.msra.mxu0 %v1633
    %1684 = vmatprep.subr.mxu0 0.0
    %1685 = vmatpush1.msra.mxu0 %v1631
    %1686 = vmatprep.subr.mxu0 0.0
    %1687 = vmatpush1.msra.mxu0 %v1629
    %1688 = vmatprep.subr.mxu0 0.0
    %1689 = vmatpush1.msra.mxu0 %v1627
    %1690 = vmatprep.subr.mxu0 0.0
    %1691 = vmatpush1.msra.mxu0 %v1625
    %1692 = vmatprep.subr.mxu0 0.0
    %1693 = vmatpush1.msra.mxu0 %v1623
    %1694 = vmatprep.subr.mxu0 0.0
    %1695 = vmatpush1.msra.mxu0 %v1621
    %1696 = vmatprep.subr.mxu0 0.0
    %1697 = vmatpush1.msra.mxu0 %v1619
    %1698 = vmatprep.subr.mxu0 0.0
    %1699 = vmatpush2.msra.mxu0 0.0
    %1700 = vmatprep.subr.mxu0 0.0
    %1701 = vmatpush2.msra.mxu0 0.0
    %1702 = vmatprep.subr.mxu0 0.0
    %1703 = vmatpush2.msra.mxu0 0.0
    %1704 = vmatprep.subr.mxu0 0.0
    %1705 = vmatpush2.msra.mxu0 0.0
    %1706 = vmatprep.subr.mxu0 0.0
    %1707 = vmatpush2.msra.mxu0 0.0
    %1708 = vmatprep.subr.mxu0 0.0
    %1709 = vmatpush2.msra.mxu0 0.0
    %1710 = vmatprep.subr.mxu0 0.0
    %1711 = vmatpush2.msra.mxu0 0.0
    %1712 = vmatprep.subr.mxu0 0.0
    %1713 = vmatpush2.msra.mxu0 0.0
    %1714 = vmatprep.subr.mxu0 0.0
    %1715 = vmatpush2.msra.mxu0 0.0
    %1716 = vmatprep.subr.mxu0 0.0
    %1717 = vmatpush2.msra.mxu0 0.0
    %1718 = vmatprep.subr.mxu0 0.0
    %1719 = vmatpush2.msra.mxu0 0.0
    %1720 = vmatprep.subr.mxu0 0.0
    %1721 = vmatpush2.msra.mxu0 0.0
    %1722 = vmatprep.subr.mxu0 0.0
    %1723 = vmatpush2.msra.mxu0 0.0
    %1724 = vmatprep.subr.mxu0 0.0
    %1725 = vmatpush2.msra.mxu0 0.0
    %1726 = vmatprep.subr.mxu0 0.0
    %1727 = vmatpush2.msra.mxu0 0.0
    %1728 = vmatprep.subr.mxu0 0.0
    %1729 = vmatpush2.msra.mxu0 0.0
    %1730 = vmatprep.mubr.f32.mxu0 0.0
    %1731 = vmatmul.mubr.f32.gmra.mxu0 %v1602
    %v1732 = vpop.f32.mrf.mxu0
    %v1733 = vadd.f32 0.0, %v1732
    %v1734 = vpop.f32.mrf.mxu0
    %1735 = vmatprep.mubr.f32.mxu0 0.0
    %1736 = vmatmul.mubr.f32.gmra.mxu0 %v1603
    %v1737 = vpop.f32.mrf.mxu0
    %v1738 = vadd.f32 0.0, %v1737
    %v1739 = vpop.f32.mrf.mxu0
    %1740 = vmatprep.mubr.f32.mxu0 0.0
    %1741 = vmatmul.mubr.f32.gmra.mxu0 %v1604
    %v1742 = vpop.f32.mrf.mxu0
    %v1743 = vadd.f32 0.0, %v1742
    %v1744 = vpop.f32.mrf.mxu0
    %1745 = vmatprep.mubr.f32.mxu0 0.0
    %1746 = vmatmul.mubr.f32.gmra.mxu0 %v1605
    %v1747 = vpop.f32.mrf.mxu0
    %v1748 = vadd.f32 0.0, %v1747
    %v1749 = vpop.f32.mrf.mxu0
    %1750 = vmatprep.mubr.f32.mxu0 0.0
    %1751 = vmatmul.mubr.f32.gmra.mxu0 %v1606
    %v1752 = vpop.f32.mrf.mxu0
    %v1753 = vadd.f32 0.0, %v1752
    %v1754 = vpop.f32.mrf.mxu0
    %1755 = vmatprep.mubr.f32.mxu0 0.0
    %1756 = vmatmul.mubr.f32.gmra.mxu0 %v1607
    %v1757 = vpop.f32.mrf.mxu0
    %v1758 = vadd.f32 0.0, %v1757
    %v1759 = vpop.f32.mrf.mxu0
    %1760 = vmatprep.mubr.f32.mxu0 0.0
    %1761 = vmatmul.mubr.f32.gmra.mxu0 %v1608
    %v1762 = vpop.f32.mrf.mxu0
    %v1763 = vadd.f32 0.0, %v1762
    %v1764 = vpop.f32.mrf.mxu0
    %1765 = vmatprep.mubr.f32.mxu0 0.0
    %1766 = vmatmul.mubr.f32.gmra.mxu0 %v1609
    %v1767 = vpop.f32.mrf.mxu0
    %v1768 = vadd.f32 0.0, %v1767
    %v1769 = vpop.f32.mrf.mxu0
    %1770 = vmatprep.mubr.f32.mxu0 0.0
    %1771 = vmatmul.mubr.f32.gmra.mxu0 %v1610
    %v1772 = vpop.f32.mrf.mxu0
    %v1773 = vadd.f32 0.0, %v1772
    %v1774 = vpop.f32.mrf.mxu0
    %1775 = vmatprep.mubr.f32.mxu0 0.0
    %1776 = vmatmul.mubr.f32.gmra.mxu0 %v1611
    %v1777 = vpop.f32.mrf.mxu0
    %v1778 = vadd.f32 0.0, %v1777
    %v1779 = vpop.f32.mrf.mxu0
    %1780 = vmatprep.mubr.f32.mxu0 0.0
    %1781 = vmatmul.mubr.f32.gmra.mxu0 %v1612
    %v1782 = vpop.f32.mrf.mxu0
    %v1783 = vadd.f32 0.0, %v1782
    %v1784 = vpop.f32.mrf.mxu0
    %1785 = vmatprep.mubr.f32.mxu0 0.0
    %1786 = vmatmul.mubr.f32.gmra.mxu0 %v1613
    %v1787 = vpop.f32.mrf.mxu0
    %v1788 = vadd.f32 0.0, %v1787
    %v1789 = vpop.f32.mrf.mxu0
    %1790 = vmatprep.mubr.f32.mxu0 0.0
    %1791 = vmatmul.mubr.f32.gmra.mxu0 %v1614
    %v1792 = vpop.f32.mrf.mxu0
    %v1793 = vadd.f32 0.0, %v1792
    %v1794 = vpop.f32.mrf.mxu0
    %1795 = vmatprep.mubr.f32.mxu0 0.0
    %1796 = vmatmul.mubr.f32.gmra.mxu0 %v1615
    %v1797 = vpop.f32.mrf.mxu0
    %v1798 = vadd.f32 0.0, %v1797
    %v1799 = vpop.f32.mrf.mxu0
    %1800 = vmatprep.mubr.f32.mxu0 0.0
    %1801 = vmatmul.mubr.f32.gmra.mxu0 %v1616
    %v1802 = vpop.f32.mrf.mxu0
    %v1803 = vadd.f32 0.0, %v1802
    %v1804 = vpop.f32.mrf.mxu0
    %1805 = vmatprep.mubr.f32.mxu0 0.0
    %1806 = vmatmul.mubr.f32.gmra.mxu0 %v1617
    %v1807 = vpop.f32.mrf.mxu0
    %v1808 = vadd.f32 0.0, %v1807
    %v1809 = vpop.f32.mrf.mxu0
    %1810 = vdwg.mxu0
    %v1812 = vsel %vm621, %v1733, 0
    %v1815 = vsel %vm621, %v1738, 0
    %v1818 = vsel %vm621, %v1743, 0
    %v1821 = vsel %vm621, %v1748, 0
    %v1824 = vsel %vm621, %v1753, 0
    %v1827 = vsel %vm621, %v1758, 0
    %v1830 = vsel %vm621, %v1763, 0
    %v1833 = vsel %vm621, %v1768, 0
    %v1836 = vsel %vm621, %v1773, 0
    %v1839 = vsel %vm621, %v1778, 0
    %v1842 = vsel %vm621, %v1783, 0
    %v1845 = vsel %vm621, %v1788, 0
    %v1848 = vsel %vm621, %v1793, 0
    %v1851 = vsel %vm621, %v1798, 0
    %v1854 = vsel %vm621, %v1803, 0
    %v1857 = vsel %vm621, %v1808, 0
    %1859 = vmatprep.subr.mxu0 0.0
    %1860 = vmatpush1.msra.mxu0 0.0
    %1861 = vmatprep.subr.mxu0 0.0
    %1862 = vmatpush1.msra.mxu0 0.0
    %1863 = vmatprep.subr.mxu0 0.0
    %1864 = vmatpush1.msra.mxu0 0.0
    %1865 = vmatprep.subr.mxu0 0.0
    %1866 = vmatpush1.msra.mxu0 0.0
    %1867 = vmatprep.subr.mxu0 0.0
    %1868 = vmatpush1.msra.mxu0 0.0
    %1869 = vmatprep.subr.mxu0 0.0
    %1870 = vmatpush1.msra.mxu0 0.0
    %1871 = vmatprep.subr.mxu0 0.0
    %1872 = vmatpush1.msra.mxu0 0.0
    %1873 = vmatprep.subr.mxu0 0.0
    %1874 = vmatpush1.msra.mxu0 0.0
    %1875 = vmatprep.subr.mxu0 0.0
    %1876 = vmatpush1.msra.mxu0 0.0
    %1877 = vmatprep.subr.mxu0 0.0
    %1878 = vmatpush1.msra.mxu0 0.0
    %1879 = vmatprep.subr.mxu0 0.0
    %1880 = vmatpush1.msra.mxu0 0.0
    %1881 = vmatprep.subr.mxu0 0.0
    %1882 = vmatpush1.msra.mxu0 0.0
    %1883 = vmatprep.subr.mxu0 0.0
    %1884 = vmatpush1.msra.mxu0 0.0
    %1885 = vmatprep.subr.mxu0 0.0
    %1886 = vmatpush1.msra.mxu0 0.0
    %1887 = vmatprep.subr.mxu0 0.0
    %1888 = vmatpush1.msra.mxu0 0.0
    %1889 = vmatprep.subr.mxu0 0.0
    %1890 = vmatpush1.msra.mxu0 %v538
    %1891 = vmatprep.subr.mxu0 0.0
    %1892 = vmatpush2.msra.mxu0 0.0
    %1893 = vmatprep.subr.mxu0 0.0
    %1894 = vmatpush2.msra.mxu0 0.0
    %1895 = vmatprep.subr.mxu0 0.0
    %1896 = vmatpush2.msra.mxu0 0.0
    %1897 = vmatprep.subr.mxu0 0.0
    %1898 = vmatpush2.msra.mxu0 0.0
    %1899 = vmatprep.subr.mxu0 0.0
    %1900 = vmatpush2.msra.mxu0 0.0
    %1901 = vmatprep.subr.mxu0 0.0
    %1902 = vmatpush2.msra.mxu0 0.0
    %1903 = vmatprep.subr.mxu0 0.0
    %1904 = vmatpush2.msra.mxu0 0.0
    %1905 = vmatprep.subr.mxu0 0.0
    %1906 = vmatpush2.msra.mxu0 0.0
    %1907 = vmatprep.subr.mxu0 0.0
    %1908 = vmatpush2.msra.mxu0 0.0
    %1909 = vmatprep.subr.mxu0 0.0
    %1910 = vmatpush2.msra.mxu0 0.0
    %1911 = vmatprep.subr.mxu0 0.0
    %1912 = vmatpush2.msra.mxu0 0.0
    %1913 = vmatprep.subr.mxu0 0.0
    %1914 = vmatpush2.msra.mxu0 0.0
    %1915 = vmatprep.subr.mxu0 0.0
    %1916 = vmatpush2.msra.mxu0 0.0
    %1917 = vmatprep.subr.mxu0 0.0
    %1918 = vmatpush2.msra.mxu0 0.0
    %1919 = vmatprep.subr.mxu0 0.0
    %1920 = vmatpush2.msra.mxu0 0.0
    %1921 = vmatprep.subr.mxu0 0.0
    %1922 = vmatpush2.msra.mxu0 0.0
    %1923 = vmatprep.mubr.f32.mxu0 0.0
    %1924 = vmatmul.mubr.f32.gmra.mxu0 %v1812
    %v1925 = vpop.f32.mrf.mxu0
    %v1926 = vadd.f32 0.0, %v1925
    %v1927 = vpop.f32.mrf.mxu0
    %1928 = vmatprep.mubr.f32.mxu0 0.0
    %1929 = vmatmul.mubr.f32.gmra.mxu0 %v1815
    %v1930 = vpop.f32.mrf.mxu0
    %v1931 = vadd.f32 0.0, %v1930
    %v1932 = vpop.f32.mrf.mxu0
    %1933 = vmatprep.mubr.f32.mxu0 0.0
    %1934 = vmatmul.mubr.f32.gmra.mxu0 %v1818
    %v1935 = vpop.f32.mrf.mxu0
    %v1936 = vadd.f32 0.0, %v1935
    %v1937 = vpop.f32.mrf.mxu0
    %1938 = vmatprep.mubr.f32.mxu0 0.0
    %1939 = vmatmul.mubr.f32.gmra.mxu0 %v1821
    %v1940 = vpop.f32.mrf.mxu0
    %v1941 = vadd.f32 0.0, %v1940
    %v1942 = vpop.f32.mrf.mxu0
    %1943 = vmatprep.mubr.f32.mxu0 0.0
    %1944 = vmatmul.mubr.f32.gmra.mxu0 %v1824
    %v1945 = vpop.f32.mrf.mxu0
    %v1946 = vadd.f32 0.0, %v1945
    %v1947 = vpop.f32.mrf.mxu0
    %1948 = vmatprep.mubr.f32.mxu0 0.0
    %1949 = vmatmul.mubr.f32.gmra.mxu0 %v1827
    %v1950 = vpop.f32.mrf.mxu0
    %v1951 = vadd.f32 0.0, %v1950
    %v1952 = vpop.f32.mrf.mxu0
    %1953 = vmatprep.mubr.f32.mxu0 0.0
    %1954 = vmatmul.mubr.f32.gmra.mxu0 %v1830
    %v1955 = vpop.f32.mrf.mxu0
    %v1956 = vadd.f32 0.0, %v1955
    %v1957 = vpop.f32.mrf.mxu0
    %1958 = vmatprep.mubr.f32.mxu0 0.0
    %1959 = vmatmul.mubr.f32.gmra.mxu0 %v1833
    %v1960 = vpop.f32.mrf.mxu0
    %v1961 = vadd.f32 0.0, %v1960
    %v1962 = vpop.f32.mrf.mxu0
    %1963 = vmatprep.mubr.f32.mxu0 0.0
    %1964 = vmatmul.mubr.f32.gmra.mxu0 %v1836
    %v1965 = vpop.f32.mrf.mxu0
    %v1966 = vadd.f32 0.0, %v1965
    %v1967 = vpop.f32.mrf.mxu0
    %1968 = vmatprep.mubr.f32.mxu0 0.0
    %1969 = vmatmul.mubr.f32.gmra.mxu0 %v1839
    %v1970 = vpop.f32.mrf.mxu0
    %v1971 = vadd.f32 0.0, %v1970
    %v1972 = vpop.f32.mrf.mxu0
    %1973 = vmatprep.mubr.f32.mxu0 0.0
    %1974 = vmatmul.mubr.f32.gmra.mxu0 %v1842
    %v1975 = vpop.f32.mrf.mxu0
    %v1976 = vadd.f32 0.0, %v1975
    %v1977 = vpop.f32.mrf.mxu0
    %1978 = vmatprep.mubr.f32.mxu0 0.0
    %1979 = vmatmul.mubr.f32.gmra.mxu0 %v1845
    %v1980 = vpop.f32.mrf.mxu0
    %v1981 = vadd.f32 0.0, %v1980
    %v1982 = vpop.f32.mrf.mxu0
    %1983 = vmatprep.mubr.f32.mxu0 0.0
    %1984 = vmatmul.mubr.f32.gmra.mxu0 %v1848
    %v1985 = vpop.f32.mrf.mxu0
    %v1986 = vadd.f32 0.0, %v1985
    %v1987 = vpop.f32.mrf.mxu0
    %1988 = vmatprep.mubr.f32.mxu0 0.0
    %1989 = vmatmul.mubr.f32.gmra.mxu0 %v1851
    %v1990 = vpop.f32.mrf.mxu0
    %v1991 = vadd.f32 0.0, %v1990
    %v1992 = vpop.f32.mrf.mxu0
    %1993 = vmatprep.mubr.f32.mxu0 0.0
    %1994 = vmatmul.mubr.f32.gmra.mxu0 %v1854
    %v1995 = vpop.f32.mrf.mxu0
    %v1996 = vadd.f32 0.0, %v1995
    %v1997 = vpop.f32.mrf.mxu0
    %1998 = vmatprep.mubr.f32.mxu0 0.0
    %1999 = vmatmul.mubr.f32.gmra.mxu0 %v1857
    %v2000 = vpop.f32.mrf.mxu0
    %v2001 = vadd.f32 0.0, %v2000
    %v2002 = vpop.f32.mrf.mxu0
    %2003 = vdwg.mxu0
    %v2005 = vsel %vm621, %v1106, 0
    %v2008 = vsel %vm621, %v1111, 0
    %v2011 = vsel %vm621, %v1116, 0
    %v2014 = vsel %vm621, %v1121, 0
    %v2017 = vsel %vm621, %v1126, 0
    %v2020 = vsel %vm621, %v1131, 0
    %v2023 = vsel %vm621, %v1136, 0
    %v2026 = vsel %vm621, %v1141, 0
    %v2029 = vsel %vm621, %v1146, 0
    %v2032 = vsel %vm621, %v1151, 0
    %v2035 = vsel %vm621, %v1156, 0
    %v2038 = vsel %vm621, %v1161, 0
    %v2041 = vsel %vm621, %v1166, 0
    %v2044 = vsel %vm621, %v1171, 0
    %v2047 = vsel %vm621, %v1176, 0
    %v2050 = vsel %vm621, %v1181, 0
    %2052 = vmatprep.subr.mxu0 0.0
    %2053 = vmatpush1.msra.mxu0 0.0
    %2054 = vmatprep.subr.mxu0 0.0
    %2055 = vmatpush1.msra.mxu0 0.0
    %2056 = vmatprep.subr.mxu0 0.0
    %2057 = vmatpush1.msra.mxu0 0.0
    %2058 = vmatprep.subr.mxu0 0.0
    %2059 = vmatpush1.msra.mxu0 0.0
    %2060 = vmatprep.subr.mxu0 0.0
    %2061 = vmatpush1.msra.mxu0 0.0
    %2062 = vmatprep.subr.mxu0 0.0
    %2063 = vmatpush1.msra.mxu0 0.0
    %2064 = vmatprep.subr.mxu0 0.0
    %2065 = vmatpush1.msra.mxu0 0.0
    %2066 = vmatprep.subr.mxu0 0.0
    %2067 = vmatpush1.msra.mxu0 0.0
    %2068 = vmatprep.subr.mxu0 0.0
    %2069 = vmatpush1.msra.mxu0 0.0
    %2070 = vmatprep.subr.mxu0 0.0
    %2071 = vmatpush1.msra.mxu0 0.0
    %2072 = vmatprep.subr.mxu0 0.0
    %2073 = vmatpush1.msra.mxu0 0.0
    %2074 = vmatprep.subr.mxu0 0.0
    %2075 = vmatpush1.msra.mxu0 0.0
    %2076 = vmatprep.subr.mxu0 0.0
    %2077 = vmatpush1.msra.mxu0 0.0
    %2078 = vmatprep.subr.mxu0 0.0
    %2079 = vmatpush1.msra.mxu0 0.0
    %2080 = vmatprep.subr.mxu0 0.0
    %2081 = vmatpush1.msra.mxu0 0.0
    %2082 = vmatprep.subr.mxu0 0.0
    %2083 = vmatpush1.msra.mxu0 %v537
    %2084 = vmatprep.subr.mxu0 0.0
    %2085 = vmatpush2.msra.mxu0 0.0
    %2086 = vmatprep.subr.mxu0 0.0
    %2087 = vmatpush2.msra.mxu0 0.0
    %2088 = vmatprep.subr.mxu0 0.0
    %2089 = vmatpush2.msra.mxu0 0.0
    %2090 = vmatprep.subr.mxu0 0.0
    %2091 = vmatpush2.msra.mxu0 0.0
    %2092 = vmatprep.subr.mxu0 0.0
    %2093 = vmatpush2.msra.mxu0 0.0
    %2094 = vmatprep.subr.mxu0 0.0
    %2095 = vmatpush2.msra.mxu0 0.0
    %2096 = vmatprep.subr.mxu0 0.0
    %2097 = vmatpush2.msra.mxu0 0.0
    %2098 = vmatprep.subr.mxu0 0.0
    %2099 = vmatpush2.msra.mxu0 0.0
    %2100 = vmatprep.subr.mxu0 0.0
    %2101 = vmatpush2.msra.mxu0 0.0
    %2102 = vmatprep.subr.mxu0 0.0
    %2103 = vmatpush2.msra.mxu0 0.0
    %2104 = vmatprep.subr.mxu0 0.0
    %2105 = vmatpush2.msra.mxu0 0.0
    %2106 = vmatprep.subr.mxu0 0.0
    %2107 = vmatpush2.msra.mxu0 0.0
    %2108 = vmatprep.subr.mxu0 0.0
    %2109 = vmatpush2.msra.mxu0 0.0
    %2110 = vmatprep.subr.mxu0 0.0
    %2111 = vmatpush2.msra.mxu0 0.0
    %2112 = vmatprep.subr.mxu0 0.0
    %2113 = vmatpush2.msra.mxu0 0.0
    %2114 = vmatprep.subr.mxu0 0.0
    %2115 = vmatpush2.msra.mxu0 0.0
    %2116 = vmatprep.mubr.f32.mxu0 0.0
    %2117 = vmatmul.mubr.f32.gmra.mxu0 %v2005
    %v2118 = vpop.f32.mrf.mxu0
    %v2119 = vadd.f32 %v1926, %v2118
    %v2120 = vpop.f32.mrf.mxu0
    %2121 = vmatprep.mubr.f32.mxu0 0.0
    %2122 = vmatmul.mubr.f32.gmra.mxu0 %v2008
    %v2123 = vpop.f32.mrf.mxu0
    %v2124 = vadd.f32 %v1931, %v2123
    %v2125 = vpop.f32.mrf.mxu0
    %2126 = vmatprep.mubr.f32.mxu0 0.0
    %2127 = vmatmul.mubr.f32.gmra.mxu0 %v2011
    %v2128 = vpop.f32.mrf.mxu0
    %v2129 = vadd.f32 %v1936, %v2128
    %v2130 = vpop.f32.mrf.mxu0
    %2131 = vmatprep.mubr.f32.mxu0 0.0
    %2132 = vmatmul.mubr.f32.gmra.mxu0 %v2014
    %v2133 = vpop.f32.mrf.mxu0
    %v2134 = vadd.f32 %v1941, %v2133
    %v2135 = vpop.f32.mrf.mxu0
    %2136 = vmatprep.mubr.f32.mxu0 0.0
    %2137 = vmatmul.mubr.f32.gmra.mxu0 %v2017
    %v2138 = vpop.f32.mrf.mxu0
    %v2139 = vadd.f32 %v1946, %v2138
    %v2140 = vpop.f32.mrf.mxu0
    %2141 = vmatprep.mubr.f32.mxu0 0.0
    %2142 = vmatmul.mubr.f32.gmra.mxu0 %v2020
    %v2143 = vpop.f32.mrf.mxu0
    %v2144 = vadd.f32 %v1951, %v2143
    %v2145 = vpop.f32.mrf.mxu0
    %2146 = vmatprep.mubr.f32.mxu0 0.0
    %2147 = vmatmul.mubr.f32.gmra.mxu0 %v2023
    %v2148 = vpop.f32.mrf.mxu0
    %v2149 = vadd.f32 %v1956, %v2148
    %v2150 = vpop.f32.mrf.mxu0
    %2151 = vmatprep.mubr.f32.mxu0 0.0
    %2152 = vmatmul.mubr.f32.gmra.mxu0 %v2026
    %v2153 = vpop.f32.mrf.mxu0
    %v2154 = vadd.f32 %v1961, %v2153
    %v2155 = vpop.f32.mrf.mxu0
    %2156 = vmatprep.mubr.f32.mxu0 0.0
    %2157 = vmatmul.mubr.f32.gmra.mxu0 %v2029
    %v2158 = vpop.f32.mrf.mxu0
    %v2159 = vadd.f32 %v1966, %v2158
    %v2160 = vpop.f32.mrf.mxu0
    %2161 = vmatprep.mubr.f32.mxu0 0.0
    %2162 = vmatmul.mubr.f32.gmra.mxu0 %v2032
    %v2163 = vpop.f32.mrf.mxu0
    %v2164 = vadd.f32 %v1971, %v2163
    %v2165 = vpop.f32.mrf.mxu0
    %2166 = vmatprep.mubr.f32.mxu0 0.0
    %2167 = vmatmul.mubr.f32.gmra.mxu0 %v2035
    %v2168 = vpop.f32.mrf.mxu0
    %v2169 = vadd.f32 %v1976, %v2168
    %v2170 = vpop.f32.mrf.mxu0
    %2171 = vmatprep.mubr.f32.mxu0 0.0
    %2172 = vmatmul.mubr.f32.gmra.mxu0 %v2038
    %v2173 = vpop.f32.mrf.mxu0
    %v2174 = vadd.f32 %v1981, %v2173
    %v2175 = vpop.f32.mrf.mxu0
    %2176 = vmatprep.mubr.f32.mxu0 0.0
    %2177 = vmatmul.mubr.f32.gmra.mxu0 %v2041
    %v2178 = vpop.f32.mrf.mxu0
    %v2179 = vadd.f32 %v1986, %v2178
    %v2180 = vpop.f32.mrf.mxu0
    %2181 = vmatprep.mubr.f32.mxu0 0.0
    %2182 = vmatmul.mubr.f32.gmra.mxu0 %v2044
    %v2183 = vpop.f32.mrf.mxu0
    %v2184 = vadd.f32 %v1991, %v2183
    %v2185 = vpop.f32.mrf.mxu0
    %2186 = vmatprep.mubr.f32.mxu0 0.0
    %2187 = vmatmul.mubr.f32.gmra.mxu0 %v2047
    %v2188 = vpop.f32.mrf.mxu0
    %v2189 = vadd.f32 %v1996, %v2188
    %v2190 = vpop.f32.mrf.mxu0
    %2191 = vmatprep.mubr.f32.mxu0 0.0
    %2192 = vmatmul.mubr.f32.gmra.mxu0 %v2050
    %v2193 = vpop.f32.mrf.mxu0
    %v2194 = vadd.f32 %v2001, %v2193
    %v2195 = vpop.f32.mrf.mxu0
    %2196 = vdwg.mxu0
    %s2197 = scalar_lea.vmem [#allocation2], 256
    %v2198 = vld [vmem:[%s2197] sm:$0xff]
    %v2199 = vld [vmem:[%s2197 + $0x8] sm:$0xff]
    %v2200 = vld [vmem:[%s2197 + $0x10] sm:$0xff]
    %v2201 = vld [vmem:[%s2197 + $0x18] sm:$0xff]
    %v2202 = vld [vmem:[%s2197 + $0x20] sm:$0xff]
    %v2203 = vld [vmem:[%s2197 + $0x28] sm:$0xff]
    %v2204 = vld [vmem:[%s2197 + $0x30] sm:$0xff]
    %v2205 = vld [vmem:[%s2197 + $0x38] sm:$0xff]
    %v2206 = vld [vmem:[%s2197 + $0x40] sm:$0xff]
    %v2207 = vld [vmem:[%s2197 + $0x48] sm:$0xff]
    %v2208 = vld [vmem:[%s2197 + $0x50] sm:$0xff]
    %v2209 = vld [vmem:[%s2197 + $0x58] sm:$0xff]
    %v2210 = vld [vmem:[%s2197 + $0x60] sm:$0xff]
    %v2211 = vld [vmem:[%s2197 + $0x68] sm:$0xff]
    %v2212 = vld [vmem:[%s2197 + $0x70] sm:$0xff]
    %v2213 = vld [vmem:[%s2197 + $0x78] sm:$0xff]
    %2214 = vrot.lane.b32.xlu0 %v541, 112
    %v2215 = vpop.permute.xlu0 %2214
    %2216 = vrot.lane.b32.xlu0 %v542, 112
    %v2217 = vpop.permute.xlu0 %2216
    %2218 = vrot.lane.b32.xlu0 %v543, 112
    %v2219 = vpop.permute.xlu0 %2218
    %2220 = vrot.lane.b32.xlu0 %v544, 112
    %v2221 = vpop.permute.xlu0 %2220
    %2222 = vrot.lane.b32.xlu0 %v545, 112
    %v2223 = vpop.permute.xlu0 %2222
    %2224 = vrot.lane.b32.xlu0 %v546, 112
    %v2225 = vpop.permute.xlu0 %2224
    %2226 = vrot.lane.b32.xlu0 %v547, 112
    %v2227 = vpop.permute.xlu0 %2226
    %2228 = vrot.lane.b32.xlu0 %v548, 112
    %v2229 = vpop.permute.xlu0 %2228
    %2230 = vrot.lane.b32.xlu0 %v549, 112
    %v2231 = vpop.permute.xlu0 %2230
    %2232 = vrot.lane.b32.xlu0 %v550, 112
    %v2233 = vpop.permute.xlu0 %2232
    %2234 = vrot.lane.b32.xlu0 %v551, 112
    %v2235 = vpop.permute.xlu0 %2234
    %2236 = vrot.lane.b32.xlu0 %v552, 112
    %v2237 = vpop.permute.xlu0 %2236
    %2238 = vrot.lane.b32.xlu0 %v553, 112
    %v2239 = vpop.permute.xlu0 %2238
    %2240 = vrot.lane.b32.xlu0 %v554, 112
    %v2241 = vpop.permute.xlu0 %2240
    %2242 = vrot.lane.b32.xlu0 %v555, 112
    %v2243 = vpop.permute.xlu0 %2242
    %2244 = vrot.lane.b32.xlu0 %v556, 112
    %v2245 = vpop.permute.xlu0 %2244
    %2246 = vrot.lane.b32.xlu0 %v459, 80
    %v2247 = vpop.permute.xlu0 %2246
    %2248 = vrot.lane.b32.xlu0 %v464, 80
    %v2249 = vpop.permute.xlu0 %2248
    %2250 = vrot.lane.b32.xlu0 %v469, 80
    %v2251 = vpop.permute.xlu0 %2250
    %2252 = vrot.lane.b32.xlu0 %v474, 80
    %v2253 = vpop.permute.xlu0 %2252
    %2254 = vrot.lane.b32.xlu0 %v479, 80
    %v2255 = vpop.permute.xlu0 %2254
    %2256 = vrot.lane.b32.xlu0 %v484, 80
    %v2257 = vpop.permute.xlu0 %2256
    %2258 = vrot.lane.b32.xlu0 %v489, 80
    %v2259 = vpop.permute.xlu0 %2258
    %2260 = vrot.lane.b32.xlu0 %v494, 80
    %v2261 = vpop.permute.xlu0 %2260
    %2262 = vrot.lane.b32.xlu0 %v499, 80
    %v2263 = vpop.permute.xlu0 %2262
    %2264 = vrot.lane.b32.xlu0 %v504, 80
    %v2265 = vpop.permute.xlu0 %2264
    %2266 = vrot.lane.b32.xlu0 %v509, 80
    %v2267 = vpop.permute.xlu0 %2266
    %2268 = vrot.lane.b32.xlu0 %v514, 80
    %v2269 = vpop.permute.xlu0 %2268
    %2270 = vrot.lane.b32.xlu0 %v519, 80
    %v2271 = vpop.permute.xlu0 %2270
    %2272 = vrot.lane.b32.xlu0 %v524, 80
    %v2273 = vpop.permute.xlu0 %2272
    %2274 = vrot.lane.b32.xlu0 %v529, 80
    %v2275 = vpop.permute.xlu0 %2274
    %2276 = vrot.lane.b32.xlu0 %v534, 80
    %v2277 = vpop.permute.xlu0 %2276
    %v2278 = vsel %vm621, %v2215, 0
    %v2280 = vsel %vm621, %v2217, 0
    %v2282 = vsel %vm621, %v2219, 0
    %v2284 = vsel %vm621, %v2221, 0
    %v2286 = vsel %vm621, %v2223, 0
    %v2288 = vsel %vm621, %v2225, 0
    %v2290 = vsel %vm621, %v2227, 0
    %v2292 = vsel %vm621, %v2229, 0
    %v2294 = vsel %vm621, %v2231, 0
    %v2296 = vsel %vm621, %v2233, 0
    %v2298 = vsel %vm621, %v2235, 0
    %v2300 = vsel %vm621, %v2237, 0
    %v2302 = vsel %vm621, %v2239, 0
    %v2304 = vsel %vm621, %v2241, 0
    %v2306 = vsel %vm621, %v2243, 0
    %v2308 = vsel %vm621, %v2245, 0
    %v2310 = vsel %vm621, %v2247, 0
    %v2312 = vsel %vm621, %v2249, 0
    %v2314 = vsel %vm621, %v2251, 0
    %v2316 = vsel %vm621, %v2253, 0
    %v2318 = vsel %vm621, %v2255, 0
    %v2320 = vsel %vm621, %v2257, 0
    %v2322 = vsel %vm621, %v2259, 0
    %v2324 = vsel %vm621, %v2261, 0
    %v2326 = vsel %vm621, %v2263, 0
    %v2328 = vsel %vm621, %v2265, 0
    %v2330 = vsel %vm621, %v2267, 0
    %v2332 = vsel %vm621, %v2269, 0
    %v2334 = vsel %vm621, %v2271, 0
    %v2336 = vsel %vm621, %v2273, 0
    %v2338 = vsel %vm621, %v2275, 0
    %v2340 = vsel %vm621, %v2277, 0
    %2342 = vmatprep.subr.mxu0 0.0
    %2343 = vmatpush1.xpose.msra.mxu0 %v2340
    %2344 = vmatprep.subr.mxu0 0.0
    %2345 = vmatpush1.xpose.msra.mxu0 %v2338
    %2346 = vmatprep.subr.mxu0 0.0
    %2347 = vmatpush1.xpose.msra.mxu0 %v2336
    %2348 = vmatprep.subr.mxu0 0.0
    %2349 = vmatpush1.xpose.msra.mxu0 %v2334
    %2350 = vmatprep.subr.mxu0 0.0
    %2351 = vmatpush1.xpose.msra.mxu0 %v2332
    %2352 = vmatprep.subr.mxu0 0.0
    %2353 = vmatpush1.xpose.msra.mxu0 %v2330
    %2354 = vmatprep.subr.mxu0 0.0
    %2355 = vmatpush1.xpose.msra.mxu0 %v2328
    %2356 = vmatprep.subr.mxu0 0.0
    %2357 = vmatpush1.xpose.msra.mxu0 %v2326
    %2358 = vmatprep.subr.mxu0 0.0
    %2359 = vmatpush1.xpose.msra.mxu0 %v2324
    %2360 = vmatprep.subr.mxu0 0.0
    %2361 = vmatpush1.xpose.msra.mxu0 %v2322
    %2362 = vmatprep.subr.mxu0 0.0
    %2363 = vmatpush1.xpose.msra.mxu0 %v2320
    %2364 = vmatprep.subr.mxu0 0.0
    %2365 = vmatpush1.xpose.msra.mxu0 %v2318
    %2366 = vmatprep.subr.mxu0 0.0
    %2367 = vmatpush1.xpose.msra.mxu0 %v2316
    %2368 = vmatprep.subr.mxu0 0.0
    %2369 = vmatpush1.xpose.msra.mxu0 %v2314
    %2370 = vmatprep.subr.mxu0 0.0
    %2371 = vmatpush1.xpose.msra.mxu0 %v2312
    %2372 = vmatprep.subr.mxu0 0.0
    %2373 = vmatpush1.xpose.msra.mxu0 %v2310
    %2374 = vmatprep.subr.mxu0 0.0
    %2375 = vmatpush2.xpose.msra.mxu0 0.0
    %2376 = vmatprep.subr.mxu0 0.0
    %2377 = vmatpush2.xpose.msra.mxu0 0.0
    %2378 = vmatprep.subr.mxu0 0.0
    %2379 = vmatpush2.xpose.msra.mxu0 0.0
    %2380 = vmatprep.subr.mxu0 0.0
    %2381 = vmatpush2.xpose.msra.mxu0 0.0
    %2382 = vmatprep.subr.mxu0 0.0
    %2383 = vmatpush2.xpose.msra.mxu0 0.0
    %2384 = vmatprep.subr.mxu0 0.0
    %2385 = vmatpush2.xpose.msra.mxu0 0.0
    %2386 = vmatprep.subr.mxu0 0.0
    %2387 = vmatpush2.xpose.msra.mxu0 0.0
    %2388 = vmatprep.subr.mxu0 0.0
    %2389 = vmatpush2.xpose.msra.mxu0 0.0
    %2390 = vmatprep.subr.mxu0 0.0
    %2391 = vmatpush2.xpose.msra.mxu0 0.0
    %2392 = vmatprep.subr.mxu0 0.0
    %2393 = vmatpush2.xpose.msra.mxu0 0.0
    %2394 = vmatprep.subr.mxu0 0.0
    %2395 = vmatpush2.xpose.msra.mxu0 0.0
    %2396 = vmatprep.subr.mxu0 0.0
    %2397 = vmatpush2.xpose.msra.mxu0 0.0
    %2398 = vmatprep.subr.mxu0 0.0
    %2399 = vmatpush2.xpose.msra.mxu0 0.0
    %2400 = vmatprep.subr.mxu0 0.0
    %2401 = vmatpush2.xpose.msra.mxu0 0.0
    %2402 = vmatprep.subr.mxu0 0.0
    %2403 = vmatpush2.xpose.msra.mxu0 0.0
    %2404 = vmatprep.subr.mxu0 0.0
    %2405 = vmatpush2.xpose.msra.mxu0 0.0
    %2406 = vmatprep.mubr.f32.mxu0 0.0
    %2407 = vmatmul.mubr.f32.gmra.mxu0 %v2278
    %v2408 = vpop.f32.mrf.mxu0
    %v2409 = vadd.f32 %v2198, %v2408
    %v2410 = vpop.f32.mrf.mxu0
    %2411 = vmatprep.mubr.f32.mxu0 0.0
    %2412 = vmatmul.mubr.f32.gmra.mxu0 %v2280
    %v2413 = vpop.f32.mrf.mxu0
    %v2414 = vadd.f32 %v2199, %v2413
    %v2415 = vpop.f32.mrf.mxu0
    %2416 = vmatprep.mubr.f32.mxu0 0.0
    %2417 = vmatmul.mubr.f32.gmra.mxu0 %v2282
    %v2418 = vpop.f32.mrf.mxu0
    %v2419 = vadd.f32 %v2200, %v2418
    %v2420 = vpop.f32.mrf.mxu0
    %2421 = vmatprep.mubr.f32.mxu0 0.0
    %2422 = vmatmul.mubr.f32.gmra.mxu0 %v2284
    %v2423 = vpop.f32.mrf.mxu0
    %v2424 = vadd.f32 %v2201, %v2423
    %v2425 = vpop.f32.mrf.mxu0
    %2426 = vmatprep.mubr.f32.mxu0 0.0
    %2427 = vmatmul.mubr.f32.gmra.mxu0 %v2286
    %v2428 = vpop.f32.mrf.mxu0
    %v2429 = vadd.f32 %v2202, %v2428
    %v2430 = vpop.f32.mrf.mxu0
    %2431 = vmatprep.mubr.f32.mxu0 0.0
    %2432 = vmatmul.mubr.f32.gmra.mxu0 %v2288
    %v2433 = vpop.f32.mrf.mxu0
    %v2434 = vadd.f32 %v2203, %v2433
    %v2435 = vpop.f32.mrf.mxu0
    %2436 = vmatprep.mubr.f32.mxu0 0.0
    %2437 = vmatmul.mubr.f32.gmra.mxu0 %v2290
    %v2438 = vpop.f32.mrf.mxu0
    %v2439 = vadd.f32 %v2204, %v2438
    %v2440 = vpop.f32.mrf.mxu0
    %2441 = vmatprep.mubr.f32.mxu0 0.0
    %2442 = vmatmul.mubr.f32.gmra.mxu0 %v2292
    %v2443 = vpop.f32.mrf.mxu0
    %v2444 = vadd.f32 %v2205, %v2443
    %v2445 = vpop.f32.mrf.mxu0
    %2446 = vmatprep.mubr.f32.mxu0 0.0
    %2447 = vmatmul.mubr.f32.gmra.mxu0 %v2294
    %v2448 = vpop.f32.mrf.mxu0
    %v2449 = vadd.f32 %v2206, %v2448
    %v2450 = vpop.f32.mrf.mxu0
    %2451 = vmatprep.mubr.f32.mxu0 0.0
    %2452 = vmatmul.mubr.f32.gmra.mxu0 %v2296
    %v2453 = vpop.f32.mrf.mxu0
    %v2454 = vadd.f32 %v2207, %v2453
    %v2455 = vpop.f32.mrf.mxu0
    %2456 = vmatprep.mubr.f32.mxu0 0.0
    %2457 = vmatmul.mubr.f32.gmra.mxu0 %v2298
    %v2458 = vpop.f32.mrf.mxu0
    %v2459 = vadd.f32 %v2208, %v2458
    %v2460 = vpop.f32.mrf.mxu0
    %2461 = vmatprep.mubr.f32.mxu0 0.0
    %2462 = vmatmul.mubr.f32.gmra.mxu0 %v2300
    %v2463 = vpop.f32.mrf.mxu0
    %v2464 = vadd.f32 %v2209, %v2463
    %v2465 = vpop.f32.mrf.mxu0
    %2466 = vmatprep.mubr.f32.mxu0 0.0
    %2467 = vmatmul.mubr.f32.gmra.mxu0 %v2302
    %v2468 = vpop.f32.mrf.mxu0
    %v2469 = vadd.f32 %v2210, %v2468
    %v2470 = vpop.f32.mrf.mxu0
    %2471 = vmatprep.mubr.f32.mxu0 0.0
    %2472 = vmatmul.mubr.f32.gmra.mxu0 %v2304
    %v2473 = vpop.f32.mrf.mxu0
    %v2474 = vadd.f32 %v2211, %v2473
    %v2475 = vpop.f32.mrf.mxu0
    %2476 = vmatprep.mubr.f32.mxu0 0.0
    %2477 = vmatmul.mubr.f32.gmra.mxu0 %v2306
    %v2478 = vpop.f32.mrf.mxu0
    %v2479 = vadd.f32 %v2212, %v2478
    %v2480 = vpop.f32.mrf.mxu0
    %2481 = vmatprep.mubr.f32.mxu0 0.0
    %2482 = vmatmul.mubr.f32.gmra.mxu0 %v2308
    %v2483 = vpop.f32.mrf.mxu0
    %v2484 = vadd.f32 %v2213, %v2483
    %v2485 = vpop.f32.mrf.mxu0
    %2486 = vdwg.mxu0
    %2487 = vmax.xlane.f32.xlu0 %v2409
    %v2488 = vpop.xlane.xlu0 %2487
    %2489 = vmax.xlane.f32.xlu0 %v2414
    %v2490 = vpop.xlane.xlu0 %2489
    %2491 = vmax.xlane.f32.xlu0 %v2419
    %v2492 = vpop.xlane.xlu0 %2491
    %2493 = vmax.xlane.f32.xlu0 %v2424
    %v2494 = vpop.xlane.xlu0 %2493
    %2495 = vmax.xlane.f32.xlu0 %v2429
    %v2496 = vpop.xlane.xlu0 %2495
    %2497 = vmax.xlane.f32.xlu0 %v2434
    %v2498 = vpop.xlane.xlu0 %2497
    %2499 = vmax.xlane.f32.xlu0 %v2439
    %v2500 = vpop.xlane.xlu0 %2499
    %2501 = vmax.xlane.f32.xlu0 %v2444
    %v2502 = vpop.xlane.xlu0 %2501
    %2503 = vmax.xlane.f32.xlu0 %v2449
    %v2504 = vpop.xlane.xlu0 %2503
    %2505 = vmax.xlane.f32.xlu0 %v2454
    %v2506 = vpop.xlane.xlu0 %2505
    %2507 = vmax.xlane.f32.xlu0 %v2459
    %v2508 = vpop.xlane.xlu0 %2507
    %2509 = vmax.xlane.f32.xlu0 %v2464
    %v2510 = vpop.xlane.xlu0 %2509
    %2511 = vmax.xlane.f32.xlu0 %v2469
    %v2512 = vpop.xlane.xlu0 %2511
    %2513 = vmax.xlane.f32.xlu0 %v2474
    %v2514 = vpop.xlane.xlu0 %2513
    %2515 = vmax.xlane.f32.xlu0 %v2479
    %v2516 = vpop.xlane.xlu0 %2515
    %2517 = vmax.xlane.f32.xlu0 %v2484
    %v2518 = vpop.xlane.xlu0 %2517
    %v2519 = vsub.f32 %v2409, %v2488
    %v2520 = vsub.f32 %v2414, %v2490
    %v2521 = vsub.f32 %v2419, %v2492
    %v2522 = vsub.f32 %v2424, %v2494
    %v2523 = vsub.f32 %v2429, %v2496
    %v2524 = vsub.f32 %v2434, %v2498
    %v2525 = vsub.f32 %v2439, %v2500
    %v2526 = vsub.f32 %v2444, %v2502
    %v2527 = vsub.f32 %v2449, %v2504
    %v2528 = vsub.f32 %v2454, %v2506
    %v2529 = vsub.f32 %v2459, %v2508
    %v2530 = vsub.f32 %v2464, %v2510
    %v2531 = vsub.f32 %v2469, %v2512
    %v2532 = vsub.f32 %v2474, %v2514
    %v2533 = vsub.f32 %v2479, %v2516
    %v2534 = vsub.f32 %v2484, %v2518
    %v2535 = vmul.f32 %v2519, 1.442695
    %v2536 = vpow.pop %v2535
    %v2537 = vmul.f32 %v2520, 1.442695
    %v2538 = vpow.pop %v2537
    %v2539 = vmul.f32 %v2521, 1.442695
    %v2540 = vpow.pop %v2539
    %v2541 = vmul.f32 %v2522, 1.442695
    %v2542 = vpow.pop %v2541
    %v2543 = vmul.f32 %v2523, 1.442695
    %v2544 = vpow.pop %v2543
    %v2545 = vmul.f32 %v2524, 1.442695
    %v2546 = vpow.pop %v2545
    %v2547 = vmul.f32 %v2525, 1.442695
    %v2548 = vpow.pop %v2547
    %v2549 = vmul.f32 %v2526, 1.442695
    %v2550 = vpow.pop %v2549
    %v2551 = vmul.f32 %v2527, 1.442695
    %v2552 = vpow.pop %v2551
    %v2553 = vmul.f32 %v2528, 1.442695
    %v2554 = vpow.pop %v2553
    %v2555 = vmul.f32 %v2529, 1.442695
    %v2556 = vpow.pop %v2555
    %v2557 = vmul.f32 %v2530, 1.442695
    %v2558 = vpow.pop %v2557
    %v2559 = vmul.f32 %v2531, 1.442695
    %v2560 = vpow.pop %v2559
    %v2561 = vmul.f32 %v2532, 1.442695
    %v2562 = vpow.pop %v2561
    %v2563 = vmul.f32 %v2533, 1.442695
    %v2564 = vpow.pop %v2563
    %v2565 = vmul.f32 %v2534, 1.442695
    %v2566 = vpow.pop %v2565
    %2567 = vadd.xlane.f32.xlu0 %v2536
    %v2568 = vpop.xlane.xlu0 %2567
    %2569 = vadd.xlane.f32.xlu0 %v2538
    %v2570 = vpop.xlane.xlu0 %2569
    %2571 = vadd.xlane.f32.xlu0 %v2540
    %v2572 = vpop.xlane.xlu0 %2571
    %2573 = vadd.xlane.f32.xlu0 %v2542
    %v2574 = vpop.xlane.xlu0 %2573
    %2575 = vadd.xlane.f32.xlu0 %v2544
    %v2576 = vpop.xlane.xlu0 %2575
    %2577 = vadd.xlane.f32.xlu0 %v2546
    %v2578 = vpop.xlane.xlu0 %2577
    %2579 = vadd.xlane.f32.xlu0 %v2548
    %v2580 = vpop.xlane.xlu0 %2579
    %2581 = vadd.xlane.f32.xlu0 %v2550
    %v2582 = vpop.xlane.xlu0 %2581
    %2583 = vadd.xlane.f32.xlu0 %v2552
    %v2584 = vpop.xlane.xlu0 %2583
    %2585 = vadd.xlane.f32.xlu0 %v2554
    %v2586 = vpop.xlane.xlu0 %2585
    %2587 = vadd.xlane.f32.xlu0 %v2556
    %v2588 = vpop.xlane.xlu0 %2587
    %2589 = vadd.xlane.f32.xlu0 %v2558
    %v2590 = vpop.xlane.xlu0 %2589
    %2591 = vadd.xlane.f32.xlu0 %v2560
    %v2592 = vpop.xlane.xlu0 %2591
    %2593 = vadd.xlane.f32.xlu0 %v2562
    %v2594 = vpop.xlane.xlu0 %2593
    %2595 = vadd.xlane.f32.xlu0 %v2564
    %v2596 = vpop.xlane.xlu0 %2595
    %2597 = vadd.xlane.f32.xlu0 %v2566
    %v2598 = vpop.xlane.xlu0 %2597
    %v2599 = vrcp.pop %v2568
    %v2600 = vrcp.pop %v2570
    %v2601 = vrcp.pop %v2572
    %v2602 = vrcp.pop %v2574
    %v2603 = vrcp.pop %v2576
    %v2604 = vrcp.pop %v2578
    %v2605 = vrcp.pop %v2580
    %v2606 = vrcp.pop %v2582
    %v2607 = vrcp.pop %v2584
    %v2608 = vrcp.pop %v2586
    %v2609 = vrcp.pop %v2588
    %v2610 = vrcp.pop %v2590
    %v2611 = vrcp.pop %v2592
    %v2612 = vrcp.pop %v2594
    %v2613 = vrcp.pop %v2596
    %v2614 = vrcp.pop %v2598
    %v2615 = vmul.f32 %v2536, %v2599
    %v2616 = vmul.f32 %v2538, %v2600
    %v2617 = vmul.f32 %v2540, %v2601
    %v2618 = vmul.f32 %v2542, %v2602
    %v2619 = vmul.f32 %v2544, %v2603
    %v2620 = vmul.f32 %v2546, %v2604
    %v2621 = vmul.f32 %v2548, %v2605
    %v2622 = vmul.f32 %v2550, %v2606
    %v2623 = vmul.f32 %v2552, %v2607
    %v2624 = vmul.f32 %v2554, %v2608
    %v2625 = vmul.f32 %v2556, %v2609
    %v2626 = vmul.f32 %v2558, %v2610
    %v2627 = vmul.f32 %v2560, %v2611
    %v2628 = vmul.f32 %v2562, %v2612
    %v2629 = vmul.f32 %v2564, %v2613
    %v2630 = vmul.f32 %v2566, %v2614
    %2631 = vrot.lane.b32.xlu0 %v459, 48
    %v2632 = vpop.permute.xlu0 %2631
    %2633 = vrot.lane.b32.xlu0 %v464, 48
    %v2634 = vpop.permute.xlu0 %2633
    %2635 = vrot.lane.b32.xlu0 %v469, 48
    %v2636 = vpop.permute.xlu0 %2635
    %2637 = vrot.lane.b32.xlu0 %v474, 48
    %v2638 = vpop.permute.xlu0 %2637
    %2639 = vrot.lane.b32.xlu0 %v479, 48
    %v2640 = vpop.permute.xlu0 %2639
    %2641 = vrot.lane.b32.xlu0 %v484, 48
    %v2642 = vpop.permute.xlu0 %2641
    %2643 = vrot.lane.b32.xlu0 %v489, 48
    %v2644 = vpop.permute.xlu0 %2643
    %2645 = vrot.lane.b32.xlu0 %v494, 48
    %v2646 = vpop.permute.xlu0 %2645
    %2647 = vrot.lane.b32.xlu0 %v499, 48
    %v2648 = vpop.permute.xlu0 %2647
    %2649 = vrot.lane.b32.xlu0 %v504, 48
    %v2650 = vpop.permute.xlu0 %2649
    %2651 = vrot.lane.b32.xlu0 %v509, 48
    %v2652 = vpop.permute.xlu0 %2651
    %2653 = vrot.lane.b32.xlu0 %v514, 48
    %v2654 = vpop.permute.xlu0 %2653
    %2655 = vrot.lane.b32.xlu0 %v519, 48
    %v2656 = vpop.permute.xlu0 %2655
    %2657 = vrot.lane.b32.xlu0 %v524, 48
    %v2658 = vpop.permute.xlu0 %2657
    %2659 = vrot.lane.b32.xlu0 %v529, 48
    %v2660 = vpop.permute.xlu0 %2659
    %2661 = vrot.lane.b32.xlu0 %v534, 48
    %v2662 = vpop.permute.xlu0 %2661
    %2679 = vmatprep.subr.mxu0 0.0
    %2680 = vmatpush1.msra.mxu0 %v2662
    %2681 = vmatprep.subr.mxu0 0.0
    %2682 = vmatpush1.msra.mxu0 %v2660
    %2683 = vmatprep.subr.mxu0 0.0
    %2684 = vmatpush1.msra.mxu0 %v2658
    %2685 = vmatprep.subr.mxu0 0.0
    %2686 = vmatpush1.msra.mxu0 %v2656
    %2687 = vmatprep.subr.mxu0 0.0
    %2688 = vmatpush1.msra.mxu0 %v2654
    %2689 = vmatprep.subr.mxu0 0.0
    %2690 = vmatpush1.msra.mxu0 %v2652
    %2691 = vmatprep.subr.mxu0 0.0
    %2692 = vmatpush1.msra.mxu0 %v2650
    %2693 = vmatprep.subr.mxu0 0.0
    %2694 = vmatpush1.msra.mxu0 %v2648
    %2695 = vmatprep.subr.mxu0 0.0
    %2696 = vmatpush1.msra.mxu0 %v2646
    %2697 = vmatprep.subr.mxu0 0.0
    %2698 = vmatpush1.msra.mxu0 %v2644
    %2699 = vmatprep.subr.mxu0 0.0
    %2700 = vmatpush1.msra.mxu0 %v2642
    %2701 = vmatprep.subr.mxu0 0.0
    %2702 = vmatpush1.msra.mxu0 %v2640
    %2703 = vmatprep.subr.mxu0 0.0
    %2704 = vmatpush1.msra.mxu0 %v2638
    %2705 = vmatprep.subr.mxu0 0.0
    %2706 = vmatpush1.msra.mxu0 %v2636
    %2707 = vmatprep.subr.mxu0 0.0
    %2708 = vmatpush1.msra.mxu0 %v2634
    %2709 = vmatprep.subr.mxu0 0.0
    %2710 = vmatpush1.msra.mxu0 %v2632
    %2711 = vmatprep.subr.mxu0 0.0
    %2712 = vmatpush2.msra.mxu0 0.0
    %2713 = vmatprep.subr.mxu0 0.0
    %2714 = vmatpush2.msra.mxu0 0.0
    %2715 = vmatprep.subr.mxu0 0.0
    %2716 = vmatpush2.msra.mxu0 0.0
    %2717 = vmatprep.subr.mxu0 0.0
    %2718 = vmatpush2.msra.mxu0 0.0
    %2719 = vmatprep.subr.mxu0 0.0
    %2720 = vmatpush2.msra.mxu0 0.0
    %2721 = vmatprep.subr.mxu0 0.0
    %2722 = vmatpush2.msra.mxu0 0.0
    %2723 = vmatprep.subr.mxu0 0.0
    %2724 = vmatpush2.msra.mxu0 0.0
    %2725 = vmatprep.subr.mxu0 0.0
    %2726 = vmatpush2.msra.mxu0 0.0
    %2727 = vmatprep.subr.mxu0 0.0
    %2728 = vmatpush2.msra.mxu0 0.0
    %2729 = vmatprep.subr.mxu0 0.0
    %2730 = vmatpush2.msra.mxu0 0.0
    %2731 = vmatprep.subr.mxu0 0.0
    %2732 = vmatpush2.msra.mxu0 0.0
    %2733 = vmatprep.subr.mxu0 0.0
    %2734 = vmatpush2.msra.mxu0 0.0
    %2735 = vmatprep.subr.mxu0 0.0
    %2736 = vmatpush2.msra.mxu0 0.0
    %2737 = vmatprep.subr.mxu0 0.0
    %2738 = vmatpush2.msra.mxu0 0.0
    %2739 = vmatprep.subr.mxu0 0.0
    %2740 = vmatpush2.msra.mxu0 0.0
    %2741 = vmatprep.subr.mxu0 0.0
    %2742 = vmatpush2.msra.mxu0 0.0
    %2743 = vmatprep.mubr.f32.mxu0 0.0
    %2744 = vmatmul.mubr.f32.gmra.mxu0 %v2615
    %v2745 = vpop.f32.mrf.mxu0
    %v2746 = vadd.f32 0.0, %v2745
    %v2747 = vpop.f32.mrf.mxu0
    %2748 = vmatprep.mubr.f32.mxu0 0.0
    %2749 = vmatmul.mubr.f32.gmra.mxu0 %v2616
    %v2750 = vpop.f32.mrf.mxu0
    %v2751 = vadd.f32 0.0, %v2750
    %v2752 = vpop.f32.mrf.mxu0
    %2753 = vmatprep.mubr.f32.mxu0 0.0
    %2754 = vmatmul.mubr.f32.gmra.mxu0 %v2617
    %v2755 = vpop.f32.mrf.mxu0
    %v2756 = vadd.f32 0.0, %v2755
    %v2757 = vpop.f32.mrf.mxu0
    %2758 = vmatprep.mubr.f32.mxu0 0.0
    %2759 = vmatmul.mubr.f32.gmra.mxu0 %v2618
    %v2760 = vpop.f32.mrf.mxu0
    %v2761 = vadd.f32 0.0, %v2760
    %v2762 = vpop.f32.mrf.mxu0
    %2763 = vmatprep.mubr.f32.mxu0 0.0
    %2764 = vmatmul.mubr.f32.gmra.mxu0 %v2619
    %v2765 = vpop.f32.mrf.mxu0
    %v2766 = vadd.f32 0.0, %v2765
    %v2767 = vpop.f32.mrf.mxu0
    %2768 = vmatprep.mubr.f32.mxu0 0.0
    %2769 = vmatmul.mubr.f32.gmra.mxu0 %v2620
    %v2770 = vpop.f32.mrf.mxu0
    %v2771 = vadd.f32 0.0, %v2770
    %v2772 = vpop.f32.mrf.mxu0
    %2773 = vmatprep.mubr.f32.mxu0 0.0
    %2774 = vmatmul.mubr.f32.gmra.mxu0 %v2621
    %v2775 = vpop.f32.mrf.mxu0
    %v2776 = vadd.f32 0.0, %v2775
    %v2777 = vpop.f32.mrf.mxu0
    %2778 = vmatprep.mubr.f32.mxu0 0.0
    %2779 = vmatmul.mubr.f32.gmra.mxu0 %v2622
    %v2780 = vpop.f32.mrf.mxu0
    %v2781 = vadd.f32 0.0, %v2780
    %v2782 = vpop.f32.mrf.mxu0
    %2783 = vmatprep.mubr.f32.mxu0 0.0
    %2784 = vmatmul.mubr.f32.gmra.mxu0 %v2623
    %v2785 = vpop.f32.mrf.mxu0
    %v2786 = vadd.f32 0.0, %v2785
    %v2787 = vpop.f32.mrf.mxu0
    %2788 = vmatprep.mubr.f32.mxu0 0.0
    %2789 = vmatmul.mubr.f32.gmra.mxu0 %v2624
    %v2790 = vpop.f32.mrf.mxu0
    %v2791 = vadd.f32 0.0, %v2790
    %v2792 = vpop.f32.mrf.mxu0
    %2793 = vmatprep.mubr.f32.mxu0 0.0
    %2794 = vmatmul.mubr.f32.gmra.mxu0 %v2625
    %v2795 = vpop.f32.mrf.mxu0
    %v2796 = vadd.f32 0.0, %v2795
    %v2797 = vpop.f32.mrf.mxu0
    %2798 = vmatprep.mubr.f32.mxu0 0.0
    %2799 = vmatmul.mubr.f32.gmra.mxu0 %v2626
    %v2800 = vpop.f32.mrf.mxu0
    %v2801 = vadd.f32 0.0, %v2800
    %v2802 = vpop.f32.mrf.mxu0
    %2803 = vmatprep.mubr.f32.mxu0 0.0
    %2804 = vmatmul.mubr.f32.gmra.mxu0 %v2627
    %v2805 = vpop.f32.mrf.mxu0
    %v2806 = vadd.f32 0.0, %v2805
    %v2807 = vpop.f32.mrf.mxu0
    %2808 = vmatprep.mubr.f32.mxu0 0.0
    %2809 = vmatmul.mubr.f32.gmra.mxu0 %v2628
    %v2810 = vpop.f32.mrf.mxu0
    %v2811 = vadd.f32 0.0, %v2810
    %v2812 = vpop.f32.mrf.mxu0
    %2813 = vmatprep.mubr.f32.mxu0 0.0
    %2814 = vmatmul.mubr.f32.gmra.mxu0 %v2629
    %v2815 = vpop.f32.mrf.mxu0
    %v2816 = vadd.f32 0.0, %v2815
    %v2817 = vpop.f32.mrf.mxu0
    %2818 = vmatprep.mubr.f32.mxu0 0.0
    %2819 = vmatmul.mubr.f32.gmra.mxu0 %v2630
    %v2820 = vpop.f32.mrf.mxu0
    %v2821 = vadd.f32 0.0, %v2820
    %v2822 = vpop.f32.mrf.mxu0
    %2823 = vdwg.mxu0
    %v2825 = vsel %vm621, %v2746, 0
    %v2828 = vsel %vm621, %v2751, 0
    %v2831 = vsel %vm621, %v2756, 0
    %v2834 = vsel %vm621, %v2761, 0
    %v2837 = vsel %vm621, %v2766, 0
    %v2840 = vsel %vm621, %v2771, 0
    %v2843 = vsel %vm621, %v2776, 0
    %v2846 = vsel %vm621, %v2781, 0
    %v2849 = vsel %vm621, %v2786, 0
    %v2852 = vsel %vm621, %v2791, 0
    %v2855 = vsel %vm621, %v2796, 0
    %v2858 = vsel %vm621, %v2801, 0
    %v2861 = vsel %vm621, %v2806, 0
    %v2864 = vsel %vm621, %v2811, 0
    %v2867 = vsel %vm621, %v2816, 0
    %v2870 = vsel %vm621, %v2821, 0
    %2872 = vmatprep.subr.mxu0 0.0
    %2873 = vmatpush1.msra.mxu0 0.0
    %2874 = vmatprep.subr.mxu0 0.0
    %2875 = vmatpush1.msra.mxu0 0.0
    %2876 = vmatprep.subr.mxu0 0.0
    %2877 = vmatpush1.msra.mxu0 0.0
    %2878 = vmatprep.subr.mxu0 0.0
    %2879 = vmatpush1.msra.mxu0 0.0
    %2880 = vmatprep.subr.mxu0 0.0
    %2881 = vmatpush1.msra.mxu0 0.0
    %2882 = vmatprep.subr.mxu0 0.0
    %2883 = vmatpush1.msra.mxu0 0.0
    %2884 = vmatprep.subr.mxu0 0.0
    %2885 = vmatpush1.msra.mxu0 0.0
    %2886 = vmatprep.subr.mxu0 0.0
    %2887 = vmatpush1.msra.mxu0 0.0
    %2888 = vmatprep.subr.mxu0 0.0
    %2889 = vmatpush1.msra.mxu0 0.0
    %2890 = vmatprep.subr.mxu0 0.0
    %2891 = vmatpush1.msra.mxu0 0.0
    %2892 = vmatprep.subr.mxu0 0.0
    %2893 = vmatpush1.msra.mxu0 0.0
    %2894 = vmatprep.subr.mxu0 0.0
    %2895 = vmatpush1.msra.mxu0 0.0
    %2896 = vmatprep.subr.mxu0 0.0
    %2897 = vmatpush1.msra.mxu0 0.0
    %2898 = vmatprep.subr.mxu0 0.0
    %2899 = vmatpush1.msra.mxu0 0.0
    %2900 = vmatprep.subr.mxu0 0.0
    %2901 = vmatpush1.msra.mxu0 0.0
    %2902 = vmatprep.subr.mxu0 0.0
    %2903 = vmatpush1.msra.mxu0 %v539
    %2904 = vmatprep.subr.mxu0 0.0
    %2905 = vmatpush2.msra.mxu0 0.0
    %2906 = vmatprep.subr.mxu0 0.0
    %2907 = vmatpush2.msra.mxu0 0.0
    %2908 = vmatprep.subr.mxu0 0.0
    %2909 = vmatpush2.msra.mxu0 0.0
    %2910 = vmatprep.subr.mxu0 0.0
    %2911 = vmatpush2.msra.mxu0 0.0
    %2912 = vmatprep.subr.mxu0 0.0
    %2913 = vmatpush2.msra.mxu0 0.0
    %2914 = vmatprep.subr.mxu0 0.0
    %2915 = vmatpush2.msra.mxu0 0.0
    %2916 = vmatprep.subr.mxu0 0.0
    %2917 = vmatpush2.msra.mxu0 0.0
    %2918 = vmatprep.subr.mxu0 0.0
    %2919 = vmatpush2.msra.mxu0 0.0
    %2920 = vmatprep.subr.mxu0 0.0
    %2921 = vmatpush2.msra.mxu0 0.0
    %2922 = vmatprep.subr.mxu0 0.0
    %2923 = vmatpush2.msra.mxu0 0.0
    %2924 = vmatprep.subr.mxu0 0.0
    %2925 = vmatpush2.msra.mxu0 0.0
    %2926 = vmatprep.subr.mxu0 0.0
    %2927 = vmatpush2.msra.mxu0 0.0
    %2928 = vmatprep.subr.mxu0 0.0
    %2929 = vmatpush2.msra.mxu0 0.0
    %2930 = vmatprep.subr.mxu0 0.0
    %2931 = vmatpush2.msra.mxu0 0.0
    %2932 = vmatprep.subr.mxu0 0.0
    %2933 = vmatpush2.msra.mxu0 0.0
    %2934 = vmatprep.subr.mxu0 0.0
    %2935 = vmatpush2.msra.mxu0 0.0
    %2936 = vmatprep.mubr.f32.mxu0 0.0
    %2937 = vmatmul.mubr.f32.gmra.mxu0 %v2825
    %v2938 = vpop.f32.mrf.mxu0
    %v2939 = vadd.f32 0.0, %v2938
    %v2940 = vpop.f32.mrf.mxu0
    %2941 = vmatprep.mubr.f32.mxu0 0.0
    %2942 = vmatmul.mubr.f32.gmra.mxu0 %v2828
    %v2943 = vpop.f32.mrf.mxu0
    %v2944 = vadd.f32 0.0, %v2943
    %v2945 = vpop.f32.mrf.mxu0
    %2946 = vmatprep.mubr.f32.mxu0 0.0
    %2947 = vmatmul.mubr.f32.gmra.mxu0 %v2831
    %v2948 = vpop.f32.mrf.mxu0
    %v2949 = vadd.f32 0.0, %v2948
    %v2950 = vpop.f32.mrf.mxu0
    %2951 = vmatprep.mubr.f32.mxu0 0.0
    %2952 = vmatmul.mubr.f32.gmra.mxu0 %v2834
    %v2953 = vpop.f32.mrf.mxu0
    %v2954 = vadd.f32 0.0, %v2953
    %v2955 = vpop.f32.mrf.mxu0
    %2956 = vmatprep.mubr.f32.mxu0 0.0
    %2957 = vmatmul.mubr.f32.gmra.mxu0 %v2837
    %v2958 = vpop.f32.mrf.mxu0
    %v2959 = vadd.f32 0.0, %v2958
    %v2960 = vpop.f32.mrf.mxu0
    %2961 = vmatprep.mubr.f32.mxu0 0.0
    %2962 = vmatmul.mubr.f32.gmra.mxu0 %v2840
    %v2963 = vpop.f32.mrf.mxu0
    %v2964 = vadd.f32 0.0, %v2963
    %v2965 = vpop.f32.mrf.mxu0
    %2966 = vmatprep.mubr.f32.mxu0 0.0
    %2967 = vmatmul.mubr.f32.gmra.mxu0 %v2843
    %v2968 = vpop.f32.mrf.mxu0
    %v2969 = vadd.f32 0.0, %v2968
    %v2970 = vpop.f32.mrf.mxu0
    %2971 = vmatprep.mubr.f32.mxu0 0.0
    %2972 = vmatmul.mubr.f32.gmra.mxu0 %v2846
    %v2973 = vpop.f32.mrf.mxu0
    %v2974 = vadd.f32 0.0, %v2973
    %v2975 = vpop.f32.mrf.mxu0
    %2976 = vmatprep.mubr.f32.mxu0 0.0
    %2977 = vmatmul.mubr.f32.gmra.mxu0 %v2849
    %v2978 = vpop.f32.mrf.mxu0
    %v2979 = vadd.f32 0.0, %v2978
    %v2980 = vpop.f32.mrf.mxu0
    %2981 = vmatprep.mubr.f32.mxu0 0.0
    %2982 = vmatmul.mubr.f32.gmra.mxu0 %v2852
    %v2983 = vpop.f32.mrf.mxu0
    %v2984 = vadd.f32 0.0, %v2983
    %v2985 = vpop.f32.mrf.mxu0
    %2986 = vmatprep.mubr.f32.mxu0 0.0
    %2987 = vmatmul.mubr.f32.gmra.mxu0 %v2855
    %v2988 = vpop.f32.mrf.mxu0
    %v2989 = vadd.f32 0.0, %v2988
    %v2990 = vpop.f32.mrf.mxu0
    %2991 = vmatprep.mubr.f32.mxu0 0.0
    %2992 = vmatmul.mubr.f32.gmra.mxu0 %v2858
    %v2993 = vpop.f32.mrf.mxu0
    %v2994 = vadd.f32 0.0, %v2993
    %v2995 = vpop.f32.mrf.mxu0
    %2996 = vmatprep.mubr.f32.mxu0 0.0
    %2997 = vmatmul.mubr.f32.gmra.mxu0 %v2861
    %v2998 = vpop.f32.mrf.mxu0
    %v2999 = vadd.f32 0.0, %v2998
    %v3000 = vpop.f32.mrf.mxu0
    %3001 = vmatprep.mubr.f32.mxu0 0.0
    %3002 = vmatmul.mubr.f32.gmra.mxu0 %v2864
    %v3003 = vpop.f32.mrf.mxu0
    %v3004 = vadd.f32 0.0, %v3003
    %v3005 = vpop.f32.mrf.mxu0
    %3006 = vmatprep.mubr.f32.mxu0 0.0
    %3007 = vmatmul.mubr.f32.gmra.mxu0 %v2867
    %v3008 = vpop.f32.mrf.mxu0
    %v3009 = vadd.f32 0.0, %v3008
    %v3010 = vpop.f32.mrf.mxu0
    %3011 = vmatprep.mubr.f32.mxu0 0.0
    %3012 = vmatmul.mubr.f32.gmra.mxu0 %v2870
    %v3013 = vpop.f32.mrf.mxu0
    %v3014 = vadd.f32 0.0, %v3013
    %v3015 = vpop.f32.mrf.mxu0
    %3016 = vdwg.mxu0
    %v3017 = vadd.f32 %v2119, %v2939
    %v3018 = vadd.f32 %v2124, %v2944
    %v3019 = vadd.f32 %v2129, %v2949
    %v3020 = vadd.f32 %v2134, %v2954
    %v3021 = vadd.f32 %v2139, %v2959
    %v3022 = vadd.f32 %v2144, %v2964
    %v3023 = vadd.f32 %v2149, %v2969
    %v3024 = vadd.f32 %v2154, %v2974
    %v3025 = vadd.f32 %v2159, %v2979
    %v3026 = vadd.f32 %v2164, %v2984
    %v3027 = vadd.f32 %v2169, %v2989
    %v3028 = vadd.f32 %v2174, %v2994
    %v3029 = vadd.f32 %v2179, %v2999
    %v3030 = vadd.f32 %v2184, %v3004
    %v3031 = vadd.f32 %v2189, %v3009
    %v3032 = vadd.f32 %v2194, %v3014
    %s3033 = scalar_lea.vmem [#allocation2], 384
    %v3034 = vld [vmem:[%s3033] sm:$0xff]
    %v3035 = vld [vmem:[%s3033 + $0x8] sm:$0xff]
    %v3036 = vld [vmem:[%s3033 + $0x10] sm:$0xff]
    %v3037 = vld [vmem:[%s3033 + $0x18] sm:$0xff]
    %v3038 = vld [vmem:[%s3033 + $0x20] sm:$0xff]
    %v3039 = vld [vmem:[%s3033 + $0x28] sm:$0xff]
    %v3040 = vld [vmem:[%s3033 + $0x30] sm:$0xff]
    %v3041 = vld [vmem:[%s3033 + $0x38] sm:$0xff]
    %v3042 = vld [vmem:[%s3033 + $0x40] sm:$0xff]
    %v3043 = vld [vmem:[%s3033 + $0x48] sm:$0xff]
    %v3044 = vld [vmem:[%s3033 + $0x50] sm:$0xff]
    %v3045 = vld [vmem:[%s3033 + $0x58] sm:$0xff]
    %v3046 = vld [vmem:[%s3033 + $0x60] sm:$0xff]
    %v3047 = vld [vmem:[%s3033 + $0x68] sm:$0xff]
    %v3048 = vld [vmem:[%s3033 + $0x70] sm:$0xff]
    %v3049 = vld [vmem:[%s3033 + $0x78] sm:$0xff]
    %3050 = vrot.lane.b32.xlu0 %v541, 104
    %v3051 = vpop.permute.xlu0 %3050
    %3052 = vrot.lane.b32.xlu0 %v542, 104
    %v3053 = vpop.permute.xlu0 %3052
    %3054 = vrot.lane.b32.xlu0 %v543, 104
    %v3055 = vpop.permute.xlu0 %3054
    %3056 = vrot.lane.b32.xlu0 %v544, 104
    %v3057 = vpop.permute.xlu0 %3056
    %3058 = vrot.lane.b32.xlu0 %v545, 104
    %v3059 = vpop.permute.xlu0 %3058
    %3060 = vrot.lane.b32.xlu0 %v546, 104
    %v3061 = vpop.permute.xlu0 %3060
    %3062 = vrot.lane.b32.xlu0 %v547, 104
    %v3063 = vpop.permute.xlu0 %3062
    %3064 = vrot.lane.b32.xlu0 %v548, 104
    %v3065 = vpop.permute.xlu0 %3064
    %3066 = vrot.lane.b32.xlu0 %v549, 104
    %v3067 = vpop.permute.xlu0 %3066
    %3068 = vrot.lane.b32.xlu0 %v550, 104
    %v3069 = vpop.permute.xlu0 %3068
    %3070 = vrot.lane.b32.xlu0 %v551, 104
    %v3071 = vpop.permute.xlu0 %3070
    %3072 = vrot.lane.b32.xlu0 %v552, 104
    %v3073 = vpop.permute.xlu0 %3072
    %3074 = vrot.lane.b32.xlu0 %v553, 104
    %v3075 = vpop.permute.xlu0 %3074
    %3076 = vrot.lane.b32.xlu0 %v554, 104
    %v3077 = vpop.permute.xlu0 %3076
    %3078 = vrot.lane.b32.xlu0 %v555, 104
    %v3079 = vpop.permute.xlu0 %3078
    %3080 = vrot.lane.b32.xlu0 %v556, 104
    %v3081 = vpop.permute.xlu0 %3080
    %3082 = vrot.lane.b32.xlu0 %v459, 72
    %v3083 = vpop.permute.xlu0 %3082
    %3084 = vrot.lane.b32.xlu0 %v464, 72
    %v3085 = vpop.permute.xlu0 %3084
    %3086 = vrot.lane.b32.xlu0 %v469, 72
    %v3087 = vpop.permute.xlu0 %3086
    %3088 = vrot.lane.b32.xlu0 %v474, 72
    %v3089 = vpop.permute.xlu0 %3088
    %3090 = vrot.lane.b32.xlu0 %v479, 72
    %v3091 = vpop.permute.xlu0 %3090
    %3092 = vrot.lane.b32.xlu0 %v484, 72
    %v3093 = vpop.permute.xlu0 %3092
    %3094 = vrot.lane.b32.xlu0 %v489, 72
    %v3095 = vpop.permute.xlu0 %3094
    %3096 = vrot.lane.b32.xlu0 %v494, 72
    %v3097 = vpop.permute.xlu0 %3096
    %3098 = vrot.lane.b32.xlu0 %v499, 72
    %v3099 = vpop.permute.xlu0 %3098
    %3100 = vrot.lane.b32.xlu0 %v504, 72
    %v3101 = vpop.permute.xlu0 %3100
    %3102 = vrot.lane.b32.xlu0 %v509, 72
    %v3103 = vpop.permute.xlu0 %3102
    %3104 = vrot.lane.b32.xlu0 %v514, 72
    %v3105 = vpop.permute.xlu0 %3104
    %3106 = vrot.lane.b32.xlu0 %v519, 72
    %v3107 = vpop.permute.xlu0 %3106
    %3108 = vrot.lane.b32.xlu0 %v524, 72
    %v3109 = vpop.permute.xlu0 %3108
    %3110 = vrot.lane.b32.xlu0 %v529, 72
    %v3111 = vpop.permute.xlu0 %3110
    %3112 = vrot.lane.b32.xlu0 %v534, 72
    %v3113 = vpop.permute.xlu0 %3112
    %v3114 = vsel %vm621, %v3051, 0
    %v3116 = vsel %vm621, %v3053, 0
    %v3118 = vsel %vm621, %v3055, 0
    %v3120 = vsel %vm621, %v3057, 0
    %v3122 = vsel %vm621, %v3059, 0
    %v3124 = vsel %vm621, %v3061, 0
    %v3126 = vsel %vm621, %v3063, 0
    %v3128 = vsel %vm621, %v3065, 0
    %v3130 = vsel %vm621, %v3067, 0
    %v3132 = vsel %vm621, %v3069, 0
    %v3134 = vsel %vm621, %v3071, 0
    %v3136 = vsel %vm621, %v3073, 0
    %v3138 = vsel %vm621, %v3075, 0
    %v3140 = vsel %vm621, %v3077, 0
    %v3142 = vsel %vm621, %v3079, 0
    %v3144 = vsel %vm621, %v3081, 0
    %v3146 = vsel %vm621, %v3083, 0
    %v3148 = vsel %vm621, %v3085, 0
    %v3150 = vsel %vm621, %v3087, 0
    %v3152 = vsel %vm621, %v3089, 0
    %v3154 = vsel %vm621, %v3091, 0
    %v3156 = vsel %vm621, %v3093, 0
    %v3158 = vsel %vm621, %v3095, 0
    %v3160 = vsel %vm621, %v3097, 0
    %v3162 = vsel %vm621, %v3099, 0
    %v3164 = vsel %vm621, %v3101, 0
    %v3166 = vsel %vm621, %v3103, 0
    %v3168 = vsel %vm621, %v3105, 0
    %v3170 = vsel %vm621, %v3107, 0
    %v3172 = vsel %vm621, %v3109, 0
    %v3174 = vsel %vm621, %v3111, 0
    %v3176 = vsel %vm621, %v3113, 0
    %3178 = vmatprep.subr.mxu0 0.0
    %3179 = vmatpush1.xpose.msra.mxu0 %v3176
    %3180 = vmatprep.subr.mxu0 0.0
    %3181 = vmatpush1.xpose.msra.mxu0 %v3174
    %3182 = vmatprep.subr.mxu0 0.0
    %3183 = vmatpush1.xpose.msra.mxu0 %v3172
    %3184 = vmatprep.subr.mxu0 0.0
    %3185 = vmatpush1.xpose.msra.mxu0 %v3170
    %3186 = vmatprep.subr.mxu0 0.0
    %3187 = vmatpush1.xpose.msra.mxu0 %v3168
    %3188 = vmatprep.subr.mxu0 0.0
    %3189 = vmatpush1.xpose.msra.mxu0 %v3166
    %3190 = vmatprep.subr.mxu0 0.0
    %3191 = vmatpush1.xpose.msra.mxu0 %v3164
    %3192 = vmatprep.subr.mxu0 0.0
    %3193 = vmatpush1.xpose.msra.mxu0 %v3162
    %3194 = vmatprep.subr.mxu0 0.0
    %3195 = vmatpush1.xpose.msra.mxu0 %v3160
    %3196 = vmatprep.subr.mxu0 0.0
    %3197 = vmatpush1.xpose.msra.mxu0 %v3158
    %3198 = vmatprep.subr.mxu0 0.0
    %3199 = vmatpush1.xpose.msra.mxu0 %v3156
    %3200 = vmatprep.subr.mxu0 0.0
    %3201 = vmatpush1.xpose.msra.mxu0 %v3154
    %3202 = vmatprep.subr.mxu0 0.0
    %3203 = vmatpush1.xpose.msra.mxu0 %v3152
    %3204 = vmatprep.subr.mxu0 0.0
    %3205 = vmatpush1.xpose.msra.mxu0 %v3150
    %3206 = vmatprep.subr.mxu0 0.0
    %3207 = vmatpush1.xpose.msra.mxu0 %v3148
    %3208 = vmatprep.subr.mxu0 0.0
    %3209 = vmatpush1.xpose.msra.mxu0 %v3146
    %3210 = vmatprep.subr.mxu0 0.0
    %3211 = vmatpush2.xpose.msra.mxu0 0.0
    %3212 = vmatprep.subr.mxu0 0.0
    %3213 = vmatpush2.xpose.msra.mxu0 0.0
    %3214 = vmatprep.subr.mxu0 0.0
    %3215 = vmatpush2.xpose.msra.mxu0 0.0
    %3216 = vmatprep.subr.mxu0 0.0
    %3217 = vmatpush2.xpose.msra.mxu0 0.0
    %3218 = vmatprep.subr.mxu0 0.0
    %3219 = vmatpush2.xpose.msra.mxu0 0.0
    %3220 = vmatprep.subr.mxu0 0.0
    %3221 = vmatpush2.xpose.msra.mxu0 0.0
    %3222 = vmatprep.subr.mxu0 0.0
    %3223 = vmatpush2.xpose.msra.mxu0 0.0
    %3224 = vmatprep.subr.mxu0 0.0
    %3225 = vmatpush2.xpose.msra.mxu0 0.0
    %3226 = vmatprep.subr.mxu0 0.0
    %3227 = vmatpush2.xpose.msra.mxu0 0.0
    %3228 = vmatprep.subr.mxu0 0.0
    %3229 = vmatpush2.xpose.msra.mxu0 0.0
    %3230 = vmatprep.subr.mxu0 0.0
    %3231 = vmatpush2.xpose.msra.mxu0 0.0
    %3232 = vmatprep.subr.mxu0 0.0
    %3233 = vmatpush2.xpose.msra.mxu0 0.0
    %3234 = vmatprep.subr.mxu0 0.0
    %3235 = vmatpush2.xpose.msra.mxu0 0.0
    %3236 = vmatprep.subr.mxu0 0.0
    %3237 = vmatpush2.xpose.msra.mxu0 0.0
    %3238 = vmatprep.subr.mxu0 0.0
    %3239 = vmatpush2.xpose.msra.mxu0 0.0
    %3240 = vmatprep.subr.mxu0 0.0
    %3241 = vmatpush2.xpose.msra.mxu0 0.0
    %3242 = vmatprep.mubr.f32.mxu0 0.0
    %3243 = vmatmul.mubr.f32.gmra.mxu0 %v3114
    %v3244 = vpop.f32.mrf.mxu0
    %v3245 = vadd.f32 %v3034, %v3244
    %v3246 = vpop.f32.mrf.mxu0
    %3247 = vmatprep.mubr.f32.mxu0 0.0
    %3248 = vmatmul.mubr.f32.gmra.mxu0 %v3116
    %v3249 = vpop.f32.mrf.mxu0
    %v3250 = vadd.f32 %v3035, %v3249
    %v3251 = vpop.f32.mrf.mxu0
    %3252 = vmatprep.mubr.f32.mxu0 0.0
    %3253 = vmatmul.mubr.f32.gmra.mxu0 %v3118
    %v3254 = vpop.f32.mrf.mxu0
    %v3255 = vadd.f32 %v3036, %v3254
    %v3256 = vpop.f32.mrf.mxu0
    %3257 = vmatprep.mubr.f32.mxu0 0.0
    %3258 = vmatmul.mubr.f32.gmra.mxu0 %v3120
    %v3259 = vpop.f32.mrf.mxu0
    %v3260 = vadd.f32 %v3037, %v3259
    %v3261 = vpop.f32.mrf.mxu0
    %3262 = vmatprep.mubr.f32.mxu0 0.0
    %3263 = vmatmul.mubr.f32.gmra.mxu0 %v3122
    %v3264 = vpop.f32.mrf.mxu0
    %v3265 = vadd.f32 %v3038, %v3264
    %v3266 = vpop.f32.mrf.mxu0
    %3267 = vmatprep.mubr.f32.mxu0 0.0
    %3268 = vmatmul.mubr.f32.gmra.mxu0 %v3124
    %v3269 = vpop.f32.mrf.mxu0
    %v3270 = vadd.f32 %v3039, %v3269
    %v3271 = vpop.f32.mrf.mxu0
    %3272 = vmatprep.mubr.f32.mxu0 0.0
    %3273 = vmatmul.mubr.f32.gmra.mxu0 %v3126
    %v3274 = vpop.f32.mrf.mxu0
    %v3275 = vadd.f32 %v3040, %v3274
    %v3276 = vpop.f32.mrf.mxu0
    %3277 = vmatprep.mubr.f32.mxu0 0.0
    %3278 = vmatmul.mubr.f32.gmra.mxu0 %v3128
    %v3279 = vpop.f32.mrf.mxu0
    %v3280 = vadd.f32 %v3041, %v3279
    %v3281 = vpop.f32.mrf.mxu0
    %3282 = vmatprep.mubr.f32.mxu0 0.0
    %3283 = vmatmul.mubr.f32.gmra.mxu0 %v3130
    %v3284 = vpop.f32.mrf.mxu0
    %v3285 = vadd.f32 %v3042, %v3284
    %v3286 = vpop.f32.mrf.mxu0
    %3287 = vmatprep.mubr.f32.mxu0 0.0
    %3288 = vmatmul.mubr.f32.gmra.mxu0 %v3132
    %v3289 = vpop.f32.mrf.mxu0
    %v3290 = vadd.f32 %v3043, %v3289
    %v3291 = vpop.f32.mrf.mxu0
    %3292 = vmatprep.mubr.f32.mxu0 0.0
    %3293 = vmatmul.mubr.f32.gmra.mxu0 %v3134
    %v3294 = vpop.f32.mrf.mxu0
    %v3295 = vadd.f32 %v3044, %v3294
    %v3296 = vpop.f32.mrf.mxu0
    %3297 = vmatprep.mubr.f32.mxu0 0.0
    %3298 = vmatmul.mubr.f32.gmra.mxu0 %v3136
    %v3299 = vpop.f32.mrf.mxu0
    %v3300 = vadd.f32 %v3045, %v3299
    %v3301 = vpop.f32.mrf.mxu0
    %3302 = vmatprep.mubr.f32.mxu0 0.0
    %3303 = vmatmul.mubr.f32.gmra.mxu0 %v3138
    %v3304 = vpop.f32.mrf.mxu0
    %v3305 = vadd.f32 %v3046, %v3304
    %v3306 = vpop.f32.mrf.mxu0
    %3307 = vmatprep.mubr.f32.mxu0 0.0
    %3308 = vmatmul.mubr.f32.gmra.mxu0 %v3140
    %v3309 = vpop.f32.mrf.mxu0
    %v3310 = vadd.f32 %v3047, %v3309
    %v3311 = vpop.f32.mrf.mxu0
    %3312 = vmatprep.mubr.f32.mxu0 0.0
    %3313 = vmatmul.mubr.f32.gmra.mxu0 %v3142
    %v3314 = vpop.f32.mrf.mxu0
    %v3315 = vadd.f32 %v3048, %v3314
    %v3316 = vpop.f32.mrf.mxu0
    %3317 = vmatprep.mubr.f32.mxu0 0.0
    %3318 = vmatmul.mubr.f32.gmra.mxu0 %v3144
    %v3319 = vpop.f32.mrf.mxu0
    %v3320 = vadd.f32 %v3049, %v3319
    %v3321 = vpop.f32.mrf.mxu0
    %3322 = vdwg.mxu0
    %3323 = vmax.xlane.f32.xlu0 %v3245
    %v3324 = vpop.xlane.xlu0 %3323
    %3325 = vmax.xlane.f32.xlu0 %v3250
    %v3326 = vpop.xlane.xlu0 %3325
    %3327 = vmax.xlane.f32.xlu0 %v3255
    %v3328 = vpop.xlane.xlu0 %3327
    %3329 = vmax.xlane.f32.xlu0 %v3260
    %v3330 = vpop.xlane.xlu0 %3329
    %3331 = vmax.xlane.f32.xlu0 %v3265
    %v3332 = vpop.xlane.xlu0 %3331
    %3333 = vmax.xlane.f32.xlu0 %v3270
    %v3334 = vpop.xlane.xlu0 %3333
    %3335 = vmax.xlane.f32.xlu0 %v3275
    %v3336 = vpop.xlane.xlu0 %3335
    %3337 = vmax.xlane.f32.xlu0 %v3280
    %v3338 = vpop.xlane.xlu0 %3337
    %3339 = vmax.xlane.f32.xlu0 %v3285
    %v3340 = vpop.xlane.xlu0 %3339
    %3341 = vmax.xlane.f32.xlu0 %v3290
    %v3342 = vpop.xlane.xlu0 %3341
    %3343 = vmax.xlane.f32.xlu0 %v3295
    %v3344 = vpop.xlane.xlu0 %3343
    %3345 = vmax.xlane.f32.xlu0 %v3300
    %v3346 = vpop.xlane.xlu0 %3345
    %3347 = vmax.xlane.f32.xlu0 %v3305
    %v3348 = vpop.xlane.xlu0 %3347
    %3349 = vmax.xlane.f32.xlu0 %v3310
    %v3350 = vpop.xlane.xlu0 %3349
    %3351 = vmax.xlane.f32.xlu0 %v3315
    %v3352 = vpop.xlane.xlu0 %3351
    %3353 = vmax.xlane.f32.xlu0 %v3320
    %v3354 = vpop.xlane.xlu0 %3353
    %v3355 = vsub.f32 %v3245, %v3324
    %v3356 = vsub.f32 %v3250, %v3326
    %v3357 = vsub.f32 %v3255, %v3328
    %v3358 = vsub.f32 %v3260, %v3330
    %v3359 = vsub.f32 %v3265, %v3332
    %v3360 = vsub.f32 %v3270, %v3334
    %v3361 = vsub.f32 %v3275, %v3336
    %v3362 = vsub.f32 %v3280, %v3338
    %v3363 = vsub.f32 %v3285, %v3340
    %v3364 = vsub.f32 %v3290, %v3342
    %v3365 = vsub.f32 %v3295, %v3344
    %v3366 = vsub.f32 %v3300, %v3346
    %v3367 = vsub.f32 %v3305, %v3348
    %v3368 = vsub.f32 %v3310, %v3350
    %v3369 = vsub.f32 %v3315, %v3352
    %v3370 = vsub.f32 %v3320, %v3354
    %v3371 = vmul.f32 %v3355, 1.442695
    %v3372 = vpow.pop %v3371
    %v3373 = vmul.f32 %v3356, 1.442695
    %v3374 = vpow.pop %v3373
    %v3375 = vmul.f32 %v3357, 1.442695
    %v3376 = vpow.pop %v3375
    %v3377 = vmul.f32 %v3358, 1.442695
    %v3378 = vpow.pop %v3377
    %v3379 = vmul.f32 %v3359, 1.442695
    %v3380 = vpow.pop %v3379
    %v3381 = vmul.f32 %v3360, 1.442695
    %v3382 = vpow.pop %v3381
    %v3383 = vmul.f32 %v3361, 1.442695
    %v3384 = vpow.pop %v3383
    %v3385 = vmul.f32 %v3362, 1.442695
    %v3386 = vpow.pop %v3385
    %v3387 = vmul.f32 %v3363, 1.442695
    %v3388 = vpow.pop %v3387
    %v3389 = vmul.f32 %v3364, 1.442695
    %v3390 = vpow.pop %v3389
    %v3391 = vmul.f32 %v3365, 1.442695
    %v3392 = vpow.pop %v3391
    %v3393 = vmul.f32 %v3366, 1.442695
    %v3394 = vpow.pop %v3393
    %v3395 = vmul.f32 %v3367, 1.442695
    %v3396 = vpow.pop %v3395
    %v3397 = vmul.f32 %v3368, 1.442695
    %v3398 = vpow.pop %v3397
    %v3399 = vmul.f32 %v3369, 1.442695
    %v3400 = vpow.pop %v3399
    %v3401 = vmul.f32 %v3370, 1.442695
    %v3402 = vpow.pop %v3401
    %3403 = vadd.xlane.f32.xlu0 %v3372
    %v3404 = vpop.xlane.xlu0 %3403
    %3405 = vadd.xlane.f32.xlu0 %v3374
    %v3406 = vpop.xlane.xlu0 %3405
    %3407 = vadd.xlane.f32.xlu0 %v3376
    %v3408 = vpop.xlane.xlu0 %3407
    %3409 = vadd.xlane.f32.xlu0 %v3378
    %v3410 = vpop.xlane.xlu0 %3409
    %3411 = vadd.xlane.f32.xlu0 %v3380
    %v3412 = vpop.xlane.xlu0 %3411
    %3413 = vadd.xlane.f32.xlu0 %v3382
    %v3414 = vpop.xlane.xlu0 %3413
    %3415 = vadd.xlane.f32.xlu0 %v3384
    %v3416 = vpop.xlane.xlu0 %3415
    %3417 = vadd.xlane.f32.xlu0 %v3386
    %v3418 = vpop.xlane.xlu0 %3417
    %3419 = vadd.xlane.f32.xlu0 %v3388
    %v3420 = vpop.xlane.xlu0 %3419
    %3421 = vadd.xlane.f32.xlu0 %v3390
    %v3422 = vpop.xlane.xlu0 %3421
    %3423 = vadd.xlane.f32.xlu0 %v3392
    %v3424 = vpop.xlane.xlu0 %3423
    %3425 = vadd.xlane.f32.xlu0 %v3394
    %v3426 = vpop.xlane.xlu0 %3425
    %3427 = vadd.xlane.f32.xlu0 %v3396
    %v3428 = vpop.xlane.xlu0 %3427
    %3429 = vadd.xlane.f32.xlu0 %v3398
    %v3430 = vpop.xlane.xlu0 %3429
    %3431 = vadd.xlane.f32.xlu0 %v3400
    %v3432 = vpop.xlane.xlu0 %3431
    %3433 = vadd.xlane.f32.xlu0 %v3402
    %v3434 = vpop.xlane.xlu0 %3433
    %v3435 = vrcp.pop %v3404
    %v3436 = vrcp.pop %v3406
    %v3437 = vrcp.pop %v3408
    %v3438 = vrcp.pop %v3410
    %v3439 = vrcp.pop %v3412
    %v3440 = vrcp.pop %v3414
    %v3441 = vrcp.pop %v3416
    %v3442 = vrcp.pop %v3418
    %v3443 = vrcp.pop %v3420
    %v3444 = vrcp.pop %v3422
    %v3445 = vrcp.pop %v3424
    %v3446 = vrcp.pop %v3426
    %v3447 = vrcp.pop %v3428
    %v3448 = vrcp.pop %v3430
    %v3449 = vrcp.pop %v3432
    %v3450 = vrcp.pop %v3434
    %v3451 = vmul.f32 %v3372, %v3435
    %v3452 = vmul.f32 %v3374, %v3436
    %v3453 = vmul.f32 %v3376, %v3437
    %v3454 = vmul.f32 %v3378, %v3438
    %v3455 = vmul.f32 %v3380, %v3439
    %v3456 = vmul.f32 %v3382, %v3440
    %v3457 = vmul.f32 %v3384, %v3441
    %v3458 = vmul.f32 %v3386, %v3442
    %v3459 = vmul.f32 %v3388, %v3443
    %v3460 = vmul.f32 %v3390, %v3444
    %v3461 = vmul.f32 %v3392, %v3445
    %v3462 = vmul.f32 %v3394, %v3446
    %v3463 = vmul.f32 %v3396, %v3447
    %v3464 = vmul.f32 %v3398, %v3448
    %v3465 = vmul.f32 %v3400, %v3449
    %v3466 = vmul.f32 %v3402, %v3450
    %3467 = vrot.lane.b32.xlu0 %v459, 40
    %v3468 = vpop.permute.xlu0 %3467
    %3469 = vrot.lane.b32.xlu0 %v464, 40
    %v3470 = vpop.permute.xlu0 %3469
    %3471 = vrot.lane.b32.xlu0 %v469, 40
    %v3472 = vpop.permute.xlu0 %3471
    %3473 = vrot.lane.b32.xlu0 %v474, 40
    %v3474 = vpop.permute.xlu0 %3473
    %3475 = vrot.lane.b32.xlu0 %v479, 40
    %v3476 = vpop.permute.xlu0 %3475
    %3477 = vrot.lane.b32.xlu0 %v484, 40
    %v3478 = vpop.permute.xlu0 %3477
    %3479 = vrot.lane.b32.xlu0 %v489, 40
    %v3480 = vpop.permute.xlu0 %3479
    %3481 = vrot.lane.b32.xlu0 %v494, 40
    %v3482 = vpop.permute.xlu0 %3481
    %3483 = vrot.lane.b32.xlu0 %v499, 40
    %v3484 = vpop.permute.xlu0 %3483
    %3485 = vrot.lane.b32.xlu0 %v504, 40
    %v3486 = vpop.permute.xlu0 %3485
    %3487 = vrot.lane.b32.xlu0 %v509, 40
    %v3488 = vpop.permute.xlu0 %3487
    %3489 = vrot.lane.b32.xlu0 %v514, 40
    %v3490 = vpop.permute.xlu0 %3489
    %3491 = vrot.lane.b32.xlu0 %v519, 40
    %v3492 = vpop.permute.xlu0 %3491
    %3493 = vrot.lane.b32.xlu0 %v524, 40
    %v3494 = vpop.permute.xlu0 %3493
    %3495 = vrot.lane.b32.xlu0 %v529, 40
    %v3496 = vpop.permute.xlu0 %3495
    %3497 = vrot.lane.b32.xlu0 %v534, 40
    %v3498 = vpop.permute.xlu0 %3497
    %3515 = vmatprep.subr.mxu0 0.0
    %3516 = vmatpush1.msra.mxu0 %v3498
    %3517 = vmatprep.subr.mxu0 0.0
    %3518 = vmatpush1.msra.mxu0 %v3496
    %3519 = vmatprep.subr.mxu0 0.0
    %3520 = vmatpush1.msra.mxu0 %v3494
    %3521 = vmatprep.subr.mxu0 0.0
    %3522 = vmatpush1.msra.mxu0 %v3492
    %3523 = vmatprep.subr.mxu0 0.0
    %3524 = vmatpush1.msra.mxu0 %v3490
    %3525 = vmatprep.subr.mxu0 0.0
    %3526 = vmatpush1.msra.mxu0 %v3488
    %3527 = vmatprep.subr.mxu0 0.0
    %3528 = vmatpush1.msra.mxu0 %v3486
    %3529 = vmatprep.subr.mxu0 0.0
    %3530 = vmatpush1.msra.mxu0 %v3484
    %3531 = vmatprep.subr.mxu0 0.0
    %3532 = vmatpush1.msra.mxu0 %v3482
    %3533 = vmatprep.subr.mxu0 0.0
    %3534 = vmatpush1.msra.mxu0 %v3480
    %3535 = vmatprep.subr.mxu0 0.0
    %3536 = vmatpush1.msra.mxu0 %v3478
    %3537 = vmatprep.subr.mxu0 0.0
    %3538 = vmatpush1.msra.mxu0 %v3476
    %3539 = vmatprep.subr.mxu0 0.0
    %3540 = vmatpush1.msra.mxu0 %v3474
    %3541 = vmatprep.subr.mxu0 0.0
    %3542 = vmatpush1.msra.mxu0 %v3472
    %3543 = vmatprep.subr.mxu0 0.0
    %3544 = vmatpush1.msra.mxu0 %v3470
    %3545 = vmatprep.subr.mxu0 0.0
    %3546 = vmatpush1.msra.mxu0 %v3468
    %3547 = vmatprep.subr.mxu0 0.0
    %3548 = vmatpush2.msra.mxu0 0.0
    %3549 = vmatprep.subr.mxu0 0.0
    %3550 = vmatpush2.msra.mxu0 0.0
    %3551 = vmatprep.subr.mxu0 0.0
    %3552 = vmatpush2.msra.mxu0 0.0
    %3553 = vmatprep.subr.mxu0 0.0
    %3554 = vmatpush2.msra.mxu0 0.0
    %3555 = vmatprep.subr.mxu0 0.0
    %3556 = vmatpush2.msra.mxu0 0.0
    %3557 = vmatprep.subr.mxu0 0.0
    %3558 = vmatpush2.msra.mxu0 0.0
    %3559 = vmatprep.subr.mxu0 0.0
    %3560 = vmatpush2.msra.mxu0 0.0
    %3561 = vmatprep.subr.mxu0 0.0
    %3562 = vmatpush2.msra.mxu0 0.0
    %3563 = vmatprep.subr.mxu0 0.0
    %3564 = vmatpush2.msra.mxu0 0.0
    %3565 = vmatprep.subr.mxu0 0.0
    %3566 = vmatpush2.msra.mxu0 0.0
    %3567 = vmatprep.subr.mxu0 0.0
    %3568 = vmatpush2.msra.mxu0 0.0
    %3569 = vmatprep.subr.mxu0 0.0
    %3570 = vmatpush2.msra.mxu0 0.0
    %3571 = vmatprep.subr.mxu0 0.0
    %3572 = vmatpush2.msra.mxu0 0.0
    %3573 = vmatprep.subr.mxu0 0.0
    %3574 = vmatpush2.msra.mxu0 0.0
    %3575 = vmatprep.subr.mxu0 0.0
    %3576 = vmatpush2.msra.mxu0 0.0
    %3577 = vmatprep.subr.mxu0 0.0
    %3578 = vmatpush2.msra.mxu0 0.0
    %3579 = vmatprep.mubr.f32.mxu0 0.0
    %3580 = vmatmul.mubr.f32.gmra.mxu0 %v3451
    %v3581 = vpop.f32.mrf.mxu0
    %v3582 = vadd.f32 0.0, %v3581
    %v3583 = vpop.f32.mrf.mxu0
    %3584 = vmatprep.mubr.f32.mxu0 0.0
    %3585 = vmatmul.mubr.f32.gmra.mxu0 %v3452
    %v3586 = vpop.f32.mrf.mxu0
    %v3587 = vadd.f32 0.0, %v3586
    %v3588 = vpop.f32.mrf.mxu0
    %3589 = vmatprep.mubr.f32.mxu0 0.0
    %3590 = vmatmul.mubr.f32.gmra.mxu0 %v3453
    %v3591 = vpop.f32.mrf.mxu0
    %v3592 = vadd.f32 0.0, %v3591
    %v3593 = vpop.f32.mrf.mxu0
    %3594 = vmatprep.mubr.f32.mxu0 0.0
    %3595 = vmatmul.mubr.f32.gmra.mxu0 %v3454
    %v3596 = vpop.f32.mrf.mxu0
    %v3597 = vadd.f32 0.0, %v3596
    %v3598 = vpop.f32.mrf.mxu0
    %3599 = vmatprep.mubr.f32.mxu0 0.0
    %3600 = vmatmul.mubr.f32.gmra.mxu0 %v3455
    %v3601 = vpop.f32.mrf.mxu0
    %v3602 = vadd.f32 0.0, %v3601
    %v3603 = vpop.f32.mrf.mxu0
    %3604 = vmatprep.mubr.f32.mxu0 0.0
    %3605 = vmatmul.mubr.f32.gmra.mxu0 %v3456
    %v3606 = vpop.f32.mrf.mxu0
    %v3607 = vadd.f32 0.0, %v3606
    %v3608 = vpop.f32.mrf.mxu0
    %3609 = vmatprep.mubr.f32.mxu0 0.0
    %3610 = vmatmul.mubr.f32.gmra.mxu0 %v3457
    %v3611 = vpop.f32.mrf.mxu0
    %v3612 = vadd.f32 0.0, %v3611
    %v3613 = vpop.f32.mrf.mxu0
    %3614 = vmatprep.mubr.f32.mxu0 0.0
    %3615 = vmatmul.mubr.f32.gmra.mxu0 %v3458
    %v3616 = vpop.f32.mrf.mxu0
    %v3617 = vadd.f32 0.0, %v3616
    %v3618 = vpop.f32.mrf.mxu0
    %3619 = vmatprep.mubr.f32.mxu0 0.0
    %3620 = vmatmul.mubr.f32.gmra.mxu0 %v3459
    %v3621 = vpop.f32.mrf.mxu0
    %v3622 = vadd.f32 0.0, %v3621
    %v3623 = vpop.f32.mrf.mxu0
    %3624 = vmatprep.mubr.f32.mxu0 0.0
    %3625 = vmatmul.mubr.f32.gmra.mxu0 %v3460
    %v3626 = vpop.f32.mrf.mxu0
    %v3627 = vadd.f32 0.0, %v3626
    %v3628 = vpop.f32.mrf.mxu0
    %3629 = vmatprep.mubr.f32.mxu0 0.0
    %3630 = vmatmul.mubr.f32.gmra.mxu0 %v3461
    %v3631 = vpop.f32.mrf.mxu0
    %v3632 = vadd.f32 0.0, %v3631
    %v3633 = vpop.f32.mrf.mxu0
    %3634 = vmatprep.mubr.f32.mxu0 0.0
    %3635 = vmatmul.mubr.f32.gmra.mxu0 %v3462
    %v3636 = vpop.f32.mrf.mxu0
    %v3637 = vadd.f32 0.0, %v3636
    %v3638 = vpop.f32.mrf.mxu0
    %3639 = vmatprep.mubr.f32.mxu0 0.0
    %3640 = vmatmul.mubr.f32.gmra.mxu0 %v3463
    %v3641 = vpop.f32.mrf.mxu0
    %v3642 = vadd.f32 0.0, %v3641
    %v3643 = vpop.f32.mrf.mxu0
    %3644 = vmatprep.mubr.f32.mxu0 0.0
    %3645 = vmatmul.mubr.f32.gmra.mxu0 %v3464
    %v3646 = vpop.f32.mrf.mxu0
    %v3647 = vadd.f32 0.0, %v3646
    %v3648 = vpop.f32.mrf.mxu0
    %3649 = vmatprep.mubr.f32.mxu0 0.0
    %3650 = vmatmul.mubr.f32.gmra.mxu0 %v3465
    %v3651 = vpop.f32.mrf.mxu0
    %v3652 = vadd.f32 0.0, %v3651
    %v3653 = vpop.f32.mrf.mxu0
    %3654 = vmatprep.mubr.f32.mxu0 0.0
    %3655 = vmatmul.mubr.f32.gmra.mxu0 %v3466
    %v3656 = vpop.f32.mrf.mxu0
    %v3657 = vadd.f32 0.0, %v3656
    %v3658 = vpop.f32.mrf.mxu0
    %3659 = vdwg.mxu0
    %v3661 = vsel %vm621, %v3582, 0
    %v3664 = vsel %vm621, %v3587, 0
    %v3667 = vsel %vm621, %v3592, 0
    %v3670 = vsel %vm621, %v3597, 0
    %v3673 = vsel %vm621, %v3602, 0
    %v3676 = vsel %vm621, %v3607, 0
    %v3679 = vsel %vm621, %v3612, 0
    %v3682 = vsel %vm621, %v3617, 0
    %v3685 = vsel %vm621, %v3622, 0
    %v3688 = vsel %vm621, %v3627, 0
    %v3691 = vsel %vm621, %v3632, 0
    %v3694 = vsel %vm621, %v3637, 0
    %v3697 = vsel %vm621, %v3642, 0
    %v3700 = vsel %vm621, %v3647, 0
    %v3703 = vsel %vm621, %v3652, 0
    %v3706 = vsel %vm621, %v3657, 0
    %3708 = vmatprep.subr.mxu0 0.0
    %3709 = vmatpush1.msra.mxu0 0.0
    %3710 = vmatprep.subr.mxu0 0.0
    %3711 = vmatpush1.msra.mxu0 0.0
    %3712 = vmatprep.subr.mxu0 0.0
    %3713 = vmatpush1.msra.mxu0 0.0
    %3714 = vmatprep.subr.mxu0 0.0
    %3715 = vmatpush1.msra.mxu0 0.0
    %3716 = vmatprep.subr.mxu0 0.0
    %3717 = vmatpush1.msra.mxu0 0.0
    %3718 = vmatprep.subr.mxu0 0.0
    %3719 = vmatpush1.msra.mxu0 0.0
    %3720 = vmatprep.subr.mxu0 0.0
    %3721 = vmatpush1.msra.mxu0 0.0
    %3722 = vmatprep.subr.mxu0 0.0
    %3723 = vmatpush1.msra.mxu0 0.0
    %3724 = vmatprep.subr.mxu0 0.0
    %3725 = vmatpush1.msra.mxu0 0.0
    %3726 = vmatprep.subr.mxu0 0.0
    %3727 = vmatpush1.msra.mxu0 0.0
    %3728 = vmatprep.subr.mxu0 0.0
    %3729 = vmatpush1.msra.mxu0 0.0
    %3730 = vmatprep.subr.mxu0 0.0
    %3731 = vmatpush1.msra.mxu0 0.0
    %3732 = vmatprep.subr.mxu0 0.0
    %3733 = vmatpush1.msra.mxu0 0.0
    %3734 = vmatprep.subr.mxu0 0.0
    %3735 = vmatpush1.msra.mxu0 0.0
    %3736 = vmatprep.subr.mxu0 0.0
    %3737 = vmatpush1.msra.mxu0 0.0
    %3738 = vmatprep.subr.mxu0 0.0
    %3739 = vmatpush1.msra.mxu0 %v540
    %3740 = vmatprep.subr.mxu0 0.0
    %3741 = vmatpush2.msra.mxu0 0.0
    %3742 = vmatprep.subr.mxu0 0.0
    %3743 = vmatpush2.msra.mxu0 0.0
    %3744 = vmatprep.subr.mxu0 0.0
    %3745 = vmatpush2.msra.mxu0 0.0
    %3746 = vmatprep.subr.mxu0 0.0
    %3747 = vmatpush2.msra.mxu0 0.0
    %3748 = vmatprep.subr.mxu0 0.0
    %3749 = vmatpush2.msra.mxu0 0.0
    %3750 = vmatprep.subr.mxu0 0.0
    %3751 = vmatpush2.msra.mxu0 0.0
    %3752 = vmatprep.subr.mxu0 0.0
    %3753 = vmatpush2.msra.mxu0 0.0
    %3754 = vmatprep.subr.mxu0 0.0
    %3755 = vmatpush2.msra.mxu0 0.0
    %3756 = vmatprep.subr.mxu0 0.0
    %3757 = vmatpush2.msra.mxu0 0.0
    %3758 = vmatprep.subr.mxu0 0.0
    %3759 = vmatpush2.msra.mxu0 0.0
    %3760 = vmatprep.subr.mxu0 0.0
    %3761 = vmatpush2.msra.mxu0 0.0
    %3762 = vmatprep.subr.mxu0 0.0
    %3763 = vmatpush2.msra.mxu0 0.0
    %3764 = vmatprep.subr.mxu0 0.0
    %3765 = vmatpush2.msra.mxu0 0.0
    %3766 = vmatprep.subr.mxu0 0.0
    %3767 = vmatpush2.msra.mxu0 0.0
    %3768 = vmatprep.subr.mxu0 0.0
    %3769 = vmatpush2.msra.mxu0 0.0
    %3770 = vmatprep.subr.mxu0 0.0
    %3771 = vmatpush2.msra.mxu0 0.0
    %3772 = vmatprep.mubr.f32.mxu0 0.0
    %3773 = vmatmul.mubr.f32.gmra.mxu0 %v3661
    %v3774 = vpop.f32.mrf.mxu0
    %v3775 = vadd.f32 0.0, %v3774
    %v3776 = vpop.f32.mrf.mxu0
    %3777 = vmatprep.mubr.f32.mxu0 0.0
    %3778 = vmatmul.mubr.f32.gmra.mxu0 %v3664
    %v3779 = vpop.f32.mrf.mxu0
    %v3780 = vadd.f32 0.0, %v3779
    %v3781 = vpop.f32.mrf.mxu0
    %3782 = vmatprep.mubr.f32.mxu0 0.0
    %3783 = vmatmul.mubr.f32.gmra.mxu0 %v3667
    %v3784 = vpop.f32.mrf.mxu0
    %v3785 = vadd.f32 0.0, %v3784
    %v3786 = vpop.f32.mrf.mxu0
    %3787 = vmatprep.mubr.f32.mxu0 0.0
    %3788 = vmatmul.mubr.f32.gmra.mxu0 %v3670
    %v3789 = vpop.f32.mrf.mxu0
    %v3790 = vadd.f32 0.0, %v3789
    %v3791 = vpop.f32.mrf.mxu0
    %3792 = vmatprep.mubr.f32.mxu0 0.0
    %3793 = vmatmul.mubr.f32.gmra.mxu0 %v3673
    %v3794 = vpop.f32.mrf.mxu0
    %v3795 = vadd.f32 0.0, %v3794
    %v3796 = vpop.f32.mrf.mxu0
    %3797 = vmatprep.mubr.f32.mxu0 0.0
    %3798 = vmatmul.mubr.f32.gmra.mxu0 %v3676
    %v3799 = vpop.f32.mrf.mxu0
    %v3800 = vadd.f32 0.0, %v3799
    %v3801 = vpop.f32.mrf.mxu0
    %3802 = vmatprep.mubr.f32.mxu0 0.0
    %3803 = vmatmul.mubr.f32.gmra.mxu0 %v3679
    %v3804 = vpop.f32.mrf.mxu0
    %v3805 = vadd.f32 0.0, %v3804
    %v3806 = vpop.f32.mrf.mxu0
    %3807 = vmatprep.mubr.f32.mxu0 0.0
    %3808 = vmatmul.mubr.f32.gmra.mxu0 %v3682
    %v3809 = vpop.f32.mrf.mxu0
    %v3810 = vadd.f32 0.0, %v3809
    %v3811 = vpop.f32.mrf.mxu0
    %3812 = vmatprep.mubr.f32.mxu0 0.0
    %3813 = vmatmul.mubr.f32.gmra.mxu0 %v3685
    %v3814 = vpop.f32.mrf.mxu0
    %v3815 = vadd.f32 0.0, %v3814
    %v3816 = vpop.f32.mrf.mxu0
    %3817 = vmatprep.mubr.f32.mxu0 0.0
    %3818 = vmatmul.mubr.f32.gmra.mxu0 %v3688
    %v3819 = vpop.f32.mrf.mxu0
    %v3820 = vadd.f32 0.0, %v3819
    %v3821 = vpop.f32.mrf.mxu0
    %3822 = vmatprep.mubr.f32.mxu0 0.0
    %3823 = vmatmul.mubr.f32.gmra.mxu0 %v3691
    %v3824 = vpop.f32.mrf.mxu0
    %v3825 = vadd.f32 0.0, %v3824
    %v3826 = vpop.f32.mrf.mxu0
    %3827 = vmatprep.mubr.f32.mxu0 0.0
    %3828 = vmatmul.mubr.f32.gmra.mxu0 %v3694
    %v3829 = vpop.f32.mrf.mxu0
    %v3830 = vadd.f32 0.0, %v3829
    %v3831 = vpop.f32.mrf.mxu0
    %3832 = vmatprep.mubr.f32.mxu0 0.0
    %3833 = vmatmul.mubr.f32.gmra.mxu0 %v3697
    %v3834 = vpop.f32.mrf.mxu0
    %v3835 = vadd.f32 0.0, %v3834
    %v3836 = vpop.f32.mrf.mxu0
    %3837 = vmatprep.mubr.f32.mxu0 0.0
    %3838 = vmatmul.mubr.f32.gmra.mxu0 %v3700
    %v3839 = vpop.f32.mrf.mxu0
    %v3840 = vadd.f32 0.0, %v3839
    %v3841 = vpop.f32.mrf.mxu0
    %3842 = vmatprep.mubr.f32.mxu0 0.0
    %3843 = vmatmul.mubr.f32.gmra.mxu0 %v3703
    %v3844 = vpop.f32.mrf.mxu0
    %v3845 = vadd.f32 0.0, %v3844
    %v3846 = vpop.f32.mrf.mxu0
    %3847 = vmatprep.mubr.f32.mxu0 0.0
    %3848 = vmatmul.mubr.f32.gmra.mxu0 %v3706
    %v3849 = vpop.f32.mrf.mxu0
    %v3850 = vadd.f32 0.0, %v3849
    %v3851 = vpop.f32.mrf.mxu0
    %3852 = vdwg.mxu0
    %v3853 = vadd.f32 %v3017, %v3775
    %v3854 = vadd.f32 %v3018, %v3780
    %v3855 = vadd.f32 %v3019, %v3785
    %v3856 = vadd.f32 %v3020, %v3790
    %v3857 = vadd.f32 %v3021, %v3795
    %v3858 = vadd.f32 %v3022, %v3800
    %v3859 = vadd.f32 %v3023, %v3805
    %v3860 = vadd.f32 %v3024, %v3810
    %v3861 = vadd.f32 %v3025, %v3815
    %v3862 = vadd.f32 %v3026, %v3820
    %v3863 = vadd.f32 %v3027, %v3825
    %v3864 = vadd.f32 %v3028, %v3830
    %v3865 = vadd.f32 %v3029, %v3835
    %v3866 = vadd.f32 %v3030, %v3840
    %v3867 = vadd.f32 %v3031, %v3845
    %v3868 = vadd.f32 %v3032, %v3850
    %v3869 = vadd.f32 %v61, %v3853
    %v3870 = vadd.f32 %v62, %v3854
    %v3871 = vadd.f32 %v63, %v3855
    %v3872 = vadd.f32 %v64, %v3856
    %v3873 = vadd.f32 %v65, %v3857
    %v3874 = vadd.f32 %v66, %v3858
    %v3875 = vadd.f32 %v67, %v3859
    %v3876 = vadd.f32 %v68, %v3860
    %v3877 = vadd.f32 %v69, %v3861
    %v3878 = vadd.f32 %v70, %v3862
    %v3879 = vadd.f32 %v71, %v3863
    %v3880 = vadd.f32 %v72, %v3864
    %v3881 = vadd.f32 %v73, %v3865
    %v3882 = vadd.f32 %v74, %v3866
    %v3883 = vadd.f32 %v75, %v3867
    %v3884 = vadd.f32 %v76, %v3868
    %v3885 = vld [vmem:[%s6] sm:$0x1]
    %v3887 = vlaneseq
    %v3888 = vshrl.u32 %v3887, 7
    %v3889 = vsub.s32 0, %v3888
    %v3890 = vrot.slane %v3885, %v3889
    %v3892 = vadd.f32 %v3869, %v3890
    %v3893 = vadd.f32 %v3870, %v3890
    %v3894 = vadd.f32 %v3871, %v3890
    %v3895 = vadd.f32 %v3872, %v3890
    %v3896 = vadd.f32 %v3873, %v3890
    %v3897 = vadd.f32 %v3874, %v3890
    %v3898 = vadd.f32 %v3875, %v3890
    %v3899 = vadd.f32 %v3876, %v3890
    %v3900 = vadd.f32 %v3877, %v3890
    %v3901 = vadd.f32 %v3878, %v3890
    %v3902 = vadd.f32 %v3879, %v3890
    %v3903 = vadd.f32 %v3880, %v3890
    %v3904 = vadd.f32 %v3881, %v3890
    %v3905 = vadd.f32 %v3882, %v3890
    %v3906 = vadd.f32 %v3883, %v3890
    %v3907 = vadd.f32 %v3884, %v3890
    %v3908 = vld [vmem:[%s8] sm:$0x1]
    %v3909 = vld [vmem:[%s9] sm:$0x1]
    %v3910 = vsel %vm79, %v3892, 0.0
    %3911 = vadd.xlane.f32.xlu0 %v3910
    %v3912 = vpop.xlane.xlu0 %3911
    %v3913 = vsel %vm79, %v3893, 0.0
    %3914 = vadd.xlane.f32.xlu0 %v3913
    %v3915 = vpop.xlane.xlu0 %3914
    %v3916 = vsel %vm79, %v3894, 0.0
    %3917 = vadd.xlane.f32.xlu0 %v3916
    %v3918 = vpop.xlane.xlu0 %3917
    %v3919 = vsel %vm79, %v3895, 0.0
    %3920 = vadd.xlane.f32.xlu0 %v3919
    %v3921 = vpop.xlane.xlu0 %3920
    %v3922 = vsel %vm79, %v3896, 0.0
    %3923 = vadd.xlane.f32.xlu0 %v3922
    %v3924 = vpop.xlane.xlu0 %3923
    %v3925 = vsel %vm79, %v3897, 0.0
    %3926 = vadd.xlane.f32.xlu0 %v3925
    %v3927 = vpop.xlane.xlu0 %3926
    %v3928 = vsel %vm79, %v3898, 0.0
    %3929 = vadd.xlane.f32.xlu0 %v3928
    %v3930 = vpop.xlane.xlu0 %3929
    %v3931 = vsel %vm79, %v3899, 0.0
    %3932 = vadd.xlane.f32.xlu0 %v3931
    %v3933 = vpop.xlane.xlu0 %3932
    %v3934 = vsel %vm79, %v3900, 0.0
    %3935 = vadd.xlane.f32.xlu0 %v3934
    %v3936 = vpop.xlane.xlu0 %3935
    %v3937 = vsel %vm79, %v3901, 0.0
    %3938 = vadd.xlane.f32.xlu0 %v3937
    %v3939 = vpop.xlane.xlu0 %3938
    %v3940 = vsel %vm79, %v3902, 0.0
    %3941 = vadd.xlane.f32.xlu0 %v3940
    %v3942 = vpop.xlane.xlu0 %3941
    %v3943 = vsel %vm79, %v3903, 0.0
    %3944 = vadd.xlane.f32.xlu0 %v3943
    %v3945 = vpop.xlane.xlu0 %3944
    %v3946 = vsel %vm79, %v3904, 0.0
    %3947 = vadd.xlane.f32.xlu0 %v3946
    %v3948 = vpop.xlane.xlu0 %3947
    %v3949 = vsel %vm79, %v3905, 0.0
    %3950 = vadd.xlane.f32.xlu0 %v3949
    %v3951 = vpop.xlane.xlu0 %3950
    %v3952 = vsel %vm79, %v3906, 0.0
    %3953 = vadd.xlane.f32.xlu0 %v3952
    %v3954 = vpop.xlane.xlu0 %3953
    %v3955 = vsel %vm79, %v3907, 0.0
    %3956 = vadd.xlane.f32.xlu0 %v3955
    %v3957 = vpop.xlane.xlu0 %3956
    %v3958 = vmul.f32 %v3912, %v128
    %v3959 = vmul.f32 %v3915, %v128
    %v3960 = vmul.f32 %v3918, %v128
    %v3961 = vmul.f32 %v3921, %v128
    %v3962 = vmul.f32 %v3924, %v128
    %v3963 = vmul.f32 %v3927, %v128
    %v3964 = vmul.f32 %v3930, %v128
    %v3965 = vmul.f32 %v3933, %v128
    %v3966 = vmul.f32 %v3936, %v128
    %v3967 = vmul.f32 %v3939, %v128
    %v3968 = vmul.f32 %v3942, %v128
    %v3969 = vmul.f32 %v3945, %v128
    %v3970 = vmul.f32 %v3948, %v128
    %v3971 = vmul.f32 %v3951, %v128
    %v3972 = vmul.f32 %v3954, %v128
    %v3973 = vmul.f32 %v3957, %v128
    %v3974 = vsub.f32 %v3892, %v3958
    %v3975 = vsub.f32 %v3893, %v3959
    %v3976 = vsub.f32 %v3894, %v3960
    %v3977 = vsub.f32 %v3895, %v3961
    %v3978 = vsub.f32 %v3896, %v3962
    %v3979 = vsub.f32 %v3897, %v3963
    %v3980 = vsub.f32 %v3898, %v3964
    %v3981 = vsub.f32 %v3899, %v3965
    %v3982 = vsub.f32 %v3900, %v3966
    %v3983 = vsub.f32 %v3901, %v3967
    %v3984 = vsub.f32 %v3902, %v3968
    %v3985 = vsub.f32 %v3903, %v3969
    %v3986 = vsub.f32 %v3904, %v3970
    %v3987 = vsub.f32 %v3905, %v3971
    %v3988 = vsub.f32 %v3906, %v3972
    %v3989 = vsub.f32 %v3907, %v3973
    %v3990 = vmul.f32 %v3974, %v3974
    %v3991 = vmul.f32 %v3975, %v3975
    %v3992 = vmul.f32 %v3976, %v3976
    %v3993 = vmul.f32 %v3977, %v3977
    %v3994 = vmul.f32 %v3978, %v3978
    %v3995 = vmul.f32 %v3979, %v3979
    %v3996 = vmul.f32 %v3980, %v3980
    %v3997 = vmul.f32 %v3981, %v3981
    %v3998 = vmul.f32 %v3982, %v3982
    %v3999 = vmul.f32 %v3983, %v3983
    %v4000 = vmul.f32 %v3984, %v3984
    %v4001 = vmul.f32 %v3985, %v3985
    %v4002 = vmul.f32 %v3986, %v3986
    %v4003 = vmul.f32 %v3987, %v3987
    %v4004 = vmul.f32 %v3988, %v3988
    %v4005 = vmul.f32 %v3989, %v3989
    %v4006 = vsel %vm79, %v3990, 0.0
    %4007 = vadd.xlane.f32.xlu0 %v4006
    %v4008 = vpop.xlane.xlu0 %4007
    %v4009 = vsel %vm79, %v3991, 0.0
    %4010 = vadd.xlane.f32.xlu0 %v4009
    %v4011 = vpop.xlane.xlu0 %4010
    %v4012 = vsel %vm79, %v3992, 0.0
    %4013 = vadd.xlane.f32.xlu0 %v4012
    %v4014 = vpop.xlane.xlu0 %4013
    %v4015 = vsel %vm79, %v3993, 0.0
    %4016 = vadd.xlane.f32.xlu0 %v4015
    %v4017 = vpop.xlane.xlu0 %4016
    %v4018 = vsel %vm79, %v3994, 0.0
    %4019 = vadd.xlane.f32.xlu0 %v4018
    %v4020 = vpop.xlane.xlu0 %4019
    %v4021 = vsel %vm79, %v3995, 0.0
    %4022 = vadd.xlane.f32.xlu0 %v4021
    %v4023 = vpop.xlane.xlu0 %4022
    %v4024 = vsel %vm79, %v3996, 0.0
    %4025 = vadd.xlane.f32.xlu0 %v4024
    %v4026 = vpop.xlane.xlu0 %4025
    %v4027 = vsel %vm79, %v3997, 0.0
    %4028 = vadd.xlane.f32.xlu0 %v4027
    %v4029 = vpop.xlane.xlu0 %4028
    %v4030 = vsel %vm79, %v3998, 0.0
    %4031 = vadd.xlane.f32.xlu0 %v4030
    %v4032 = vpop.xlane.xlu0 %4031
    %v4033 = vsel %vm79, %v3999, 0.0
    %4034 = vadd.xlane.f32.xlu0 %v4033
    %v4035 = vpop.xlane.xlu0 %4034
    %v4036 = vsel %vm79, %v4000, 0.0
    %4037 = vadd.xlane.f32.xlu0 %v4036
    %v4038 = vpop.xlane.xlu0 %4037
    %v4039 = vsel %vm79, %v4001, 0.0
    %4040 = vadd.xlane.f32.xlu0 %v4039
    %v4041 = vpop.xlane.xlu0 %4040
    %v4042 = vsel %vm79, %v4002, 0.0
    %4043 = vadd.xlane.f32.xlu0 %v4042
    %v4044 = vpop.xlane.xlu0 %4043
    %v4045 = vsel %vm79, %v4003, 0.0
    %4046 = vadd.xlane.f32.xlu0 %v4045
    %v4047 = vpop.xlane.xlu0 %4046
    %v4048 = vsel %vm79, %v4004, 0.0
    %4049 = vadd.xlane.f32.xlu0 %v4048
    %v4050 = vpop.xlane.xlu0 %4049
    %v4051 = vsel %vm79, %v4005, 0.0
    %4052 = vadd.xlane.f32.xlu0 %v4051
    %v4053 = vpop.xlane.xlu0 %4052
    %v4054 = vmul.f32 %v4008, %v128
    %v4055 = vmul.f32 %v4011, %v128
    %v4056 = vmul.f32 %v4014, %v128
    %v4057 = vmul.f32 %v4017, %v128
    %v4058 = vmul.f32 %v4020, %v128
    %v4059 = vmul.f32 %v4023, %v128
    %v4060 = vmul.f32 %v4026, %v128
    %v4061 = vmul.f32 %v4029, %v128
    %v4062 = vmul.f32 %v4032, %v128
    %v4063 = vmul.f32 %v4035, %v128
    %v4064 = vmul.f32 %v4038, %v128
    %v4065 = vmul.f32 %v4041, %v128
    %v4066 = vmul.f32 %v4044, %v128
    %v4067 = vmul.f32 %v4047, %v128
    %v4068 = vmul.f32 %v4050, %v128
    %v4069 = vmul.f32 %v4053, %v128
    %v4070 = vadd.f32 %v4054, 1e-05
    %v4071 = vadd.f32 %v4055, 1e-05
    %v4072 = vadd.f32 %v4056, 1e-05
    %v4073 = vadd.f32 %v4057, 1e-05
    %v4074 = vadd.f32 %v4058, 1e-05
    %v4075 = vadd.f32 %v4059, 1e-05
    %v4076 = vadd.f32 %v4060, 1e-05
    %v4077 = vadd.f32 %v4061, 1e-05
    %v4078 = vadd.f32 %v4062, 1e-05
    %v4079 = vadd.f32 %v4063, 1e-05
    %v4080 = vadd.f32 %v4064, 1e-05
    %v4081 = vadd.f32 %v4065, 1e-05
    %v4082 = vadd.f32 %v4066, 1e-05
    %v4083 = vadd.f32 %v4067, 1e-05
    %v4084 = vadd.f32 %v4068, 1e-05
    %v4085 = vadd.f32 %v4069, 1e-05
    %v4086 = vrsqrt.pop %v4070
    %v4087 = vrsqrt.pop %v4071
    %v4088 = vrsqrt.pop %v4072
    %v4089 = vrsqrt.pop %v4073
    %v4090 = vrsqrt.pop %v4074
    %v4091 = vrsqrt.pop %v4075
    %v4092 = vrsqrt.pop %v4076
    %v4093 = vrsqrt.pop %v4077
    %v4094 = vrsqrt.pop %v4078
    %v4095 = vrsqrt.pop %v4079
    %v4096 = vrsqrt.pop %v4080
    %v4097 = vrsqrt.pop %v4081
    %v4098 = vrsqrt.pop %v4082
    %v4099 = vrsqrt.pop %v4083
    %v4100 = vrsqrt.pop %v4084
    %v4101 = vrsqrt.pop %v4085
    %v4102 = vmul.f32 %v3974, %v4086
    %v4103 = vmul.f32 %v3975, %v4087
    %v4104 = vmul.f32 %v3976, %v4088
    %v4105 = vmul.f32 %v3977, %v4089
    %v4106 = vmul.f32 %v3978, %v4090
    %v4107 = vmul.f32 %v3979, %v4091
    %v4108 = vmul.f32 %v3980, %v4092
    %v4109 = vmul.f32 %v3981, %v4093
    %v4110 = vmul.f32 %v3982, %v4094
    %v4111 = vmul.f32 %v3983, %v4095
    %v4112 = vmul.f32 %v3984, %v4096
    %v4113 = vmul.f32 %v3985, %v4097
    %v4114 = vmul.f32 %v3986, %v4098
    %v4115 = vmul.f32 %v3987, %v4099
    %v4116 = vmul.f32 %v3988, %v4100
    %v4117 = vmul.f32 %v3989, %v4101
    %v4119 = vlaneseq
    %v4120 = vshrl.u32 %v4119, 7
    %v4121 = vsub.s32 0, %v4120
    %v4122 = vrot.slane %v3908, %v4121
    %v4124 = vmul.f32 %v4102, %v4122
    %v4125 = vmul.f32 %v4103, %v4122
    %v4126 = vmul.f32 %v4104, %v4122
    %v4127 = vmul.f32 %v4105, %v4122
    %v4128 = vmul.f32 %v4106, %v4122
    %v4129 = vmul.f32 %v4107, %v4122
    %v4130 = vmul.f32 %v4108, %v4122
    %v4131 = vmul.f32 %v4109, %v4122
    %v4132 = vmul.f32 %v4110, %v4122
    %v4133 = vmul.f32 %v4111, %v4122
    %v4134 = vmul.f32 %v4112, %v4122
    %v4135 = vmul.f32 %v4113, %v4122
    %v4136 = vmul.f32 %v4114, %v4122
    %v4137 = vmul.f32 %v4115, %v4122
    %v4138 = vmul.f32 %v4116, %v4122
    %v4139 = vmul.f32 %v4117, %v4122
    %v4141 = vlaneseq
    %v4142 = vshrl.u32 %v4141, 7
    %v4143 = vsub.s32 0, %v4142
    %v4144 = vrot.slane %v3909, %v4143
    %v4146 = vadd.f32 %v4124, %v4144
    %v4147 = vadd.f32 %v4125, %v4144
    %v4148 = vadd.f32 %v4126, %v4144
    %v4149 = vadd.f32 %v4127, %v4144
    %v4150 = vadd.f32 %v4128, %v4144
    %v4151 = vadd.f32 %v4129, %v4144
    %v4152 = vadd.f32 %v4130, %v4144
    %v4153 = vadd.f32 %v4131, %v4144
    %v4154 = vadd.f32 %v4132, %v4144
    %v4155 = vadd.f32 %v4133, %v4144
    %v4156 = vadd.f32 %v4134, %v4144
    %v4157 = vadd.f32 %v4135, %v4144
    %v4158 = vadd.f32 %v4136, %v4144
    %v4159 = vadd.f32 %v4137, %v4144
    %v4160 = vadd.f32 %v4138, %v4144
    %v4161 = vadd.f32 %v4139, %v4144
    %v4162 = vld [vmem:[%s10] sm:$0xff]
    %v4163 = vld [vmem:[%s10 + $0x8] sm:$0xff]
    %v4164 = vld [vmem:[%s10 + $0x10] sm:$0xff]
    %v4165 = vld [vmem:[%s10 + $0x18] sm:$0xff]
    %v4166 = vld [vmem:[%s11] sm:$0x1]
    %v4168 = vlaneseq
    %v4169 = vshrl.u32 %v4168, 7
    %v4170 = vsub.s32 0, %v4169
    %v4171 = vrot.slane %v4166, %v4170
    %v4174 = vsel %vm79, %v4146, 0
    %v4177 = vsel %vm79, %v4147, 0
    %v4180 = vsel %vm79, %v4148, 0
    %v4183 = vsel %vm79, %v4149, 0
    %v4186 = vsel %vm79, %v4150, 0
    %v4189 = vsel %vm79, %v4151, 0
    %v4192 = vsel %vm79, %v4152, 0
    %v4195 = vsel %vm79, %v4153, 0
    %v4198 = vsel %vm79, %v4154, 0
    %v4201 = vsel %vm79, %v4155, 0
    %v4204 = vsel %vm79, %v4156, 0
    %v4207 = vsel %vm79, %v4157, 0
    %v4210 = vsel %vm79, %v4158, 0
    %v4213 = vsel %vm79, %v4159, 0
    %v4216 = vsel %vm79, %v4160, 0
    %v4219 = vsel %vm79, %v4161, 0
    %4221 = vmatprep.subr.mxu0 0.0
    %4222 = vmatpush1.msra.mxu0 0.0
    %4223 = vmatprep.subr.mxu0 0.0
    %4224 = vmatpush1.msra.mxu0 0.0
    %4225 = vmatprep.subr.mxu0 0.0
    %4226 = vmatpush1.msra.mxu0 0.0
    %4227 = vmatprep.subr.mxu0 0.0
    %4228 = vmatpush1.msra.mxu0 0.0
    %4229 = vmatprep.subr.mxu0 0.0
    %4230 = vmatpush1.msra.mxu0 0.0
    %4231 = vmatprep.subr.mxu0 0.0
    %4232 = vmatpush1.msra.mxu0 0.0
    %4233 = vmatprep.subr.mxu0 0.0
    %4234 = vmatpush1.msra.mxu0 0.0
    %4235 = vmatprep.subr.mxu0 0.0
    %4236 = vmatpush1.msra.mxu0 0.0
    %4237 = vmatprep.subr.mxu0 0.0
    %4238 = vmatpush1.msra.mxu0 0.0
    %4239 = vmatprep.subr.mxu0 0.0
    %4240 = vmatpush1.msra.mxu0 0.0
    %4241 = vmatprep.subr.mxu0 0.0
    %4242 = vmatpush1.msra.mxu0 0.0
    %4243 = vmatprep.subr.mxu0 0.0
    %4244 = vmatpush1.msra.mxu0 0.0
    %4245 = vmatprep.subr.mxu0 0.0
    %4246 = vmatpush1.msra.mxu0 %v4165
    %4247 = vmatprep.subr.mxu0 0.0
    %4248 = vmatpush1.msra.mxu0 %v4164
    %4249 = vmatprep.subr.mxu0 0.0
    %4250 = vmatpush1.msra.mxu0 %v4163
    %4251 = vmatprep.subr.mxu0 0.0
    %4252 = vmatpush1.msra.mxu0 %v4162
    %4253 = vmatprep.subr.mxu0 0.0
    %4254 = vmatpush2.msra.mxu0 0.0
    %4255 = vmatprep.subr.mxu0 0.0
    %4256 = vmatpush2.msra.mxu0 0.0
    %4257 = vmatprep.subr.mxu0 0.0
    %4258 = vmatpush2.msra.mxu0 0.0
    %4259 = vmatprep.subr.mxu0 0.0
    %4260 = vmatpush2.msra.mxu0 0.0
    %4261 = vmatprep.subr.mxu0 0.0
    %4262 = vmatpush2.msra.mxu0 0.0
    %4263 = vmatprep.subr.mxu0 0.0
    %4264 = vmatpush2.msra.mxu0 0.0
    %4265 = vmatprep.subr.mxu0 0.0
    %4266 = vmatpush2.msra.mxu0 0.0
    %4267 = vmatprep.subr.mxu0 0.0
    %4268 = vmatpush2.msra.mxu0 0.0
    %4269 = vmatprep.subr.mxu0 0.0
    %4270 = vmatpush2.msra.mxu0 0.0
    %4271 = vmatprep.subr.mxu0 0.0
    %4272 = vmatpush2.msra.mxu0 0.0
    %4273 = vmatprep.subr.mxu0 0.0
    %4274 = vmatpush2.msra.mxu0 0.0
    %4275 = vmatprep.subr.mxu0 0.0
    %4276 = vmatpush2.msra.mxu0 0.0
    %4277 = vmatprep.subr.mxu0 0.0
    %4278 = vmatpush2.msra.mxu0 0.0
    %4279 = vmatprep.subr.mxu0 0.0
    %4280 = vmatpush2.msra.mxu0 0.0
    %4281 = vmatprep.subr.mxu0 0.0
    %4282 = vmatpush2.msra.mxu0 0.0
    %4283 = vmatprep.subr.mxu0 0.0
    %4284 = vmatpush2.msra.mxu0 0.0
    %4285 = vmatprep.mubr.f32.mxu0 0.0
    %4286 = vmatmul.mubr.f32.gmra.mxu0 %v4174
    %v4287 = vpop.f32.mrf.mxu0
    %v4288 = vadd.f32 %v4171, %v4287
    %v4289 = vpop.f32.mrf.mxu0
    %4290 = vmatprep.mubr.f32.mxu0 0.0
    %4291 = vmatmul.mubr.f32.gmra.mxu0 %v4177
    %v4292 = vpop.f32.mrf.mxu0
    %v4293 = vadd.f32 %v4171, %v4292
    %v4294 = vpop.f32.mrf.mxu0
    %4295 = vmatprep.mubr.f32.mxu0 0.0
    %4296 = vmatmul.mubr.f32.gmra.mxu0 %v4180
    %v4297 = vpop.f32.mrf.mxu0
    %v4298 = vadd.f32 %v4171, %v4297
    %v4299 = vpop.f32.mrf.mxu0
    %4300 = vmatprep.mubr.f32.mxu0 0.0
    %4301 = vmatmul.mubr.f32.gmra.mxu0 %v4183
    %v4302 = vpop.f32.mrf.mxu0
    %v4303 = vadd.f32 %v4171, %v4302
    %v4304 = vpop.f32.mrf.mxu0
    %4305 = vmatprep.mubr.f32.mxu0 0.0
    %4306 = vmatmul.mubr.f32.gmra.mxu0 %v4186
    %v4307 = vpop.f32.mrf.mxu0
    %v4308 = vadd.f32 %v4171, %v4307
    %v4309 = vpop.f32.mrf.mxu0
    %4310 = vmatprep.mubr.f32.mxu0 0.0
    %4311 = vmatmul.mubr.f32.gmra.mxu0 %v4189
    %v4312 = vpop.f32.mrf.mxu0
    %v4313 = vadd.f32 %v4171, %v4312
    %v4314 = vpop.f32.mrf.mxu0
    %4315 = vmatprep.mubr.f32.mxu0 0.0
    %4316 = vmatmul.mubr.f32.gmra.mxu0 %v4192
    %v4317 = vpop.f32.mrf.mxu0
    %v4318 = vadd.f32 %v4171, %v4317
    %v4319 = vpop.f32.mrf.mxu0
    %4320 = vmatprep.mubr.f32.mxu0 0.0
    %4321 = vmatmul.mubr.f32.gmra.mxu0 %v4195
    %v4322 = vpop.f32.mrf.mxu0
    %v4323 = vadd.f32 %v4171, %v4322
    %v4324 = vpop.f32.mrf.mxu0
    %4325 = vmatprep.mubr.f32.mxu0 0.0
    %4326 = vmatmul.mubr.f32.gmra.mxu0 %v4198
    %v4327 = vpop.f32.mrf.mxu0
    %v4328 = vadd.f32 %v4171, %v4327
    %v4329 = vpop.f32.mrf.mxu0
    %4330 = vmatprep.mubr.f32.mxu0 0.0
    %4331 = vmatmul.mubr.f32.gmra.mxu0 %v4201
    %v4332 = vpop.f32.mrf.mxu0
    %v4333 = vadd.f32 %v4171, %v4332
    %v4334 = vpop.f32.mrf.mxu0
    %4335 = vmatprep.mubr.f32.mxu0 0.0
    %4336 = vmatmul.mubr.f32.gmra.mxu0 %v4204
    %v4337 = vpop.f32.mrf.mxu0
    %v4338 = vadd.f32 %v4171, %v4337
    %v4339 = vpop.f32.mrf.mxu0
    %4340 = vmatprep.mubr.f32.mxu0 0.0
    %4341 = vmatmul.mubr.f32.gmra.mxu0 %v4207
    %v4342 = vpop.f32.mrf.mxu0
    %v4343 = vadd.f32 %v4171, %v4342
    %v4344 = vpop.f32.mrf.mxu0
    %4345 = vmatprep.mubr.f32.mxu0 0.0
    %4346 = vmatmul.mubr.f32.gmra.mxu0 %v4210
    %v4347 = vpop.f32.mrf.mxu0
    %v4348 = vadd.f32 %v4171, %v4347
    %v4349 = vpop.f32.mrf.mxu0
    %4350 = vmatprep.mubr.f32.mxu0 0.0
    %4351 = vmatmul.mubr.f32.gmra.mxu0 %v4213
    %v4352 = vpop.f32.mrf.mxu0
    %v4353 = vadd.f32 %v4171, %v4352
    %v4354 = vpop.f32.mrf.mxu0
    %4355 = vmatprep.mubr.f32.mxu0 0.0
    %4356 = vmatmul.mubr.f32.gmra.mxu0 %v4216
    %v4357 = vpop.f32.mrf.mxu0
    %v4358 = vadd.f32 %v4171, %v4357
    %v4359 = vpop.f32.mrf.mxu0
    %4360 = vmatprep.mubr.f32.mxu0 0.0
    %4361 = vmatmul.mubr.f32.gmra.mxu0 %v4219
    %v4362 = vpop.f32.mrf.mxu0
    %v4363 = vadd.f32 %v4171, %v4362
    %v4364 = vpop.f32.mrf.mxu0
    %4365 = vdwg.mxu0
    %v4366 = vmul.f32 %v4288, 0.5
    %v4367 = vmul.f32 %v4293, 0.5
    %v4368 = vmul.f32 %v4298, 0.5
    %v4369 = vmul.f32 %v4303, 0.5
    %v4370 = vmul.f32 %v4308, 0.5
    %v4371 = vmul.f32 %v4313, 0.5
    %v4372 = vmul.f32 %v4318, 0.5
    %v4373 = vmul.f32 %v4323, 0.5
    %v4374 = vmul.f32 %v4328, 0.5
    %v4375 = vmul.f32 %v4333, 0.5
    %v4376 = vmul.f32 %v4338, 0.5
    %v4377 = vmul.f32 %v4343, 0.5
    %v4378 = vmul.f32 %v4348, 0.5
    %v4379 = vmul.f32 %v4353, 0.5
    %v4380 = vmul.f32 %v4358, 0.5
    %v4381 = vmul.f32 %v4363, 0.5
    %v4382 = vmul.f32 %v4288, 0.70710677
    %v4383 = vmul.f32 %v4293, 0.70710677
    %v4384 = vmul.f32 %v4298, 0.70710677
    %v4385 = vmul.f32 %v4303, 0.70710677
    %v4386 = vmul.f32 %v4308, 0.70710677
    %v4387 = vmul.f32 %v4313, 0.70710677
    %v4388 = vmul.f32 %v4318, 0.70710677
    %v4389 = vmul.f32 %v4323, 0.70710677
    %v4390 = vmul.f32 %v4328, 0.70710677
    %v4391 = vmul.f32 %v4333, 0.70710677
    %v4392 = vmul.f32 %v4338, 0.70710677
    %v4393 = vmul.f32 %v4343, 0.70710677
    %v4394 = vmul.f32 %v4348, 0.70710677
    %v4395 = vmul.f32 %v4353, 0.70710677
    %v4396 = vmul.f32 %v4358, 0.70710677
    %v4397 = vmul.f32 %v4363, 0.70710677
    %v4398 = verf.f32.pop %v4382
    %v4399 = verf.f32.pop %v4383
    %v4400 = verf.f32.pop %v4384
    %v4401 = verf.f32.pop %v4385
    %v4402 = verf.f32.pop %v4386
    %v4403 = verf.f32.pop %v4387
    %v4404 = verf.f32.pop %v4388
    %v4405 = verf.f32.pop %v4389
    %v4406 = verf.f32.pop %v4390
    %v4407 = verf.f32.pop %v4391
    %v4408 = verf.f32.pop %v4392
    %v4409 = verf.f32.pop %v4393
    %v4410 = verf.f32.pop %v4394
    %v4411 = verf.f32.pop %v4395
    %v4412 = verf.f32.pop %v4396
    %v4413 = verf.f32.pop %v4397
    %v4414 = vadd.f32 %v4398, 1.0
    %v4415 = vadd.f32 %v4399, 1.0
    %v4416 = vadd.f32 %v4400, 1.0
    %v4417 = vadd.f32 %v4401, 1.0
    %v4418 = vadd.f32 %v4402, 1.0
    %v4419 = vadd.f32 %v4403, 1.0
    %v4420 = vadd.f32 %v4404, 1.0
    %v4421 = vadd.f32 %v4405, 1.0
    %v4422 = vadd.f32 %v4406, 1.0
    %v4423 = vadd.f32 %v4407, 1.0
    %v4424 = vadd.f32 %v4408, 1.0
    %v4425 = vadd.f32 %v4409, 1.0
    %v4426 = vadd.f32 %v4410, 1.0
    %v4427 = vadd.f32 %v4411, 1.0
    %v4428 = vadd.f32 %v4412, 1.0
    %v4429 = vadd.f32 %v4413, 1.0
    %v4430 = vmul.f32 %v4366, %v4414
    %v4431 = vmul.f32 %v4367, %v4415
    %v4432 = vmul.f32 %v4368, %v4416
    %v4433 = vmul.f32 %v4369, %v4417
    %v4434 = vmul.f32 %v4370, %v4418
    %v4435 = vmul.f32 %v4371, %v4419
    %v4436 = vmul.f32 %v4372, %v4420
    %v4437 = vmul.f32 %v4373, %v4421
    %v4438 = vmul.f32 %v4374, %v4422
    %v4439 = vmul.f32 %v4375, %v4423
    %v4440 = vmul.f32 %v4376, %v4424
    %v4441 = vmul.f32 %v4377, %v4425
    %v4442 = vmul.f32 %v4378, %v4426
    %v4443 = vmul.f32 %v4379, %v4427
    %v4444 = vmul.f32 %v4380, %v4428
    %v4445 = vmul.f32 %v4381, %v4429
    %v4446 = vld [vmem:[%s12] sm:$0xff]
    %v4447 = vld [vmem:[%s12 + $0x8] sm:$0xff]
    %v4448 = vld [vmem:[%s12 + $0x10] sm:$0xff]
    %v4449 = vld [vmem:[%s12 + $0x18] sm:$0xff]
    %v4450 = vld [vmem:[%s12 + $0x20] sm:$0xff]
    %v4451 = vld [vmem:[%s12 + $0x28] sm:$0xff]
    %v4452 = vld [vmem:[%s12 + $0x30] sm:$0xff]
    %v4453 = vld [vmem:[%s12 + $0x38] sm:$0xff]
    %v4454 = vld [vmem:[%s12 + $0x40] sm:$0xff]
    %v4455 = vld [vmem:[%s12 + $0x48] sm:$0xff]
    %v4456 = vld [vmem:[%s12 + $0x50] sm:$0xff]
    %v4457 = vld [vmem:[%s12 + $0x58] sm:$0xff]
    %v4458 = vld [vmem:[%s12 + $0x60] sm:$0xff]
    %v4459 = vld [vmem:[%s12 + $0x68] sm:$0xff]
    %v4460 = vld [vmem:[%s12 + $0x70] sm:$0xff]
    %v4461 = vld [vmem:[%s12 + $0x78] sm:$0xff]
    %v4462 = vld [vmem:[%s13] sm:$0x1]
    %v4464 = vlaneseq
    %v4465 = vshrl.u32 %v4464, 7
    %v4466 = vsub.s32 0, %v4465
    %v4467 = vrot.slane %v4462, %v4466
    %4469 = vmatprep.subr.mxu0 0.0
    %4470 = vmatpush1.msra.mxu0 %v4461
    %4471 = vmatprep.subr.mxu0 0.0
    %4472 = vmatpush1.msra.mxu0 %v4460
    %4473 = vmatprep.subr.mxu0 0.0
    %4474 = vmatpush1.msra.mxu0 %v4459
    %4475 = vmatprep.subr.mxu0 0.0
    %4476 = vmatpush1.msra.mxu0 %v4458
    %4477 = vmatprep.subr.mxu0 0.0
    %4478 = vmatpush1.msra.mxu0 %v4457
    %4479 = vmatprep.subr.mxu0 0.0
    %4480 = vmatpush1.msra.mxu0 %v4456
    %4481 = vmatprep.subr.mxu0 0.0
    %4482 = vmatpush1.msra.mxu0 %v4455
    %4483 = vmatprep.subr.mxu0 0.0
    %4484 = vmatpush1.msra.mxu0 %v4454
    %4485 = vmatprep.subr.mxu0 0.0
    %4486 = vmatpush1.msra.mxu0 %v4453
    %4487 = vmatprep.subr.mxu0 0.0
    %4488 = vmatpush1.msra.mxu0 %v4452
    %4489 = vmatprep.subr.mxu0 0.0
    %4490 = vmatpush1.msra.mxu0 %v4451
    %4491 = vmatprep.subr.mxu0 0.0
    %4492 = vmatpush1.msra.mxu0 %v4450
    %4493 = vmatprep.subr.mxu0 0.0
    %4494 = vmatpush1.msra.mxu0 %v4449
    %4495 = vmatprep.subr.mxu0 0.0
    %4496 = vmatpush1.msra.mxu0 %v4448
    %4497 = vmatprep.subr.mxu0 0.0
    %4498 = vmatpush1.msra.mxu0 %v4447
    %4499 = vmatprep.subr.mxu0 0.0
    %4500 = vmatpush1.msra.mxu0 %v4446
    %4501 = vmatprep.subr.mxu0 0.0
    %4502 = vmatpush2.msra.mxu0 0.0
    %4503 = vmatprep.subr.mxu0 0.0
    %4504 = vmatpush2.msra.mxu0 0.0
    %4505 = vmatprep.subr.mxu0 0.0
    %4506 = vmatpush2.msra.mxu0 0.0
    %4507 = vmatprep.subr.mxu0 0.0
    %4508 = vmatpush2.msra.mxu0 0.0
    %4509 = vmatprep.subr.mxu0 0.0
    %4510 = vmatpush2.msra.mxu0 0.0
    %4511 = vmatprep.subr.mxu0 0.0
    %4512 = vmatpush2.msra.mxu0 0.0
    %4513 = vmatprep.subr.mxu0 0.0
    %4514 = vmatpush2.msra.mxu0 0.0
    %4515 = vmatprep.subr.mxu0 0.0
    %4516 = vmatpush2.msra.mxu0 0.0
    %4517 = vmatprep.subr.mxu0 0.0
    %4518 = vmatpush2.msra.mxu0 0.0
    %4519 = vmatprep.subr.mxu0 0.0
    %4520 = vmatpush2.msra.mxu0 0.0
    %4521 = vmatprep.subr.mxu0 0.0
    %4522 = vmatpush2.msra.mxu0 0.0
    %4523 = vmatprep.subr.mxu0 0.0
    %4524 = vmatpush2.msra.mxu0 0.0
    %4525 = vmatprep.subr.mxu0 0.0
    %4526 = vmatpush2.msra.mxu0 0.0
    %4527 = vmatprep.subr.mxu0 0.0
    %4528 = vmatpush2.msra.mxu0 0.0
    %4529 = vmatprep.subr.mxu0 0.0
    %4530 = vmatpush2.msra.mxu0 0.0
    %4531 = vmatprep.subr.mxu0 0.0
    %4532 = vmatpush2.msra.mxu0 0.0
    %4533 = vmatprep.mubr.f32.mxu0 0.0
    %4534 = vmatmul.mubr.f32.gmra.mxu0 %v4430
    %v4535 = vpop.f32.mrf.mxu0
    %v4536 = vadd.f32 %v4467, %v4535
    %v4537 = vpop.f32.mrf.mxu0
    %4538 = vmatprep.mubr.f32.mxu0 0.0
    %4539 = vmatmul.mubr.f32.gmra.mxu0 %v4431
    %v4540 = vpop.f32.mrf.mxu0
    %v4541 = vadd.f32 %v4467, %v4540
    %v4542 = vpop.f32.mrf.mxu0
    %4543 = vmatprep.mubr.f32.mxu0 0.0
    %4544 = vmatmul.mubr.f32.gmra.mxu0 %v4432
    %v4545 = vpop.f32.mrf.mxu0
    %v4546 = vadd.f32 %v4467, %v4545
    %v4547 = vpop.f32.mrf.mxu0
    %4548 = vmatprep.mubr.f32.mxu0 0.0
    %4549 = vmatmul.mubr.f32.gmra.mxu0 %v4433
    %v4550 = vpop.f32.mrf.mxu0
    %v4551 = vadd.f32 %v4467, %v4550
    %v4552 = vpop.f32.mrf.mxu0
    %4553 = vmatprep.mubr.f32.mxu0 0.0
    %4554 = vmatmul.mubr.f32.gmra.mxu0 %v4434
    %v4555 = vpop.f32.mrf.mxu0
    %v4556 = vadd.f32 %v4467, %v4555
    %v4557 = vpop.f32.mrf.mxu0
    %4558 = vmatprep.mubr.f32.mxu0 0.0
    %4559 = vmatmul.mubr.f32.gmra.mxu0 %v4435
    %v4560 = vpop.f32.mrf.mxu0
    %v4561 = vadd.f32 %v4467, %v4560
    %v4562 = vpop.f32.mrf.mxu0
    %4563 = vmatprep.mubr.f32.mxu0 0.0
    %4564 = vmatmul.mubr.f32.gmra.mxu0 %v4436
    %v4565 = vpop.f32.mrf.mxu0
    %v4566 = vadd.f32 %v4467, %v4565
    %v4567 = vpop.f32.mrf.mxu0
    %4568 = vmatprep.mubr.f32.mxu0 0.0
    %4569 = vmatmul.mubr.f32.gmra.mxu0 %v4437
    %v4570 = vpop.f32.mrf.mxu0
    %v4571 = vadd.f32 %v4467, %v4570
    %v4572 = vpop.f32.mrf.mxu0
    %4573 = vmatprep.mubr.f32.mxu0 0.0
    %4574 = vmatmul.mubr.f32.gmra.mxu0 %v4438
    %v4575 = vpop.f32.mrf.mxu0
    %v4576 = vadd.f32 %v4467, %v4575
    %v4577 = vpop.f32.mrf.mxu0
    %4578 = vmatprep.mubr.f32.mxu0 0.0
    %4579 = vmatmul.mubr.f32.gmra.mxu0 %v4439
    %v4580 = vpop.f32.mrf.mxu0
    %v4581 = vadd.f32 %v4467, %v4580
    %v4582 = vpop.f32.mrf.mxu0
    %4583 = vmatprep.mubr.f32.mxu0 0.0
    %4584 = vmatmul.mubr.f32.gmra.mxu0 %v4440
    %v4585 = vpop.f32.mrf.mxu0
    %v4586 = vadd.f32 %v4467, %v4585
    %v4587 = vpop.f32.mrf.mxu0
    %4588 = vmatprep.mubr.f32.mxu0 0.0
    %4589 = vmatmul.mubr.f32.gmra.mxu0 %v4441
    %v4590 = vpop.f32.mrf.mxu0
    %v4591 = vadd.f32 %v4467, %v4590
    %v4592 = vpop.f32.mrf.mxu0
    %4593 = vmatprep.mubr.f32.mxu0 0.0
    %4594 = vmatmul.mubr.f32.gmra.mxu0 %v4442
    %v4595 = vpop.f32.mrf.mxu0
    %v4596 = vadd.f32 %v4467, %v4595
    %v4597 = vpop.f32.mrf.mxu0
    %4598 = vmatprep.mubr.f32.mxu0 0.0
    %4599 = vmatmul.mubr.f32.gmra.mxu0 %v4443
    %v4600 = vpop.f32.mrf.mxu0
    %v4601 = vadd.f32 %v4467, %v4600
    %v4602 = vpop.f32.mrf.mxu0
    %4603 = vmatprep.mubr.f32.mxu0 0.0
    %4604 = vmatmul.mubr.f32.gmra.mxu0 %v4444
    %v4605 = vpop.f32.mrf.mxu0
    %v4606 = vadd.f32 %v4467, %v4605
    %v4607 = vpop.f32.mrf.mxu0
    %4608 = vmatprep.mubr.f32.mxu0 0.0
    %4609 = vmatmul.mubr.f32.gmra.mxu0 %v4445
    %v4610 = vpop.f32.mrf.mxu0
    %v4611 = vadd.f32 %v4467, %v4610
    %v4612 = vpop.f32.mrf.mxu0
    %4613 = vdwg.mxu0
    %v4614 = vadd.f32 %v3892, %v4536
    %v4615 = vadd.f32 %v3893, %v4541
    %v4616 = vadd.f32 %v3894, %v4546
    %v4617 = vadd.f32 %v3895, %v4551
    %v4618 = vadd.f32 %v3896, %v4556
    %v4619 = vadd.f32 %v3897, %v4561
    %v4620 = vadd.f32 %v3898, %v4566
    %v4621 = vadd.f32 %v3899, %v4571
    %v4622 = vadd.f32 %v3900, %v4576
    %v4623 = vadd.f32 %v3901, %v4581
    %v4624 = vadd.f32 %v3902, %v4586
    %v4625 = vadd.f32 %v3903, %v4591
    %v4626 = vadd.f32 %v3904, %v4596
    %v4627 = vadd.f32 %v3905, %v4601
    %v4628 = vadd.f32 %v3906, %v4606
    %v4629 = vadd.f32 %v3907, %v4611
    %4630 = vst.msk [vmem:[%s14] sm:$0xff] %vm79, %v4614
    %4631 = vst.msk [vmem:[%s14 + $0x8] sm:$0xff] %vm79, %v4615
    %4632 = vst.msk [vmem:[%s14 + $0x10] sm:$0xff] %vm79, %v4616
    %4633 = vst.msk [vmem:[%s14 + $0x18] sm:$0xff] %vm79, %v4617
    %4634 = vst.msk [vmem:[%s14 + $0x20] sm:$0xff] %vm79, %v4618
    %4635 = vst.msk [vmem:[%s14 + $0x28] sm:$0xff] %vm79, %v4619
    %4636 = vst.msk [vmem:[%s14 + $0x30] sm:$0xff] %vm79, %v4620
    %4637 = vst.msk [vmem:[%s14 + $0x38] sm:$0xff] %vm79, %v4621
    %4638 = vst.msk [vmem:[%s14 + $0x40] sm:$0xff] %vm79, %v4622
    %4639 = vst.msk [vmem:[%s14 + $0x48] sm:$0xff] %vm79, %v4623
    %4640 = vst.msk [vmem:[%s14 + $0x50] sm:$0xff] %vm79, %v4624
    %4641 = vst.msk [vmem:[%s14 + $0x58] sm:$0xff] %vm79, %v4625
    %4642 = vst.msk [vmem:[%s14 + $0x60] sm:$0xff] %vm79, %v4626
    %4643 = vst.msk [vmem:[%s14 + $0x68] sm:$0xff] %vm79, %v4627
    %4644 = vst.msk [vmem:[%s14 + $0x70] sm:$0xff] %vm79, %v4628
    %4645 = vst.msk [vmem:[%s14 + $0x78] sm:$0xff] %vm79, %v4629
    // Predicated region
    $region62: #{swin_block_forward.1} parent=1 // pred_check
      _
    $region63: #{swin_block_forward.1} parent=1 // pred_check_branch
      %4647 = sbr.rel (0) target = $region65
    $region64: #{swin_block_forward.1} parent=1 // pred_region
      _
    $region65: #{swin_block_forward.1} parent=1 // pred_fallthru
      _
    // Predicated region
    $region66: #{swin_block_forward.1} parent=1 // pred_check
      _
    $region67: #{swin_block_forward.1} parent=1 // pred_check_branch
      %4649 = sbr.rel (0) target = $region69
    $region68: #{swin_block_forward.1} parent=1 // pred_region
      _
    $region69: #{swin_block_forward.1} parent=1 // pred_fallthru
      _
    %4650 = vsyncpa [#allocation3], 1

</llo_original>
